<compile_context>
chip_gen: v5e
topology: v5e:2x2
jax: 0.10.0
libtpu: 0.0.40
codegen_flags: <defaults>
</compile_context>

<pallas_src>
import math

import jax
import jax.numpy as jnp
from jax import lax
from jax.experimental import pallas as pl
from jax.experimental.pallas import tpu as pltpu


IN_FEATURES = 256          # fixed by the module (input = 256)
OUT_FEATURES = 2           # final Linear(512, 2)
OUT_PAD = 128              # lane-aligned padded output width
TB_MAX = 512               # max batch rows per grid step

_GELU_C = math.sqrt(2.0 / math.pi)


def _gelu_tanh(v):
    # tanh-approximate GELU; jnp.tanh lowers to the EUP (separate VLIW slot),
    # unlike lax.erf which is a long VALU polynomial.
    return 0.5 * v * (1.0 + jnp.tanh(_GELU_C * (v + 0.044715 * (v * v * v))))


def _gelu_exact(v):
    # Exact erf-based GELU (PyTorch nn.GELU() default) -- reference only.
    return 0.5 * v * (1.0 + lax.erf(v * (1.0 / math.sqrt(2.0))))


def mappingt_kernel(x_ref,
                    w1_ref, b1_ref,
                    w2_ref, b2_ref,
                    w3_ref, b3_ref,
                    w4_ref, b4_ref,
                    o_ref):
    # x tile: (TB, 256) f32.  Weights: bf16 (MXU consumes bf16, accumulates f32).
    # Bias adds / GELU / ReLU stay in f32 on the VPU/EUP.
    x = x_ref[...]

    h = jnp.dot(x.astype(jnp.bfloat16), w1_ref[...],
                preferred_element_type=jnp.float32) + b1_ref[...]
    h = _gelu_tanh(h)

    h = jnp.dot(h.astype(jnp.bfloat16), w2_ref[...],
                preferred_element_type=jnp.float32) + b2_ref[...]
    h = _gelu_tanh(h)

    h = jnp.dot(h.astype(jnp.bfloat16), w3_ref[...],
                preferred_element_type=jnp.float32) + b3_ref[...]
    h = _gelu_tanh(h)

    h = jnp.dot(h.astype(jnp.bfloat16), w4_ref[...],
                preferred_element_type=jnp.float32) + b4_ref[...]
    h = jnp.maximum(h, 0.0)  # ReLU (on the zero-padded 128-wide output)

    o_ref[...] = h.astype(o_ref.dtype)


def prepare_params(params):
    """Convert reference f32 params into the kernel layout:
    bf16 weights, f32 biases, layer-4 padded from 2 -> 128 output columns."""
    (w1, b1), (w2, b2), (w3, b3), (w4, b4) = params
    w4p = jnp.zeros((w4.shape[0], OUT_PAD), jnp.float32).at[:, :OUT_FEATURES].set(w4)
    b4p = jnp.zeros((1, OUT_PAD), jnp.float32).at[:, :OUT_FEATURES].set(b4)
    to_bf16 = lambda w: w.astype(jnp.bfloat16)
    return ((to_bf16(w1), b1.astype(jnp.float32)),
            (to_bf16(w2), b2.astype(jnp.float32)),
            (to_bf16(w3), b3.astype(jnp.float32)),
            (to_bf16(w4p), b4p.astype(jnp.float32)))


@jax.jit
def mappingt_forward(x, kernel_params):
    (w1, b1), (w2, b2), (w3, b3), (w4, b4) = kernel_params
    B = x.shape[0]

    # Batch tile: multiple of 8 sublanes, capped at TB_MAX rows.  No wrapper-side
    # padding: the grid uses cdiv and Pallas masks the partial last block.
    TB = min(TB_MAX, max(8, ((B + 7) // 8) * 8))
    grid_steps = pl.cdiv(B, TB)

    # Only shard across TensorCores when there is actually >1 grid step
    # (avoids duplicating the VMEM-resident weight DMA on v7x for nothing).
    semantics = ("parallel",) if grid_steps > 1 else ("arbitrary",)

    # Weights/biases: full blocks, constant index_map -> VMEM-resident across grid.
    const_spec = lambda a: pl.BlockSpec(a.shape, lambda i: (0,) * a.ndim)

    out = pl.pallas_call(
        mappingt_kernel,
        out_shape=jax.ShapeDtypeStruct((B, OUT_PAD), x.dtype),
        grid=(grid_steps,),
        in_specs=[pl.BlockSpec((TB, IN_FEATURES), lambda i: (i, 0)),
                  const_spec(w1), const_spec(b1),
                  const_spec(w2), const_spec(b2),
                  const_spec(w3), const_spec(b3),
                  const_spec(w4), const_spec(b4)],
        out_specs=pl.BlockSpec((TB, OUT_PAD), lambda i: (i, 0)),
        compiler_params=pltpu.CompilerParams(
            dimension_semantics=semantics,
            vmem_limit_bytes=24 << 20,
        ),
    )(x, w1, b1, w2, b2, w3, b3, w4, b4)

    # Strip the lane padding, then match `x1.squeeze()`.
    return jnp.squeeze(out[:, :OUT_FEATURES])


def init_params(key, in_features=IN_FEATURES):
    """Deterministic f32 init mimicking nn.Linear's U(-1/sqrt(fan_in), 1/sqrt(fan_in))."""
    dims = [in_features, 2 * in_features, 4 * in_features, 2 * in_features, OUT_FEATURES]
    params = []
    for i in range(4):
        fan_in, fan_out = dims[i], dims[i + 1]
        key, kw, kb = jax.random.split(key, 3)
        bound = 1.0 / math.sqrt(fan_in)
        w = jax.random.uniform(kw, (fan_in, fan_out), jnp.float32, -bound, bound)
        b = jax.random.uniform(kb, (1, fan_out), jnp.float32, -bound, bound)
        params.append((w, b))
    return params


def _reference_forward(x, params):
    """Pure-JAX f32 reference matching the PyTorch module (exact erf GELU)."""
    h = x
    for idx, (w, b) in enumerate(params):
        h = h @ w + b
        if idx < 3:
            h = _gelu_exact(h)
        else:
            h = jnp.maximum(h, 0.0)
    return jnp.squeeze(h)


if __name__ == "__main__":
    key = jax.random.PRNGKey(0)
    key, kx = jax.random.split(key)

    B = 8  # small batch; feature dim fixed by the module (input = 256)
    x = jax.random.normal(kx, (B, IN_FEATURES), dtype=jnp.float32)

    params = init_params(key, IN_FEATURES)           # f32 reference params
    kernel_params = prepare_params(params)           # bf16 weights, padded layer 4

    y = mappingt_forward(x, kernel_params)
    y = jax.block_until_ready(y)

    assert y.shape == (B, OUT_FEATURES), y.shape
    assert bool(jnp.all(y >= 0.0)), "ReLU output must be non-negative"

    # Tolerance check vs f32 exact-GELU reference (bf16 weights + tanh GELU -> small deltas).
    y_ref = _reference_forward(x, params)
    err = float(jnp.max(jnp.abs(y - y_ref)))
    assert err < 5e-2, f"max abs error {err} too large"

    print("KERNEL_OK")
</pallas_src>

<mosaic_0001>
module attributes {stable_mosaic.version = 11 : i64} {
  func.func @mappingt_kernel(%arg0: i32, %arg1: memref<8x256xf32, #tpu.memory_space<vmem>>, %arg2: memref<256x512xbf16, #tpu.memory_space<vmem>>, %arg3: memref<1x512xf32, #tpu.memory_space<vmem>>, %arg4: memref<512x1024xbf16, #tpu.memory_space<vmem>>, %arg5: memref<1x1024xf32, #tpu.memory_space<vmem>>, %arg6: memref<1024x512xbf16, #tpu.memory_space<vmem>>, %arg7: memref<1x512xf32, #tpu.memory_space<vmem>>, %arg8: memref<512x128xbf16, #tpu.memory_space<vmem>>, %arg9: memref<1x128xf32, #tpu.memory_space<vmem>>, %arg10: memref<8x128xf32, #tpu.memory_space<vmem>>) attributes {dimension_semantics = [#tpu.dimension_semantics<arbitrary>], iteration_bounds = array<i64: 1>, scalar_prefetch = 0 : i64, scratch_operands = 0 : i64, tpu.core_type = #tpu.core_type<tc>, window_params = [{transform_indices = @transform_0, window_bounds = array<i64: 8, 256>}, {pipeline_mode = #tpu.pipeline_mode<synchronous>, transform_indices = @transform_1, window_bounds = array<i64: 256, 512>}, {pipeline_mode = #tpu.pipeline_mode<synchronous>, transform_indices = @transform_2, window_bounds = array<i64: 1, 512>}, {pipeline_mode = #tpu.pipeline_mode<synchronous>, transform_indices = @transform_3, window_bounds = array<i64: 512, 1024>}, {pipeline_mode = #tpu.pipeline_mode<synchronous>, transform_indices = @transform_4, window_bounds = array<i64: 1, 1024>}, {pipeline_mode = #tpu.pipeline_mode<synchronous>, transform_indices = @transform_5, window_bounds = array<i64: 1024, 512>}, {pipeline_mode = #tpu.pipeline_mode<synchronous>, transform_indices = @transform_6, window_bounds = array<i64: 1, 512>}, {pipeline_mode = #tpu.pipeline_mode<synchronous>, transform_indices = @transform_7, window_bounds = array<i64: 512, 128>}, {pipeline_mode = #tpu.pipeline_mode<synchronous>, transform_indices = @transform_8, window_bounds = array<i64: 1, 128>}, {transform_indices = @transform_9, window_bounds = array<i64: 8, 128>}]} {
    %c0 = arith.constant 0 : index
    %c0_0 = arith.constant 0 : index
    %0 = vector.load %arg1[%c0, %c0_0] : memref<8x256xf32, #tpu.memory_space<vmem>>, vector<8x256xf32>
    %1 = arith.truncf %0 : vector<8x256xf32> to vector<8x256xbf16>
    %c0_1 = arith.constant 0 : index
    %c0_2 = arith.constant 0 : index
    %2 = vector.load %arg2[%c0_1, %c0_2] : memref<256x512xbf16, #tpu.memory_space<vmem>>, vector<256x512xbf16>
    %cst = arith.constant dense<0.000000e+00> : vector<8x512xf32>
    %3 = tpu.matmul %1, %2, %cst {dimension_numbers = #tpu.dot_dimension_numbers<[1], [0], [0], [1], [0, 0, 1, 1], [], []>} : vector<8x256xbf16>, vector<256x512xbf16>, vector<8x512xf32> -> vector<8x512xf32>
    %c0_3 = arith.constant 0 : index
    %c0_4 = arith.constant 0 : index
    %4 = vector.load %arg3[%c0_3, %c0_4] : memref<1x512xf32, #tpu.memory_space<vmem>>, vector<1x512xf32>
    %5 = vector.broadcast %4 : vector<1x512xf32> to vector<8x512xf32>
    %6 = arith.addf %3, %5 : vector<8x512xf32>
    %cst_5 = arith.constant 5.000000e-01 : f32
    %7 = vector.broadcast %cst_5 : f32 to vector<8x512xf32>
    %8 = arith.mulf %7, %6 : vector<8x512xf32>
    %9 = arith.mulf %6, %6 : vector<8x512xf32>
    %10 = arith.mulf %9, %6 : vector<8x512xf32>
    %cst_6 = arith.constant 4.471500e-02 : f32
    %11 = vector.broadcast %cst_6 : f32 to vector<8x512xf32>
    %12 = arith.mulf %11, %10 : vector<8x512xf32>
    %13 = arith.addf %6, %12 : vector<8x512xf32>
    %cst_7 = arith.constant 0.797884583 : f32
    %14 = vector.broadcast %cst_7 : f32 to vector<8x512xf32>
    %15 = arith.mulf %14, %13 : vector<8x512xf32>
    %16 = math.tanh %15 : vector<8x512xf32>
    %cst_8 = arith.constant 1.000000e+00 : f32
    %17 = vector.broadcast %cst_8 : f32 to vector<8x512xf32>
    %18 = arith.addf %17, %16 : vector<8x512xf32>
    %19 = arith.mulf %8, %18 : vector<8x512xf32>
    %20 = arith.truncf %19 : vector<8x512xf32> to vector<8x512xbf16>
    %c0_9 = arith.constant 0 : index
    %c0_10 = arith.constant 0 : index
    %21 = vector.load %arg4[%c0_9, %c0_10] : memref<512x1024xbf16, #tpu.memory_space<vmem>>, vector<512x1024xbf16>
    %cst_11 = arith.constant dense<0.000000e+00> : vector<8x1024xf32>
    %22 = tpu.matmul %20, %21, %cst_11 {dimension_numbers = #tpu.dot_dimension_numbers<[1], [0], [0], [1], [0, 0, 1, 1], [], []>} : vector<8x512xbf16>, vector<512x1024xbf16>, vector<8x1024xf32> -> vector<8x1024xf32>
    %c0_12 = arith.constant 0 : index
    %c0_13 = arith.constant 0 : index
    %23 = vector.load %arg5[%c0_12, %c0_13] : memref<1x1024xf32, #tpu.memory_space<vmem>>, vector<1x1024xf32>
    %24 = vector.broadcast %23 : vector<1x1024xf32> to vector<8x1024xf32>
    %25 = arith.addf %22, %24 : vector<8x1024xf32>
    %cst_14 = arith.constant 5.000000e-01 : f32
    %26 = vector.broadcast %cst_14 : f32 to vector<8x1024xf32>
    %27 = arith.mulf %26, %25 : vector<8x1024xf32>
    %28 = arith.mulf %25, %25 : vector<8x1024xf32>
    %29 = arith.mulf %28, %25 : vector<8x1024xf32>
    %cst_15 = arith.constant 4.471500e-02 : f32
    %30 = vector.broadcast %cst_15 : f32 to vector<8x1024xf32>
    %31 = arith.mulf %30, %29 : vector<8x1024xf32>
    %32 = arith.addf %25, %31 : vector<8x1024xf32>
    %cst_16 = arith.constant 0.797884583 : f32
    %33 = vector.broadcast %cst_16 : f32 to vector<8x1024xf32>
    %34 = arith.mulf %33, %32 : vector<8x1024xf32>
    %35 = math.tanh %34 : vector<8x1024xf32>
    %cst_17 = arith.constant 1.000000e+00 : f32
    %36 = vector.broadcast %cst_17 : f32 to vector<8x1024xf32>
    %37 = arith.addf %36, %35 : vector<8x1024xf32>
    %38 = arith.mulf %27, %37 : vector<8x1024xf32>
    %39 = arith.truncf %38 : vector<8x1024xf32> to vector<8x1024xbf16>
    %c0_18 = arith.constant 0 : index
    %c0_19 = arith.constant 0 : index
    %40 = vector.load %arg6[%c0_18, %c0_19] : memref<1024x512xbf16, #tpu.memory_space<vmem>>, vector<1024x512xbf16>
    %cst_20 = arith.constant dense<0.000000e+00> : vector<8x512xf32>
    %41 = tpu.matmul %39, %40, %cst_20 {dimension_numbers = #tpu.dot_dimension_numbers<[1], [0], [0], [1], [0, 0, 1, 1], [], []>} : vector<8x1024xbf16>, vector<1024x512xbf16>, vector<8x512xf32> -> vector<8x512xf32>
    %c0_21 = arith.constant 0 : index
    %c0_22 = arith.constant 0 : index
    %42 = vector.load %arg7[%c0_21, %c0_22] : memref<1x512xf32, #tpu.memory_space<vmem>>, vector<1x512xf32>
    %43 = vector.broadcast %42 : vector<1x512xf32> to vector<8x512xf32>
    %44 = arith.addf %41, %43 : vector<8x512xf32>
    %cst_23 = arith.constant 5.000000e-01 : f32
    %45 = vector.broadcast %cst_23 : f32 to vector<8x512xf32>
    %46 = arith.mulf %45, %44 : vector<8x512xf32>
    %47 = arith.mulf %44, %44 : vector<8x512xf32>
    %48 = arith.mulf %47, %44 : vector<8x512xf32>
    %cst_24 = arith.constant 4.471500e-02 : f32
    %49 = vector.broadcast %cst_24 : f32 to vector<8x512xf32>
    %50 = arith.mulf %49, %48 : vector<8x512xf32>
    %51 = arith.addf %44, %50 : vector<8x512xf32>
    %cst_25 = arith.constant 0.797884583 : f32
    %52 = vector.broadcast %cst_25 : f32 to vector<8x512xf32>
    %53 = arith.mulf %52, %51 : vector<8x512xf32>
    %54 = math.tanh %53 : vector<8x512xf32>
    %cst_26 = arith.constant 1.000000e+00 : f32
    %55 = vector.broadcast %cst_26 : f32 to vector<8x512xf32>
    %56 = arith.addf %55, %54 : vector<8x512xf32>
    %57 = arith.mulf %46, %56 : vector<8x512xf32>
    %58 = arith.truncf %57 : vector<8x512xf32> to vector<8x512xbf16>
    %c0_27 = arith.constant 0 : index
    %c0_28 = arith.constant 0 : index
    %59 = vector.load %arg8[%c0_27, %c0_28] : memref<512x128xbf16, #tpu.memory_space<vmem>>, vector<512x128xbf16>
    %cst_29 = arith.constant dense<0.000000e+00> : vector<8x128xf32>
    %60 = tpu.matmul %58, %59, %cst_29 {dimension_numbers = #tpu.dot_dimension_numbers<[1], [0], [0], [1], [0, 0, 1, 1], [], []>} : vector<8x512xbf16>, vector<512x128xbf16>, vector<8x128xf32> -> vector<8x128xf32>
    %c0_30 = arith.constant 0 : index
    %c0_31 = arith.constant 0 : index
    %61 = vector.load %arg9[%c0_30, %c0_31] : memref<1x128xf32, #tpu.memory_space<vmem>>, vector<1x128xf32>
    %62 = vector.broadcast %61 : vector<1x128xf32> to vector<8x128xf32>
    %63 = arith.addf %60, %62 : vector<8x128xf32>
    %cst_32 = arith.constant 0.000000e+00 : f32
    %64 = vector.broadcast %cst_32 : f32 to vector<8x128xf32>
    %65 = arith.maximumf %63, %64 : vector<8x128xf32>
    %c0_33 = arith.constant 0 : index
    %c0_34 = arith.constant 0 : index
    %66 = vector.load %arg10[%c0_33, %c0_34] : memref<8x128xf32, #tpu.memory_space<vmem>>, vector<8x128xf32>
    tpu.vector_store %arg10[%c0_33, %c0_34], %65 {strides = array<i32>} : memref<8x128xf32, #tpu.memory_space<vmem>>, vector<8x128xf32>,
    return
  }
  func.func @transform_0(%arg0: i32) -> (i32, i32) {
    %c0_i32 = arith.constant 0 : i32
    %c0_i32_0 = arith.constant 0 : i32
    return %arg0, %c0_i32 : i32, i32
  }
  func.func @transform_1(%arg0: i32) -> (i32, i32) {
    %c0_i32 = arith.constant 0 : i32
    %c0_i32_0 = arith.constant 0 : i32
    %c0_i32_1 = arith.constant 0 : i32
    return %c0_i32, %c0_i32_0 : i32, i32
  }
  func.func @transform_2(%arg0: i32) -> (i32, i32) {
    %c0_i32 = arith.constant 0 : i32
    %c0_i32_0 = arith.constant 0 : i32
    %c0_i32_1 = arith.constant 0 : i32
    return %c0_i32, %c0_i32_0 : i32, i32
  }
  func.func @transform_3(%arg0: i32) -> (i32, i32) {
    %c0_i32 = arith.constant 0 : i32
    %c0_i32_0 = arith.constant 0 : i32
    %c0_i32_1 = arith.constant 0 : i32
    return %c0_i32, %c0_i32_0 : i32, i32
  }
  func.func @transform_4(%arg0: i32) -> (i32, i32) {
    %c0_i32 = arith.constant 0 : i32
    %c0_i32_0 = arith.constant 0 : i32
    %c0_i32_1 = arith.constant 0 : i32
    return %c0_i32, %c0_i32_0 : i32, i32
  }
  func.func @transform_5(%arg0: i32) -> (i32, i32) {
    %c0_i32 = arith.constant 0 : i32
    %c0_i32_0 = arith.constant 0 : i32
    %c0_i32_1 = arith.constant 0 : i32
    return %c0_i32, %c0_i32_0 : i32, i32
  }
  func.func @transform_6(%arg0: i32) -> (i32, i32) {
    %c0_i32 = arith.constant 0 : i32
    %c0_i32_0 = arith.constant 0 : i32
    %c0_i32_1 = arith.constant 0 : i32
    return %c0_i32, %c0_i32_0 : i32, i32
  }
  func.func @transform_7(%arg0: i32) -> (i32, i32) {
    %c0_i32 = arith.constant 0 : i32
    %c0_i32_0 = arith.constant 0 : i32
    %c0_i32_1 = arith.constant 0 : i32
    return %c0_i32, %c0_i32_0 : i32, i32
  }
  func.func @transform_8(%arg0: i32) -> (i32, i32) {
    %c0_i32 = arith.constant 0 : i32
    %c0_i32_0 = arith.constant 0 : i32
    %c0_i32_1 = arith.constant 0 : i32
    return %c0_i32, %c0_i32_0 : i32, i32
  }
  func.func @transform_9(%arg0: i32) -> (i32, i32) {
    %c0_i32 = arith.constant 0 : i32
    %c0_i32_0 = arith.constant 0 : i32
    return %arg0, %c0_i32 : i32, i32
  }
}

</mosaic_0001>

<llo_original>
// kernel: mappingt_forward.1
$region0: #{mappingt_forward.1}
  #allocation0 [shape = 'u32[]', space=smem, size = 0x4, offset = 0x4, fixed_abs, tag = 'smem constant byte address 0x4 - core index']
  #allocation1 [shape = 'u32[72,128]{1,0:T(1,128)}', space=vmem, size = 0x9000, scoped, tag = 'internal scratch']
  %s0 = inlined_call_operand.hbm [shape: f32[8,256], index: 0, kind: input, shape index: {}]
  %s1 = inlined_call_operand.hbm [shape: bf16[256,512], index: 1, kind: input, shape index: {}]
  %s2 = inlined_call_operand.hbm [shape: f32[1,512], index: 2, kind: input, shape index: {}]
  %s3 = inlined_call_operand.hbm [shape: bf16[512,1024], index: 3, kind: input, shape index: {}]
  %s4 = inlined_call_operand.hbm [shape: f32[1,1024], index: 4, kind: input, shape index: {}]
  %s5 = inlined_call_operand.hbm [shape: bf16[1024,512], index: 5, kind: input, shape index: {}]
  %s6 = inlined_call_operand.vmem [shape: f32[1,512], index: 6, kind: input, shape index: {}]
  %s7 = inlined_call_operand.hbm [shape: bf16[512,128], index: 7, kind: input, shape index: {}]
  %s8 = inlined_call_operand.vmem [shape: f32[1,128], index: 8, kind: input, shape index: {}]
  %s9 = inlined_call_operand.vmem [shape: f32[8,128], index: 9, kind: output, shape index: {}]
  %s10 = sld [smem:[#allocation0]]
  $region74: #{mappingt_forward.1} parent=0
    _
  %s12 = ssub.s32 1, %s10
  %s13 = scalar_select 0, %s12, %s10
  $region1: #{mappingt_forward.1} parent=0
    #allocation2 [shape = 'u8[8192]{0}', space=vmem, size = 0x2000, scoped, tag = 'input window, operand 0, single buffered']
    #allocation3 [shape = 's32[1]{0}', space=sflag, size = 0x4, scoped, tag = 'scoped memory for mappingt_forward.1']
    #allocation4 [shape = 'u8[262144]{0}', space=vmem, size = 0x40000, scoped, tag = 'input window, operand 1, single buffered']
    #allocation5 [shape = 's32[1]{0}', space=sflag, size = 0x4, scoped, tag = 'scoped memory for mappingt_forward.1']
    #allocation6 [shape = 'u8[2048]{0}', space=vmem, size = 0x800, scoped, tag = 'input window, operand 2, single buffered']
    #allocation7 [shape = 'u8[1048576]{0}', space=vmem, size = 0x100000, scoped, tag = 'input window, operand 3, single buffered']
    #allocation8 [shape = 's32[1]{0}', space=sflag, size = 0x4, scoped, tag = 'scoped memory for mappingt_forward.1']
    #allocation9 [shape = 'u8[4096]{0}', space=vmem, size = 0x1000, scoped, tag = 'input window, operand 4, single buffered']
    #allocation10 [shape = 'u8[1048576]{0}', space=vmem, size = 0x100000, scoped, tag = 'input window, operand 5, single buffered']
    #allocation11 [shape = 's32[1]{0}', space=sflag, size = 0x4, scoped, tag = 'scoped memory for mappingt_forward.1']
    #allocation12 [shape = 'u8[131072]{0}', space=vmem, size = 0x20000, scoped, tag = 'input window, operand 7, single buffered']
    %14 = vsyncpa [#allocation3], 0
    %15 = vsyncpa [#allocation5], 0
    %16 = vsyncpa [#allocation8], 0
    %17 = vsyncpa [#allocation11], 0
    // Predicated region
    $region2: #{mappingt_forward.1} parent=1 // pred_check
      _
    $region3: #{mappingt_forward.1} parent=1 // pred_check_branch
      %19 = sbr.rel (0) target = $region5
    $region4: #{mappingt_forward.1} parent=1 // pred_region
      %21 = vsyncadd [#allocation3], 0
      %s23 = sshll.u32 %s0, 4
      %s24 = int_to_ptr.hbm [resolvable:$true] %s23
      %s25 = sshll.u32 [#allocation2], 4
      %s26 = int_to_ptr.vmem [resolvable:$true] %s25
      %28 = dma.hbm_to_vmem [thread:$0]  %s24, 256, %s26, [#allocation3]
    $region5: #{mappingt_forward.1} parent=1 // pred_fallthru
      _
    // Predicated region
    $region6: #{mappingt_forward.1} parent=1 // pred_check
      _
    $region7: #{mappingt_forward.1} parent=1 // pred_check_branch
      %30 = sbr.rel (0) target = $region9
    $region8: #{mappingt_forward.1} parent=1 // pred_region
      %32 = vsyncadd [#allocation5], 0
      %s33 = sshll.u32 %s1, 4
      %s34 = int_to_ptr.hbm [resolvable:$true] %s33
      %s35 = sshll.u32 [#allocation4], 4
      %s36 = int_to_ptr.vmem [resolvable:$true] %s35
      %41 = dma.hbm_to_vmem [thread:$0]  %s34, 8192, %s36, [#allocation5], 256, 256, 16
    $region9: #{mappingt_forward.1} parent=1 // pred_fallthru
      _
    // Predicated region
    $region10: #{mappingt_forward.1} parent=1 // pred_check
      _
    $region11: #{mappingt_forward.1} parent=1 // pred_check_branch
      %43 = sbr.rel (0) target = $region13
    $region12: #{mappingt_forward.1} parent=1 // pred_region
      %45 = vsyncadd [#allocation5], 0
      %s47 = sshll.u32 %s2, 4
      %s48 = int_to_ptr.hbm [resolvable:$true] %s47
      %s49 = sshll.u32 [#allocation6], 4
      %s50 = int_to_ptr.vmem [resolvable:$true] %s49
      %52 = dma.hbm_to_vmem [thread:$0]  %s48, 64, %s50, [#allocation5]
    $region13: #{mappingt_forward.1} parent=1 // pred_fallthru
      _
    // Predicated region
    $region14: #{mappingt_forward.1} parent=1 // pred_check
      _
    $region15: #{mappingt_forward.1} parent=1 // pred_check_branch
      %54 = sbr.rel (0) target = $region17
    $region16: #{mappingt_forward.1} parent=1 // pred_region
      %56 = vsyncadd [#allocation8], 0
      %s57 = sshll.u32 %s3, 4
      %s58 = int_to_ptr.hbm [resolvable:$true] %s57
      %s59 = sshll.u32 [#allocation7], 4
      %s60 = int_to_ptr.vmem [resolvable:$true] %s59
      %65 = dma.hbm_to_vmem [thread:$0]  %s58, 32768, %s60, [#allocation8], 512, 512, 32
    $region17: #{mappingt_forward.1} parent=1 // pred_fallthru
      _
    // Predicated region
    $region18: #{mappingt_forward.1} parent=1 // pred_check
      _
    $region19: #{mappingt_forward.1} parent=1 // pred_check_branch
      %67 = sbr.rel (0) target = $region21
    $region20: #{mappingt_forward.1} parent=1 // pred_region
      %69 = vsyncadd [#allocation8], 0
      %s71 = sshll.u32 %s4, 4
      %s72 = int_to_ptr.hbm [resolvable:$true] %s71
      %s73 = sshll.u32 [#allocation9], 4
      %s74 = int_to_ptr.vmem [resolvable:$true] %s73
      %76 = dma.hbm_to_vmem [thread:$0]  %s72, 128, %s74, [#allocation8]
    $region21: #{mappingt_forward.1} parent=1 // pred_fallthru
      _
    // Predicated region
    $region22: #{mappingt_forward.1} parent=1 // pred_check
      _
    $region23: #{mappingt_forward.1} parent=1 // pred_check_branch
      %78 = sbr.rel (0) target = $region25
    $region24: #{mappingt_forward.1} parent=1 // pred_region
      %80 = vsyncadd [#allocation11], 0
      %s81 = sshll.u32 %s5, 4
      %s82 = int_to_ptr.hbm [resolvable:$true] %s81
      %s83 = sshll.u32 [#allocation10], 4
      %s84 = int_to_ptr.vmem [resolvable:$true] %s83
      %89 = dma.hbm_to_vmem [thread:$0]  %s82, 32768, %s84, [#allocation11], 256, 256, 16
    $region25: #{mappingt_forward.1} parent=1 // pred_fallthru
      _
    // Predicated region
    $region26: #{mappingt_forward.1} parent=1 // pred_check
      _
    $region27: #{mappingt_forward.1} parent=1 // pred_check_branch
      %91 = sbr.rel (0) target = $region29
    $region28: #{mappingt_forward.1} parent=1 // pred_region
      _
    $region29: #{mappingt_forward.1} parent=1 // pred_fallthru
      _
    // Predicated region
    $region30: #{mappingt_forward.1} parent=1 // pred_check
      _
    $region31: #{mappingt_forward.1} parent=1 // pred_check_branch
      %93 = sbr.rel (0) target = $region33
    $region32: #{mappingt_forward.1} parent=1 // pred_region
      %95 = vsyncadd [#allocation11], 0
      %s96 = sshll.u32 %s7, 4
      %s97 = int_to_ptr.hbm [resolvable:$true] %s96
      %s98 = sshll.u32 [#allocation12], 4
      %s99 = int_to_ptr.vmem [resolvable:$true] %s98
      %104 = dma.hbm_to_vmem [thread:$0]  %s97, 4096, %s99, [#allocation11], 64, 64, 4
    $region33: #{mappingt_forward.1} parent=1 // pred_fallthru
      _
    // Predicated region
    $region34: #{mappingt_forward.1} parent=1 // pred_check
      _
    $region35: #{mappingt_forward.1} parent=1 // pred_check_branch
      %106 = sbr.rel (0) target = $region37
    $region36: #{mappingt_forward.1} parent=1 // pred_region
      _
    $region37: #{mappingt_forward.1} parent=1 // pred_fallthru
      _
    // Predicated region
    $region38: #{mappingt_forward.1} parent=1 // pred_check
      _
    $region39: #{mappingt_forward.1} parent=1 // pred_check_branch
      %108 = sbr.rel (0) target = $region41
    $region40: #{mappingt_forward.1} parent=1 // pred_region
      %110 = dma.done [#allocation3], 256
    $region41: #{mappingt_forward.1} parent=1 // pred_fallthru
      _
    // Predicated region
    $region42: #{mappingt_forward.1} parent=1 // pred_check
      _
    $region43: #{mappingt_forward.1} parent=1 // pred_check_branch
      %112 = sbr.rel (0) target = $region45
    $region44: #{mappingt_forward.1} parent=1 // pred_region
      %114 = dma.done [#allocation5], 8192
    $region45: #{mappingt_forward.1} parent=1 // pred_fallthru
      _
    // Predicated region
    $region46: #{mappingt_forward.1} parent=1 // pred_check
      _
    $region47: #{mappingt_forward.1} parent=1 // pred_check_branch
      %116 = sbr.rel (0) target = $region49
    $region48: #{mappingt_forward.1} parent=1 // pred_region
      %118 = dma.done [#allocation5], 64
    $region49: #{mappingt_forward.1} parent=1 // pred_fallthru
      _
    // Predicated region
    $region50: #{mappingt_forward.1} parent=1 // pred_check
      _
    $region51: #{mappingt_forward.1} parent=1 // pred_check_branch
      %120 = sbr.rel (0) target = $region53
    $region52: #{mappingt_forward.1} parent=1 // pred_region
      %122 = dma.done [#allocation8], 32768
    $region53: #{mappingt_forward.1} parent=1 // pred_fallthru
      _
    // Predicated region
    $region54: #{mappingt_forward.1} parent=1 // pred_check
      _
    $region55: #{mappingt_forward.1} parent=1 // pred_check_branch
      %124 = sbr.rel (0) target = $region57
    $region56: #{mappingt_forward.1} parent=1 // pred_region
      %126 = dma.done [#allocation8], 128
    $region57: #{mappingt_forward.1} parent=1 // pred_fallthru
      _
    // Predicated region
    $region58: #{mappingt_forward.1} parent=1 // pred_check
      _
    $region59: #{mappingt_forward.1} parent=1 // pred_check_branch
      %128 = sbr.rel (0) target = $region61
    $region60: #{mappingt_forward.1} parent=1 // pred_region
      %130 = dma.done [#allocation11], 32768
    $region61: #{mappingt_forward.1} parent=1 // pred_fallthru
      _
    // Predicated region
    $region62: #{mappingt_forward.1} parent=1 // pred_check
      _
    $region63: #{mappingt_forward.1} parent=1 // pred_check_branch
      %132 = sbr.rel (0) target = $region65
    $region64: #{mappingt_forward.1} parent=1 // pred_region
      %134 = dma.done [#allocation11], 4096
    $region65: #{mappingt_forward.1} parent=1 // pred_fallthru
      _
    %v135 = vld [vmem:[#allocation2] sm:$0xff]
    %v136 = vld [vmem:[#allocation2 + $0x8] sm:$0xff]
    %v137 = vpack.c.bf16 %v135, %v135
    %v138 = vpack.c.bf16 %v136, %v136
    %v139 = vld [vmem:[#allocation4] sm:$0xff]
    %v140 = vld [vmem:[#allocation4 + $0x8] sm:$0xff]
    %v141 = vld [vmem:[#allocation4 + $0x10] sm:$0xff]
    %v142 = vld [vmem:[#allocation4 + $0x18] sm:$0xff]
    %v143 = vld [vmem:[#allocation4 + $0x20] sm:$0xff]
    %v144 = vld [vmem:[#allocation4 + $0x28] sm:$0xff]
    %v145 = vld [vmem:[#allocation4 + $0x30] sm:$0xff]
    %v146 = vld [vmem:[#allocation4 + $0x38] sm:$0xff]
    %v147 = vld [vmem:[#allocation4 + $0x40] sm:$0xff]
    %v148 = vld [vmem:[#allocation4 + $0x48] sm:$0xff]
    %v149 = vld [vmem:[#allocation4 + $0x50] sm:$0xff]
    %v150 = vld [vmem:[#allocation4 + $0x58] sm:$0xff]
    %v151 = vld [vmem:[#allocation4 + $0x60] sm:$0xff]
    %v152 = vld [vmem:[#allocation4 + $0x68] sm:$0xff]
    %v153 = vld [vmem:[#allocation4 + $0x70] sm:$0xff]
    %v154 = vld [vmem:[#allocation4 + $0x78] sm:$0xff]
    %v155 = vld [vmem:[#allocation4 + $0x80] sm:$0xff]
    %v156 = vld [vmem:[#allocation4 + $0x88] sm:$0xff]
    %v157 = vld [vmem:[#allocation4 + $0x90] sm:$0xff]
    %v158 = vld [vmem:[#allocation4 + $0x98] sm:$0xff]
    %v159 = vld [vmem:[#allocation4 + $0xa0] sm:$0xff]
    %v160 = vld [vmem:[#allocation4 + $0xa8] sm:$0xff]
    %v161 = vld [vmem:[#allocation4 + $0xb0] sm:$0xff]
    %v162 = vld [vmem:[#allocation4 + $0xb8] sm:$0xff]
    %v163 = vld [vmem:[#allocation4 + $0xc0] sm:$0xff]
    %v164 = vld [vmem:[#allocation4 + $0xc8] sm:$0xff]
    %v165 = vld [vmem:[#allocation4 + $0xd0] sm:$0xff]
    %v166 = vld [vmem:[#allocation4 + $0xd8] sm:$0xff]
    %v167 = vld [vmem:[#allocation4 + $0xe0] sm:$0xff]
    %v168 = vld [vmem:[#allocation4 + $0xe8] sm:$0xff]
    %v169 = vld [vmem:[#allocation4 + $0xf0] sm:$0xff]
    %v170 = vld [vmem:[#allocation4 + $0xf8] sm:$0xff]
    %v171 = vld [vmem:[#allocation4 + $0x100] sm:$0xff]
    %v172 = vld [vmem:[#allocation4 + $0x108] sm:$0xff]
    %v173 = vld [vmem:[#allocation4 + $0x110] sm:$0xff]
    %v174 = vld [vmem:[#allocation4 + $0x118] sm:$0xff]
    %v175 = vld [vmem:[#allocation4 + $0x120] sm:$0xff]
    %v176 = vld [vmem:[#allocation4 + $0x128] sm:$0xff]
    %v177 = vld [vmem:[#allocation4 + $0x130] sm:$0xff]
    %v178 = vld [vmem:[#allocation4 + $0x138] sm:$0xff]
    %v179 = vld [vmem:[#allocation4 + $0x140] sm:$0xff]
    %v180 = vld [vmem:[#allocation4 + $0x148] sm:$0xff]
    %v181 = vld [vmem:[#allocation4 + $0x150] sm:$0xff]
    %v182 = vld [vmem:[#allocation4 + $0x158] sm:$0xff]
    %v183 = vld [vmem:[#allocation4 + $0x160] sm:$0xff]
    %v184 = vld [vmem:[#allocation4 + $0x168] sm:$0xff]
    %v185 = vld [vmem:[#allocation4 + $0x170] sm:$0xff]
    %v186 = vld [vmem:[#allocation4 + $0x178] sm:$0xff]
    %v187 = vld [vmem:[#allocation4 + $0x180] sm:$0xff]
    %v188 = vld [vmem:[#allocation4 + $0x188] sm:$0xff]
    %v189 = vld [vmem:[#allocation4 + $0x190] sm:$0xff]
    %v190 = vld [vmem:[#allocation4 + $0x198] sm:$0xff]
    %v191 = vld [vmem:[#allocation4 + $0x1a0] sm:$0xff]
    %v192 = vld [vmem:[#allocation4 + $0x1a8] sm:$0xff]
    %v193 = vld [vmem:[#allocation4 + $0x1b0] sm:$0xff]
    %v194 = vld [vmem:[#allocation4 + $0x1b8] sm:$0xff]
    %v195 = vld [vmem:[#allocation4 + $0x1c0] sm:$0xff]
    %v196 = vld [vmem:[#allocation4 + $0x1c8] sm:$0xff]
    %v197 = vld [vmem:[#allocation4 + $0x1d0] sm:$0xff]
    %v198 = vld [vmem:[#allocation4 + $0x1d8] sm:$0xff]
    %v199 = vld [vmem:[#allocation4 + $0x1e0] sm:$0xff]
    %v200 = vld [vmem:[#allocation4 + $0x1e8] sm:$0xff]
    %v201 = vld [vmem:[#allocation4 + $0x1f0] sm:$0xff]
    %v202 = vld [vmem:[#allocation4 + $0x1f8] sm:$0xff]
    %v203 = vld [vmem:[#allocation6] sm:$0xf]
    %v205 = vperm.slane %v203, 0
    %v206 = vperm.slane %v203, 1
    %v207 = vperm.slane %v203, 2
    %v208 = vperm.slane %v203, 3
    %v277 = vunpack.c.l.b16 %v139
    %v278 = vunpack.c.h.b16 %v139
    %v279 = vunpack.c.l.b16 %v140
    %v280 = vunpack.c.h.b16 %v140
    %v281 = vunpack.c.l.b16 %v141
    %v282 = vunpack.c.h.b16 %v141
    %v283 = vunpack.c.l.b16 %v142
    %v284 = vunpack.c.h.b16 %v142
    %v285 = vunpack.c.l.b16 %v143
    %v286 = vunpack.c.h.b16 %v143
    %v287 = vunpack.c.l.b16 %v144
    %v288 = vunpack.c.h.b16 %v144
    %v289 = vunpack.c.l.b16 %v145
    %v290 = vunpack.c.h.b16 %v145
    %v291 = vunpack.c.l.b16 %v146
    %v292 = vunpack.c.h.b16 %v146
    %v293 = vunpack.c.l.b16 %v147
    %v294 = vunpack.c.h.b16 %v147
    %v295 = vunpack.c.l.b16 %v148
    %v296 = vunpack.c.h.b16 %v148
    %v297 = vunpack.c.l.b16 %v149
    %v298 = vunpack.c.h.b16 %v149
    %v299 = vunpack.c.l.b16 %v150
    %v300 = vunpack.c.h.b16 %v150
    %v301 = vunpack.c.l.b16 %v151
    %v302 = vunpack.c.h.b16 %v151
    %v303 = vunpack.c.l.b16 %v152
    %v304 = vunpack.c.h.b16 %v152
    %v305 = vunpack.c.l.b16 %v153
    %v306 = vunpack.c.h.b16 %v153
    %v307 = vunpack.c.l.b16 %v154
    %v308 = vunpack.c.h.b16 %v154
    %v309 = vunpack.c.l.b16 %v155
    %v310 = vunpack.c.h.b16 %v155
    %v311 = vunpack.c.l.b16 %v156
    %v312 = vunpack.c.h.b16 %v156
    %v313 = vunpack.c.l.b16 %v157
    %v314 = vunpack.c.h.b16 %v157
    %v315 = vunpack.c.l.b16 %v158
    %v316 = vunpack.c.h.b16 %v158
    %v317 = vunpack.c.l.b16 %v159
    %v318 = vunpack.c.h.b16 %v159
    %v319 = vunpack.c.l.b16 %v160
    %v320 = vunpack.c.h.b16 %v160
    %v321 = vunpack.c.l.b16 %v161
    %v322 = vunpack.c.h.b16 %v161
    %v323 = vunpack.c.l.b16 %v162
    %v324 = vunpack.c.h.b16 %v162
    %v325 = vunpack.c.l.b16 %v163
    %v326 = vunpack.c.h.b16 %v163
    %v327 = vunpack.c.l.b16 %v164
    %v328 = vunpack.c.h.b16 %v164
    %v329 = vunpack.c.l.b16 %v165
    %v330 = vunpack.c.h.b16 %v165
    %v331 = vunpack.c.l.b16 %v166
    %v332 = vunpack.c.h.b16 %v166
    %v333 = vunpack.c.l.b16 %v167
    %v334 = vunpack.c.h.b16 %v167
    %v335 = vunpack.c.l.b16 %v168
    %v336 = vunpack.c.h.b16 %v168
    %v337 = vunpack.c.l.b16 %v169
    %v338 = vunpack.c.h.b16 %v169
    %v339 = vunpack.c.l.b16 %v170
    %v340 = vunpack.c.h.b16 %v170
    %v341 = vunpack.c.l.b16 %v171
    %v342 = vunpack.c.h.b16 %v171
    %v343 = vunpack.c.l.b16 %v172
    %v344 = vunpack.c.h.b16 %v172
    %v345 = vunpack.c.l.b16 %v173
    %v346 = vunpack.c.h.b16 %v173
    %v347 = vunpack.c.l.b16 %v174
    %v348 = vunpack.c.h.b16 %v174
    %v349 = vunpack.c.l.b16 %v175
    %v350 = vunpack.c.h.b16 %v175
    %v351 = vunpack.c.l.b16 %v176
    %v352 = vunpack.c.h.b16 %v176
    %v353 = vunpack.c.l.b16 %v177
    %v354 = vunpack.c.h.b16 %v177
    %v355 = vunpack.c.l.b16 %v178
    %v356 = vunpack.c.h.b16 %v178
    %v357 = vunpack.c.l.b16 %v179
    %v358 = vunpack.c.h.b16 %v179
    %v359 = vunpack.c.l.b16 %v180
    %v360 = vunpack.c.h.b16 %v180
    %v361 = vunpack.c.l.b16 %v181
    %v362 = vunpack.c.h.b16 %v181
    %v363 = vunpack.c.l.b16 %v182
    %v364 = vunpack.c.h.b16 %v182
    %v365 = vunpack.c.l.b16 %v183
    %v366 = vunpack.c.h.b16 %v183
    %v367 = vunpack.c.l.b16 %v184
    %v368 = vunpack.c.h.b16 %v184
    %v369 = vunpack.c.l.b16 %v185
    %v370 = vunpack.c.h.b16 %v185
    %v371 = vunpack.c.l.b16 %v186
    %v372 = vunpack.c.h.b16 %v186
    %v373 = vunpack.c.l.b16 %v187
    %v374 = vunpack.c.h.b16 %v187
    %v375 = vunpack.c.l.b16 %v188
    %v376 = vunpack.c.h.b16 %v188
    %v377 = vunpack.c.l.b16 %v189
    %v378 = vunpack.c.h.b16 %v189
    %v379 = vunpack.c.l.b16 %v190
    %v380 = vunpack.c.h.b16 %v190
    %v381 = vunpack.c.l.b16 %v191
    %v382 = vunpack.c.h.b16 %v191
    %v383 = vunpack.c.l.b16 %v192
    %v384 = vunpack.c.h.b16 %v192
    %v385 = vunpack.c.l.b16 %v193
    %v386 = vunpack.c.h.b16 %v193
    %v387 = vunpack.c.l.b16 %v194
    %v388 = vunpack.c.h.b16 %v194
    %v389 = vunpack.c.l.b16 %v195
    %v390 = vunpack.c.h.b16 %v195
    %v391 = vunpack.c.l.b16 %v196
    %v392 = vunpack.c.h.b16 %v196
    %v393 = vunpack.c.l.b16 %v197
    %v394 = vunpack.c.h.b16 %v197
    %v395 = vunpack.c.l.b16 %v198
    %v396 = vunpack.c.h.b16 %v198
    %v397 = vunpack.c.l.b16 %v199
    %v398 = vunpack.c.h.b16 %v199
    %v399 = vunpack.c.l.b16 %v200
    %v400 = vunpack.c.h.b16 %v200
    %v401 = vunpack.c.l.b16 %v201
    %v402 = vunpack.c.h.b16 %v201
    %v403 = vunpack.c.l.b16 %v202
    %v404 = vunpack.c.h.b16 %v202
    %v405 = vpack.c.b16 %v281, %v277
    %v406 = vpack.c.b16 %v282, %v278
    %v407 = vpack.c.b16 %v283, %v279
    %v408 = vpack.c.b16 %v284, %v280
    %v409 = vpack.c.b16 %v289, %v285
    %v410 = vpack.c.b16 %v290, %v286
    %v411 = vpack.c.b16 %v291, %v287
    %v412 = vpack.c.b16 %v292, %v288
    %v413 = vpack.c.b16 %v297, %v293
    %v414 = vpack.c.b16 %v298, %v294
    %v415 = vpack.c.b16 %v299, %v295
    %v416 = vpack.c.b16 %v300, %v296
    %v417 = vpack.c.b16 %v305, %v301
    %v418 = vpack.c.b16 %v306, %v302
    %v419 = vpack.c.b16 %v307, %v303
    %v420 = vpack.c.b16 %v308, %v304
    %v421 = vpack.c.b16 %v313, %v309
    %v422 = vpack.c.b16 %v314, %v310
    %v423 = vpack.c.b16 %v315, %v311
    %v424 = vpack.c.b16 %v316, %v312
    %v425 = vpack.c.b16 %v321, %v317
    %v426 = vpack.c.b16 %v322, %v318
    %v427 = vpack.c.b16 %v323, %v319
    %v428 = vpack.c.b16 %v324, %v320
    %v429 = vpack.c.b16 %v329, %v325
    %v430 = vpack.c.b16 %v330, %v326
    %v431 = vpack.c.b16 %v331, %v327
    %v432 = vpack.c.b16 %v332, %v328
    %v433 = vpack.c.b16 %v337, %v333
    %v434 = vpack.c.b16 %v338, %v334
    %v435 = vpack.c.b16 %v339, %v335
    %v436 = vpack.c.b16 %v340, %v336
    %v437 = vpack.c.b16 %v345, %v341
    %v438 = vpack.c.b16 %v346, %v342
    %v439 = vpack.c.b16 %v347, %v343
    %v440 = vpack.c.b16 %v348, %v344
    %v441 = vpack.c.b16 %v353, %v349
    %v442 = vpack.c.b16 %v354, %v350
    %v443 = vpack.c.b16 %v355, %v351
    %v444 = vpack.c.b16 %v356, %v352
    %v445 = vpack.c.b16 %v361, %v357
    %v446 = vpack.c.b16 %v362, %v358
    %v447 = vpack.c.b16 %v363, %v359
    %v448 = vpack.c.b16 %v364, %v360
    %v449 = vpack.c.b16 %v369, %v365
    %v450 = vpack.c.b16 %v370, %v366
    %v451 = vpack.c.b16 %v371, %v367
    %v452 = vpack.c.b16 %v372, %v368
    %v453 = vpack.c.b16 %v377, %v373
    %v454 = vpack.c.b16 %v378, %v374
    %v455 = vpack.c.b16 %v379, %v375
    %v456 = vpack.c.b16 %v380, %v376
    %v457 = vpack.c.b16 %v385, %v381
    %v458 = vpack.c.b16 %v386, %v382
    %v459 = vpack.c.b16 %v387, %v383
    %v460 = vpack.c.b16 %v388, %v384
    %v461 = vpack.c.b16 %v393, %v389
    %v462 = vpack.c.b16 %v394, %v390
    %v463 = vpack.c.b16 %v395, %v391
    %v464 = vpack.c.b16 %v396, %v392
    %v465 = vpack.c.b16 %v401, %v397
    %v466 = vpack.c.b16 %v402, %v398
    %v467 = vpack.c.b16 %v403, %v399
    %v468 = vpack.c.b16 %v404, %v400
    %533 = vmatpush.bf16.msra.mxu0 %v433
    %534 = vmatpush.bf16.msra.mxu0 %v429
    %535 = vmatpush.bf16.msra.mxu0 %v425
    %536 = vmatpush.bf16.msra.mxu0 %v421
    %537 = vmatpush.bf16.msra.mxu0 %v417
    %538 = vmatpush.bf16.msra.mxu0 %v413
    %539 = vmatpush.bf16.msra.mxu0 %v409
    %540 = vmatpush.bf16.msra.mxu0 %v405
    %541 = vmatmul.bf16.gmra.mxu0 %v137
    %v542 = vpop.f32.mrf.mxu0
    %v543 = vadd.f32 %v205, %v542
    %v544 = vpop.f32.mrf.mxu0
    %545 = vdwg.mxu0
    %546 = vmatpush.bf16.msra.mxu0 %v465
    %547 = vmatpush.bf16.msra.mxu0 %v461
    %548 = vmatpush.bf16.msra.mxu0 %v457
    %549 = vmatpush.bf16.msra.mxu0 %v453
    %550 = vmatpush.bf16.msra.mxu0 %v449
    %551 = vmatpush.bf16.msra.mxu0 %v445
    %552 = vmatpush.bf16.msra.mxu0 %v441
    %553 = vmatpush.bf16.msra.mxu0 %v437
    %554 = vmatmul.bf16.gmra.mxu0 %v138
    %v555 = vpop.f32.mrf.mxu0
    %v556 = vadd.f32 %v543, %v555
    %v557 = vpop.f32.mrf.mxu0
    %558 = vdwg.mxu0
    %559 = vmatpush.bf16.msra.mxu0 %v434
    %560 = vmatpush.bf16.msra.mxu0 %v430
    %561 = vmatpush.bf16.msra.mxu0 %v426
    %562 = vmatpush.bf16.msra.mxu0 %v422
    %563 = vmatpush.bf16.msra.mxu0 %v418
    %564 = vmatpush.bf16.msra.mxu0 %v414
    %565 = vmatpush.bf16.msra.mxu0 %v410
    %566 = vmatpush.bf16.msra.mxu0 %v406
    %567 = vmatmul.bf16.gmra.mxu0 %v137
    %v568 = vpop.f32.mrf.mxu0
    %v569 = vadd.f32 %v206, %v568
    %v570 = vpop.f32.mrf.mxu0
    %571 = vdwg.mxu0
    %572 = vmatpush.bf16.msra.mxu0 %v466
    %573 = vmatpush.bf16.msra.mxu0 %v462
    %574 = vmatpush.bf16.msra.mxu0 %v458
    %575 = vmatpush.bf16.msra.mxu0 %v454
    %576 = vmatpush.bf16.msra.mxu0 %v450
    %577 = vmatpush.bf16.msra.mxu0 %v446
    %578 = vmatpush.bf16.msra.mxu0 %v442
    %579 = vmatpush.bf16.msra.mxu0 %v438
    %580 = vmatmul.bf16.gmra.mxu0 %v138
    %v581 = vpop.f32.mrf.mxu0
    %v582 = vadd.f32 %v569, %v581
    %v583 = vpop.f32.mrf.mxu0
    %584 = vdwg.mxu0
    %585 = vmatpush.bf16.msra.mxu0 %v435
    %586 = vmatpush.bf16.msra.mxu0 %v431
    %587 = vmatpush.bf16.msra.mxu0 %v427
    %588 = vmatpush.bf16.msra.mxu0 %v423
    %589 = vmatpush.bf16.msra.mxu0 %v419
    %590 = vmatpush.bf16.msra.mxu0 %v415
    %591 = vmatpush.bf16.msra.mxu0 %v411
    %592 = vmatpush.bf16.msra.mxu0 %v407
    %593 = vmatmul.bf16.gmra.mxu0 %v137
    %v594 = vpop.f32.mrf.mxu0
    %v595 = vadd.f32 %v207, %v594
    %v596 = vpop.f32.mrf.mxu0
    %597 = vdwg.mxu0
    %598 = vmatpush.bf16.msra.mxu0 %v467
    %599 = vmatpush.bf16.msra.mxu0 %v463
    %600 = vmatpush.bf16.msra.mxu0 %v459
    %601 = vmatpush.bf16.msra.mxu0 %v455
    %602 = vmatpush.bf16.msra.mxu0 %v451
    %603 = vmatpush.bf16.msra.mxu0 %v447
    %604 = vmatpush.bf16.msra.mxu0 %v443
    %605 = vmatpush.bf16.msra.mxu0 %v439
    %606 = vmatmul.bf16.gmra.mxu0 %v138
    %v607 = vpop.f32.mrf.mxu0
    %v608 = vadd.f32 %v595, %v607
    %v609 = vpop.f32.mrf.mxu0
    %610 = vdwg.mxu0
    %611 = vmatpush.bf16.msra.mxu0 %v436
    %612 = vmatpush.bf16.msra.mxu0 %v432
    %613 = vmatpush.bf16.msra.mxu0 %v428
    %614 = vmatpush.bf16.msra.mxu0 %v424
    %615 = vmatpush.bf16.msra.mxu0 %v420
    %616 = vmatpush.bf16.msra.mxu0 %v416
    %617 = vmatpush.bf16.msra.mxu0 %v412
    %618 = vmatpush.bf16.msra.mxu0 %v408
    %619 = vmatmul.bf16.gmra.mxu0 %v137
    %v620 = vpop.f32.mrf.mxu0
    %v621 = vadd.f32 %v208, %v620
    %v622 = vpop.f32.mrf.mxu0
    %623 = vdwg.mxu0
    %624 = vmatpush.bf16.msra.mxu0 %v468
    %625 = vmatpush.bf16.msra.mxu0 %v464
    %626 = vmatpush.bf16.msra.mxu0 %v460
    %627 = vmatpush.bf16.msra.mxu0 %v456
    %628 = vmatpush.bf16.msra.mxu0 %v452
    %629 = vmatpush.bf16.msra.mxu0 %v448
    %630 = vmatpush.bf16.msra.mxu0 %v444
    %631 = vmatpush.bf16.msra.mxu0 %v440
    %632 = vmatmul.bf16.gmra.mxu0 %v138
    %v633 = vpop.f32.mrf.mxu0
    %v634 = vadd.f32 %v621, %v633
    %v635 = vpop.f32.mrf.mxu0
    %636 = vdwg.mxu0
    %v637 = vmul.f32 %v556, 0.5
    %v638 = vmul.f32 %v582, 0.5
    %v639 = vmul.f32 %v608, 0.5
    %v640 = vmul.f32 %v634, 0.5
    %v641 = vmul.f32 %v556, %v556
    %v642 = vmul.f32 %v582, %v582
    %v643 = vmul.f32 %v608, %v608
    %v644 = vmul.f32 %v634, %v634
    %v645 = vmul.f32 %v641, %v556
    %v646 = vmul.f32 %v642, %v582
    %v647 = vmul.f32 %v643, %v608
    %v648 = vmul.f32 %v644, %v634
    %v649 = vmul.f32 %v645, 0.044715
    %v650 = vmul.f32 %v646, 0.044715
    %v651 = vmul.f32 %v647, 0.044715
    %v652 = vmul.f32 %v648, 0.044715
    %v653 = vadd.f32 %v556, %v649
    %v654 = vadd.f32 %v582, %v650
    %v655 = vadd.f32 %v608, %v651
    %v656 = vadd.f32 %v634, %v652
    %v657 = vmul.f32 %v653, 0.7978846
    %v658 = vmul.f32 %v654, 0.7978846
    %v659 = vmul.f32 %v655, 0.7978846
    %v660 = vmul.f32 %v656, 0.7978846
    %v661 = vtanh.pop %v657
    %v662 = vtanh.pop %v658
    %v663 = vtanh.pop %v659
    %v664 = vtanh.pop %v660
    %v665 = vadd.f32 %v661, 1.0
    %v666 = vadd.f32 %v662, 1.0
    %v667 = vadd.f32 %v663, 1.0
    %v668 = vadd.f32 %v664, 1.0
    %v669 = vmul.f32 %v637, %v665
    %v670 = vmul.f32 %v638, %v666
    %v671 = vmul.f32 %v639, %v667
    %v672 = vmul.f32 %v640, %v668
    %v673 = vpack.c.bf16 %v669, %v669
    %v674 = vpack.c.bf16 %v670, %v670
    %v675 = vpack.c.bf16 %v671, %v671
    %v676 = vpack.c.bf16 %v672, %v672
    %v677 = vld [vmem:[#allocation7] sm:$0xff]
    %v678 = vld [vmem:[#allocation7 + $0x8] sm:$0xff]
    %v679 = vld [vmem:[#allocation7 + $0x10] sm:$0xff]
    %v680 = vld [vmem:[#allocation7 + $0x18] sm:$0xff]
    %v681 = vld [vmem:[#allocation7 + $0x20] sm:$0xff]
    %v682 = vld [vmem:[#allocation7 + $0x28] sm:$0xff]
    %v683 = vld [vmem:[#allocation7 + $0x30] sm:$0xff]
    %v684 = vld [vmem:[#allocation7 + $0x38] sm:$0xff]
    %v685 = vld [vmem:[#allocation7 + $0x40] sm:$0xff]
    %v686 = vld [vmem:[#allocation7 + $0x48] sm:$0xff]
    %v687 = vld [vmem:[#allocation7 + $0x50] sm:$0xff]
    %v688 = vld [vmem:[#allocation7 + $0x58] sm:$0xff]
    %v689 = vld [vmem:[#allocation7 + $0x60] sm:$0xff]
    %v690 = vld [vmem:[#allocation7 + $0x68] sm:$0xff]
    %v691 = vld [vmem:[#allocation7 + $0x70] sm:$0xff]
    %v692 = vld [vmem:[#allocation7 + $0x78] sm:$0xff]
    %v693 = vld [vmem:[#allocation7 + $0x80] sm:$0xff]
    %v694 = vld [vmem:[#allocation7 + $0x88] sm:$0xff]
    %v695 = vld [vmem:[#allocation7 + $0x90] sm:$0xff]
    %v696 = vld [vmem:[#allocation7 + $0x98] sm:$0xff]
    %v697 = vld [vmem:[#allocation7 + $0xa0] sm:$0xff]
    %v698 = vld [vmem:[#allocation7 + $0xa8] sm:$0xff]
    %v699 = vld [vmem:[#allocation7 + $0xb0] sm:$0xff]
    %v700 = vld [vmem:[#allocation7 + $0xb8] sm:$0xff]
    %v701 = vld [vmem:[#allocation7 + $0xc0] sm:$0xff]
    %v702 = vld [vmem:[#allocation7 + $0xc8] sm:$0xff]
    %v703 = vld [vmem:[#allocation7 + $0xd0] sm:$0xff]
    %v704 = vld [vmem:[#allocation7 + $0xd8] sm:$0xff]
    %v705 = vld [vmem:[#allocation7 + $0xe0] sm:$0xff]
    %v706 = vld [vmem:[#allocation7 + $0xe8] sm:$0xff]
    %v707 = vld [vmem:[#allocation7 + $0xf0] sm:$0xff]
    %v708 = vld [vmem:[#allocation7 + $0xf8] sm:$0xff]
    %v709 = vld [vmem:[#allocation7 + $0x100] sm:$0xff]
    %v710 = vld [vmem:[#allocation7 + $0x108] sm:$0xff]
    %v711 = vld [vmem:[#allocation7 + $0x110] sm:$0xff]
    %v712 = vld [vmem:[#allocation7 + $0x118] sm:$0xff]
    %v713 = vld [vmem:[#allocation7 + $0x120] sm:$0xff]
    %v714 = vld [vmem:[#allocation7 + $0x128] sm:$0xff]
    %v715 = vld [vmem:[#allocation7 + $0x130] sm:$0xff]
    %v716 = vld [vmem:[#allocation7 + $0x138] sm:$0xff]
    %v717 = vld [vmem:[#allocation7 + $0x140] sm:$0xff]
    %v718 = vld [vmem:[#allocation7 + $0x148] sm:$0xff]
    %v719 = vld [vmem:[#allocation7 + $0x150] sm:$0xff]
    %v720 = vld [vmem:[#allocation7 + $0x158] sm:$0xff]
    %v721 = vld [vmem:[#allocation7 + $0x160] sm:$0xff]
    %v722 = vld [vmem:[#allocation7 + $0x168] sm:$0xff]
    %v723 = vld [vmem:[#allocation7 + $0x170] sm:$0xff]
    %v724 = vld [vmem:[#allocation7 + $0x178] sm:$0xff]
    %v725 = vld [vmem:[#allocation7 + $0x180] sm:$0xff]
    %v726 = vld [vmem:[#allocation7 + $0x188] sm:$0xff]
    %v727 = vld [vmem:[#allocation7 + $0x190] sm:$0xff]
    %v728 = vld [vmem:[#allocation7 + $0x198] sm:$0xff]
    %v729 = vld [vmem:[#allocation7 + $0x1a0] sm:$0xff]
    %v730 = vld [vmem:[#allocation7 + $0x1a8] sm:$0xff]
    %v731 = vld [vmem:[#allocation7 + $0x1b0] sm:$0xff]
    %v732 = vld [vmem:[#allocation7 + $0x1b8] sm:$0xff]
    %v733 = vld [vmem:[#allocation7 + $0x1c0] sm:$0xff]
    %v734 = vld [vmem:[#allocation7 + $0x1c8] sm:$0xff]
    %v735 = vld [vmem:[#allocation7 + $0x1d0] sm:$0xff]
    %v736 = vld [vmem:[#allocation7 + $0x1d8] sm:$0xff]
    %v737 = vld [vmem:[#allocation7 + $0x1e0] sm:$0xff]
    %v738 = vld [vmem:[#allocation7 + $0x1e8] sm:$0xff]
    %v739 = vld [vmem:[#allocation7 + $0x1f0] sm:$0xff]
    %v740 = vld [vmem:[#allocation7 + $0x1f8] sm:$0xff]
    %v741 = vld [vmem:[#allocation7 + $0x200] sm:$0xff]
    %v742 = vld [vmem:[#allocation7 + $0x208] sm:$0xff]
    %v743 = vld [vmem:[#allocation7 + $0x210] sm:$0xff]
    %v744 = vld [vmem:[#allocation7 + $0x218] sm:$0xff]
    %v745 = vld [vmem:[#allocation7 + $0x220] sm:$0xff]
    %v746 = vld [vmem:[#allocation7 + $0x228] sm:$0xff]
    %v747 = vld [vmem:[#allocation7 + $0x230] sm:$0xff]
    %v748 = vld [vmem:[#allocation7 + $0x238] sm:$0xff]
    %v749 = vld [vmem:[#allocation7 + $0x240] sm:$0xff]
    %v750 = vld [vmem:[#allocation7 + $0x248] sm:$0xff]
    %v751 = vld [vmem:[#allocation7 + $0x250] sm:$0xff]
    %v752 = vld [vmem:[#allocation7 + $0x258] sm:$0xff]
    %v753 = vld [vmem:[#allocation7 + $0x260] sm:$0xff]
    %v754 = vld [vmem:[#allocation7 + $0x268] sm:$0xff]
    %v755 = vld [vmem:[#allocation7 + $0x270] sm:$0xff]
    %v756 = vld [vmem:[#allocation7 + $0x278] sm:$0xff]
    %v757 = vld [vmem:[#allocation7 + $0x280] sm:$0xff]
    %v758 = vld [vmem:[#allocation7 + $0x288] sm:$0xff]
    %v759 = vld [vmem:[#allocation7 + $0x290] sm:$0xff]
    %v760 = vld [vmem:[#allocation7 + $0x298] sm:$0xff]
    %v761 = vld [vmem:[#allocation7 + $0x2a0] sm:$0xff]
    %v762 = vld [vmem:[#allocation7 + $0x2a8] sm:$0xff]
    %v763 = vld [vmem:[#allocation7 + $0x2b0] sm:$0xff]
    %v764 = vld [vmem:[#allocation7 + $0x2b8] sm:$0xff]
    %v765 = vld [vmem:[#allocation7 + $0x2c0] sm:$0xff]
    %v766 = vld [vmem:[#allocation7 + $0x2c8] sm:$0xff]
    %v767 = vld [vmem:[#allocation7 + $0x2d0] sm:$0xff]
    %v768 = vld [vmem:[#allocation7 + $0x2d8] sm:$0xff]
    %v769 = vld [vmem:[#allocation7 + $0x2e0] sm:$0xff]
    %v770 = vld [vmem:[#allocation7 + $0x2e8] sm:$0xff]
    %v771 = vld [vmem:[#allocation7 + $0x2f0] sm:$0xff]
    %v772 = vld [vmem:[#allocation7 + $0x2f8] sm:$0xff]
    %v773 = vld [vmem:[#allocation7 + $0x300] sm:$0xff]
    %v774 = vld [vmem:[#allocation7 + $0x308] sm:$0xff]
    %v775 = vld [vmem:[#allocation7 + $0x310] sm:$0xff]
    %v776 = vld [vmem:[#allocation7 + $0x318] sm:$0xff]
    %v777 = vld [vmem:[#allocation7 + $0x320] sm:$0xff]
    %v778 = vld [vmem:[#allocation7 + $0x328] sm:$0xff]
    %v779 = vld [vmem:[#allocation7 + $0x330] sm:$0xff]
    %v780 = vld [vmem:[#allocation7 + $0x338] sm:$0xff]
    %v781 = vld [vmem:[#allocation7 + $0x340] sm:$0xff]
    %v782 = vld [vmem:[#allocation7 + $0x348] sm:$0xff]
    %v783 = vld [vmem:[#allocation7 + $0x350] sm:$0xff]
    %v784 = vld [vmem:[#allocation7 + $0x358] sm:$0xff]
    %v785 = vld [vmem:[#allocation7 + $0x360] sm:$0xff]
    %v786 = vld [vmem:[#allocation7 + $0x368] sm:$0xff]
    %v787 = vld [vmem:[#allocation7 + $0x370] sm:$0xff]
    %v788 = vld [vmem:[#allocation7 + $0x378] sm:$0xff]
    %v789 = vld [vmem:[#allocation7 + $0x380] sm:$0xff]
    %v790 = vld [vmem:[#allocation7 + $0x388] sm:$0xff]
    %v791 = vld [vmem:[#allocation7 + $0x390] sm:$0xff]
    %v792 = vld [vmem:[#allocation7 + $0x398] sm:$0xff]
    %v793 = vld [vmem:[#allocation7 + $0x3a0] sm:$0xff]
    %v794 = vld [vmem:[#allocation7 + $0x3a8] sm:$0xff]
    %v795 = vld [vmem:[#allocation7 + $0x3b0] sm:$0xff]
    %v796 = vld [vmem:[#allocation7 + $0x3b8] sm:$0xff]
    %v797 = vld [vmem:[#allocation7 + $0x3c0] sm:$0xff]
    %v798 = vld [vmem:[#allocation7 + $0x3c8] sm:$0xff]
    %v799 = vld [vmem:[#allocation7 + $0x3d0] sm:$0xff]
    %v800 = vld [vmem:[#allocation7 + $0x3d8] sm:$0xff]
    %v801 = vld [vmem:[#allocation7 + $0x3e0] sm:$0xff]
    %v802 = vld [vmem:[#allocation7 + $0x3e8] sm:$0xff]
    %v803 = vld [vmem:[#allocation7 + $0x3f0] sm:$0xff]
    %v804 = vld [vmem:[#allocation7 + $0x3f8] sm:$0xff]
    %v805 = vld [vmem:[#allocation7 + $0x400] sm:$0xff]
    %v806 = vld [vmem:[#allocation7 + $0x408] sm:$0xff]
    %v807 = vld [vmem:[#allocation7 + $0x410] sm:$0xff]
    %v808 = vld [vmem:[#allocation7 + $0x418] sm:$0xff]
    %v809 = vld [vmem:[#allocation7 + $0x420] sm:$0xff]
    %v810 = vld [vmem:[#allocation7 + $0x428] sm:$0xff]
    %v811 = vld [vmem:[#allocation7 + $0x430] sm:$0xff]
    %v812 = vld [vmem:[#allocation7 + $0x438] sm:$0xff]
    %v813 = vld [vmem:[#allocation7 + $0x440] sm:$0xff]
    %v814 = vld [vmem:[#allocation7 + $0x448] sm:$0xff]
    %v815 = vld [vmem:[#allocation7 + $0x450] sm:$0xff]
    %v816 = vld [vmem:[#allocation7 + $0x458] sm:$0xff]
    %v817 = vld [vmem:[#allocation7 + $0x460] sm:$0xff]
    %v818 = vld [vmem:[#allocation7 + $0x468] sm:$0xff]
    %v819 = vld [vmem:[#allocation7 + $0x470] sm:$0xff]
    %v820 = vld [vmem:[#allocation7 + $0x478] sm:$0xff]
    %v821 = vld [vmem:[#allocation7 + $0x480] sm:$0xff]
    %v822 = vld [vmem:[#allocation7 + $0x488] sm:$0xff]
    %v823 = vld [vmem:[#allocation7 + $0x490] sm:$0xff]
    %v824 = vld [vmem:[#allocation7 + $0x498] sm:$0xff]
    %v825 = vld [vmem:[#allocation7 + $0x4a0] sm:$0xff]
    %v826 = vld [vmem:[#allocation7 + $0x4a8] sm:$0xff]
    %v827 = vld [vmem:[#allocation7 + $0x4b0] sm:$0xff]
    %v828 = vld [vmem:[#allocation7 + $0x4b8] sm:$0xff]
    %v829 = vld [vmem:[#allocation7 + $0x4c0] sm:$0xff]
    %v830 = vld [vmem:[#allocation7 + $0x4c8] sm:$0xff]
    %v831 = vld [vmem:[#allocation7 + $0x4d0] sm:$0xff]
    %v832 = vld [vmem:[#allocation7 + $0x4d8] sm:$0xff]
    %v833 = vld [vmem:[#allocation7 + $0x4e0] sm:$0xff]
    %v834 = vld [vmem:[#allocation7 + $0x4e8] sm:$0xff]
    %v835 = vld [vmem:[#allocation7 + $0x4f0] sm:$0xff]
    %v836 = vld [vmem:[#allocation7 + $0x4f8] sm:$0xff]
    %v837 = vld [vmem:[#allocation7 + $0x500] sm:$0xff]
    %v838 = vld [vmem:[#allocation7 + $0x508] sm:$0xff]
    %v839 = vld [vmem:[#allocation7 + $0x510] sm:$0xff]
    %v840 = vld [vmem:[#allocation7 + $0x518] sm:$0xff]
    %v841 = vld [vmem:[#allocation7 + $0x520] sm:$0xff]
    %v842 = vld [vmem:[#allocation7 + $0x528] sm:$0xff]
    %v843 = vld [vmem:[#allocation7 + $0x530] sm:$0xff]
    %v844 = vld [vmem:[#allocation7 + $0x538] sm:$0xff]
    %v845 = vld [vmem:[#allocation7 + $0x540] sm:$0xff]
    %v846 = vld [vmem:[#allocation7 + $0x548] sm:$0xff]
    %v847 = vld [vmem:[#allocation7 + $0x550] sm:$0xff]
    %v848 = vld [vmem:[#allocation7 + $0x558] sm:$0xff]
    %v849 = vld [vmem:[#allocation7 + $0x560] sm:$0xff]
    %v850 = vld [vmem:[#allocation7 + $0x568] sm:$0xff]
    %v851 = vld [vmem:[#allocation7 + $0x570] sm:$0xff]
    %v852 = vld [vmem:[#allocation7 + $0x578] sm:$0xff]
    %v853 = vld [vmem:[#allocation7 + $0x580] sm:$0xff]
    %v854 = vld [vmem:[#allocation7 + $0x588] sm:$0xff]
    %v855 = vld [vmem:[#allocation7 + $0x590] sm:$0xff]
    %v856 = vld [vmem:[#allocation7 + $0x598] sm:$0xff]
    %v857 = vld [vmem:[#allocation7 + $0x5a0] sm:$0xff]
    %v858 = vld [vmem:[#allocation7 + $0x5a8] sm:$0xff]
    %v859 = vld [vmem:[#allocation7 + $0x5b0] sm:$0xff]
    %v860 = vld [vmem:[#allocation7 + $0x5b8] sm:$0xff]
    %v861 = vld [vmem:[#allocation7 + $0x5c0] sm:$0xff]
    %v862 = vld [vmem:[#allocation7 + $0x5c8] sm:$0xff]
    %v863 = vld [vmem:[#allocation7 + $0x5d0] sm:$0xff]
    %v864 = vld [vmem:[#allocation7 + $0x5d8] sm:$0xff]
    %v865 = vld [vmem:[#allocation7 + $0x5e0] sm:$0xff]
    %v866 = vld [vmem:[#allocation7 + $0x5e8] sm:$0xff]
    %v867 = vld [vmem:[#allocation7 + $0x5f0] sm:$0xff]
    %v868 = vld [vmem:[#allocation7 + $0x5f8] sm:$0xff]
    %v869 = vld [vmem:[#allocation7 + $0x600] sm:$0xff]
    %v870 = vld [vmem:[#allocation7 + $0x608] sm:$0xff]
    %v871 = vld [vmem:[#allocation7 + $0x610] sm:$0xff]
    %v872 = vld [vmem:[#allocation7 + $0x618] sm:$0xff]
    %v873 = vld [vmem:[#allocation7 + $0x620] sm:$0xff]
    %v874 = vld [vmem:[#allocation7 + $0x628] sm:$0xff]
    %v875 = vld [vmem:[#allocation7 + $0x630] sm:$0xff]
    %v876 = vld [vmem:[#allocation7 + $0x638] sm:$0xff]
    %v877 = vld [vmem:[#allocation7 + $0x640] sm:$0xff]
    %v878 = vld [vmem:[#allocation7 + $0x648] sm:$0xff]
    %v879 = vld [vmem:[#allocation7 + $0x650] sm:$0xff]
    %v880 = vld [vmem:[#allocation7 + $0x658] sm:$0xff]
    %v881 = vld [vmem:[#allocation7 + $0x660] sm:$0xff]
    %v882 = vld [vmem:[#allocation7 + $0x668] sm:$0xff]
    %v883 = vld [vmem:[#allocation7 + $0x670] sm:$0xff]
    %v884 = vld [vmem:[#allocation7 + $0x678] sm:$0xff]
    %v885 = vld [vmem:[#allocation7 + $0x680] sm:$0xff]
    %v886 = vld [vmem:[#allocation7 + $0x688] sm:$0xff]
    %v887 = vld [vmem:[#allocation7 + $0x690] sm:$0xff]
    %v888 = vld [vmem:[#allocation7 + $0x698] sm:$0xff]
    %v889 = vld [vmem:[#allocation7 + $0x6a0] sm:$0xff]
    %v890 = vld [vmem:[#allocation7 + $0x6a8] sm:$0xff]
    %v891 = vld [vmem:[#allocation7 + $0x6b0] sm:$0xff]
    %v892 = vld [vmem:[#allocation7 + $0x6b8] sm:$0xff]
    %v893 = vld [vmem:[#allocation7 + $0x6c0] sm:$0xff]
    %v894 = vld [vmem:[#allocation7 + $0x6c8] sm:$0xff]
    %v895 = vld [vmem:[#allocation7 + $0x6d0] sm:$0xff]
    %v896 = vld [vmem:[#allocation7 + $0x6d8] sm:$0xff]
    %v897 = vld [vmem:[#allocation7 + $0x6e0] sm:$0xff]
    %v898 = vld [vmem:[#allocation7 + $0x6e8] sm:$0xff]
    %v899 = vld [vmem:[#allocation7 + $0x6f0] sm:$0xff]
    %v900 = vld [vmem:[#allocation7 + $0x6f8] sm:$0xff]
    %v901 = vld [vmem:[#allocation7 + $0x700] sm:$0xff]
    %v902 = vld [vmem:[#allocation7 + $0x708] sm:$0xff]
    %v903 = vld [vmem:[#allocation7 + $0x710] sm:$0xff]
    %v904 = vld [vmem:[#allocation7 + $0x718] sm:$0xff]
    %v905 = vld [vmem:[#allocation7 + $0x720] sm:$0xff]
    %v906 = vld [vmem:[#allocation7 + $0x728] sm:$0xff]
    %v907 = vld [vmem:[#allocation7 + $0x730] sm:$0xff]
    %v908 = vld [vmem:[#allocation7 + $0x738] sm:$0xff]
    %v909 = vld [vmem:[#allocation7 + $0x740] sm:$0xff]
    %v910 = vld [vmem:[#allocation7 + $0x748] sm:$0xff]
    %v911 = vld [vmem:[#allocation7 + $0x750] sm:$0xff]
    %v912 = vld [vmem:[#allocation7 + $0x758] sm:$0xff]
    %v913 = vld [vmem:[#allocation7 + $0x760] sm:$0xff]
    %v914 = vld [vmem:[#allocation7 + $0x768] sm:$0xff]
    %v915 = vld [vmem:[#allocation7 + $0x770] sm:$0xff]
    %v916 = vld [vmem:[#allocation7 + $0x778] sm:$0xff]
    %v917 = vld [vmem:[#allocation7 + $0x780] sm:$0xff]
    %v918 = vld [vmem:[#allocation7 + $0x788] sm:$0xff]
    %v919 = vld [vmem:[#allocation7 + $0x790] sm:$0xff]
    %v920 = vld [vmem:[#allocation7 + $0x798] sm:$0xff]
    %v921 = vld [vmem:[#allocation7 + $0x7a0] sm:$0xff]
    %v922 = vld [vmem:[#allocation7 + $0x7a8] sm:$0xff]
    %v923 = vld [vmem:[#allocation7 + $0x7b0] sm:$0xff]
    %v924 = vld [vmem:[#allocation7 + $0x7b8] sm:$0xff]
    %v925 = vld [vmem:[#allocation7 + $0x7c0] sm:$0xff]
    %v926 = vld [vmem:[#allocation7 + $0x7c8] sm:$0xff]
    %v927 = vld [vmem:[#allocation7 + $0x7d0] sm:$0xff]
    %v928 = vld [vmem:[#allocation7 + $0x7d8] sm:$0xff]
    %v929 = vld [vmem:[#allocation7 + $0x7e0] sm:$0xff]
    %v930 = vld [vmem:[#allocation7 + $0x7e8] sm:$0xff]
    %v931 = vld [vmem:[#allocation7 + $0x7f0] sm:$0xff]
    %v932 = vld [vmem:[#allocation7 + $0x7f8] sm:$0xff]
    %v933 = vld [vmem:[#allocation9] sm:$0xff]
    %v935 = vperm.slane %v933, 0
    %v936 = vperm.slane %v933, 1
    %v937 = vperm.slane %v933, 2
    %v938 = vperm.slane %v933, 3
    %v939 = vperm.slane %v933, 4
    %v940 = vperm.slane %v933, 5
    %v941 = vperm.slane %v933, 6
    %v942 = vperm.slane %v933, 7
    %v1207 = vunpack.c.l.b16 %v677
    %v1208 = vunpack.c.h.b16 %v677
    %v1209 = vunpack.c.l.b16 %v678
    %v1210 = vunpack.c.h.b16 %v678
    %v1211 = vunpack.c.l.b16 %v679
    %v1212 = vunpack.c.h.b16 %v679
    %v1213 = vunpack.c.l.b16 %v680
    %v1214 = vunpack.c.h.b16 %v680
    %v1215 = vunpack.c.l.b16 %v681
    %v1216 = vunpack.c.h.b16 %v681
    %v1217 = vunpack.c.l.b16 %v682
    %v1218 = vunpack.c.h.b16 %v682
    %v1219 = vunpack.c.l.b16 %v683
    %v1220 = vunpack.c.h.b16 %v683
    %v1221 = vunpack.c.l.b16 %v684
    %v1222 = vunpack.c.h.b16 %v684
    %v1223 = vunpack.c.l.b16 %v685
    %v1224 = vunpack.c.h.b16 %v685
    %v1225 = vunpack.c.l.b16 %v686
    %v1226 = vunpack.c.h.b16 %v686
    %v1227 = vunpack.c.l.b16 %v687
    %v1228 = vunpack.c.h.b16 %v687
    %v1229 = vunpack.c.l.b16 %v688
    %v1230 = vunpack.c.h.b16 %v688
    %v1231 = vunpack.c.l.b16 %v689
    %v1232 = vunpack.c.h.b16 %v689
    %v1233 = vunpack.c.l.b16 %v690
    %v1234 = vunpack.c.h.b16 %v690
    %v1235 = vunpack.c.l.b16 %v691
    %v1236 = vunpack.c.h.b16 %v691
    %v1237 = vunpack.c.l.b16 %v692
    %v1238 = vunpack.c.h.b16 %v692
    %v1239 = vunpack.c.l.b16 %v693
    %v1240 = vunpack.c.h.b16 %v693
    %v1241 = vunpack.c.l.b16 %v694
    %v1242 = vunpack.c.h.b16 %v694
    %v1243 = vunpack.c.l.b16 %v695
    %v1244 = vunpack.c.h.b16 %v695
    %v1245 = vunpack.c.l.b16 %v696
    %v1246 = vunpack.c.h.b16 %v696
    %v1247 = vunpack.c.l.b16 %v697
    %v1248 = vunpack.c.h.b16 %v697
    %v1249 = vunpack.c.l.b16 %v698
    %v1250 = vunpack.c.h.b16 %v698
    %v1251 = vunpack.c.l.b16 %v699
    %v1252 = vunpack.c.h.b16 %v699
    %v1253 = vunpack.c.l.b16 %v700
    %v1254 = vunpack.c.h.b16 %v700
    %v1255 = vunpack.c.l.b16 %v701
    %v1256 = vunpack.c.h.b16 %v701
    %v1257 = vunpack.c.l.b16 %v702
    %v1258 = vunpack.c.h.b16 %v702
    %v1259 = vunpack.c.l.b16 %v703
    %v1260 = vunpack.c.h.b16 %v703
    %v1261 = vunpack.c.l.b16 %v704
    %v1262 = vunpack.c.h.b16 %v704
    %v1263 = vunpack.c.l.b16 %v705
    %v1264 = vunpack.c.h.b16 %v705
    %v1265 = vunpack.c.l.b16 %v706
    %v1266 = vunpack.c.h.b16 %v706
    %v1267 = vunpack.c.l.b16 %v707
    %v1268 = vunpack.c.h.b16 %v707
    %v1269 = vunpack.c.l.b16 %v708
    %v1270 = vunpack.c.h.b16 %v708
    %v1271 = vunpack.c.l.b16 %v709
    %v1272 = vunpack.c.h.b16 %v709
    %v1273 = vunpack.c.l.b16 %v710
    %v1274 = vunpack.c.h.b16 %v710
    %v1275 = vunpack.c.l.b16 %v711
    %v1276 = vunpack.c.h.b16 %v711
    %v1277 = vunpack.c.l.b16 %v712
    %v1278 = vunpack.c.h.b16 %v712
    %v1279 = vunpack.c.l.b16 %v713
    %v1280 = vunpack.c.h.b16 %v713
    %v1281 = vunpack.c.l.b16 %v714
    %v1282 = vunpack.c.h.b16 %v714
    %v1283 = vunpack.c.l.b16 %v715
    %v1284 = vunpack.c.h.b16 %v715
    %v1285 = vunpack.c.l.b16 %v716
    %v1286 = vunpack.c.h.b16 %v716
    %v1287 = vunpack.c.l.b16 %v717
    %v1288 = vunpack.c.h.b16 %v717
    %v1289 = vunpack.c.l.b16 %v718
    %v1290 = vunpack.c.h.b16 %v718
    %v1291 = vunpack.c.l.b16 %v719
    %v1292 = vunpack.c.h.b16 %v719
    %v1293 = vunpack.c.l.b16 %v720
    %v1294 = vunpack.c.h.b16 %v720
    %v1295 = vunpack.c.l.b16 %v721
    %v1296 = vunpack.c.h.b16 %v721
    %v1297 = vunpack.c.l.b16 %v722
    %v1298 = vunpack.c.h.b16 %v722
    %v1299 = vunpack.c.l.b16 %v723
    %v1300 = vunpack.c.h.b16 %v723
    %v1301 = vunpack.c.l.b16 %v724
    %v1302 = vunpack.c.h.b16 %v724
    %v1303 = vunpack.c.l.b16 %v725
    %v1304 = vunpack.c.h.b16 %v725
    %v1305 = vunpack.c.l.b16 %v726
    %v1306 = vunpack.c.h.b16 %v726
    %v1307 = vunpack.c.l.b16 %v727
    %v1308 = vunpack.c.h.b16 %v727
    %v1309 = vunpack.c.l.b16 %v728
    %v1310 = vunpack.c.h.b16 %v728
    %v1311 = vunpack.c.l.b16 %v729
    %v1312 = vunpack.c.h.b16 %v729
    %v1313 = vunpack.c.l.b16 %v730
    %v1314 = vunpack.c.h.b16 %v730
    %v1315 = vunpack.c.l.b16 %v731
    %v1316 = vunpack.c.h.b16 %v731
    %v1317 = vunpack.c.l.b16 %v732
    %v1318 = vunpack.c.h.b16 %v732
    %v1319 = vunpack.c.l.b16 %v733
    %v1320 = vunpack.c.h.b16 %v733
    %v1321 = vunpack.c.l.b16 %v734
    %v1322 = vunpack.c.h.b16 %v734
    %v1323 = vunpack.c.l.b16 %v735
    %v1324 = vunpack.c.h.b16 %v735
    %v1325 = vunpack.c.l.b16 %v736
    %v1326 = vunpack.c.h.b16 %v736
    %v1327 = vunpack.c.l.b16 %v737
    %v1328 = vunpack.c.h.b16 %v737
    %v1329 = vunpack.c.l.b16 %v738
    %v1330 = vunpack.c.h.b16 %v738
    %v1331 = vunpack.c.l.b16 %v739
    %v1332 = vunpack.c.h.b16 %v739
    %v1333 = vunpack.c.l.b16 %v740
    %v1334 = vunpack.c.h.b16 %v740
    %v1335 = vunpack.c.l.b16 %v741
    %v1336 = vunpack.c.h.b16 %v741
    %v1337 = vunpack.c.l.b16 %v742
    %v1338 = vunpack.c.h.b16 %v742
    %v1339 = vunpack.c.l.b16 %v743
    %v1340 = vunpack.c.h.b16 %v743
    %v1341 = vunpack.c.l.b16 %v744
    %v1342 = vunpack.c.h.b16 %v744
    %v1343 = vunpack.c.l.b16 %v745
    %v1344 = vunpack.c.h.b16 %v745
    %v1345 = vunpack.c.l.b16 %v746
    %v1346 = vunpack.c.h.b16 %v746
    %v1347 = vunpack.c.l.b16 %v747
    %v1348 = vunpack.c.h.b16 %v747
    %v1349 = vunpack.c.l.b16 %v748
    %v1350 = vunpack.c.h.b16 %v748
    %v1351 = vunpack.c.l.b16 %v749
    %v1352 = vunpack.c.h.b16 %v749
    %v1353 = vunpack.c.l.b16 %v750
    %v1354 = vunpack.c.h.b16 %v750
    %v1355 = vunpack.c.l.b16 %v751
    %v1356 = vunpack.c.h.b16 %v751
    %v1357 = vunpack.c.l.b16 %v752
    %v1358 = vunpack.c.h.b16 %v752
    %v1359 = vunpack.c.l.b16 %v753
    %v1360 = vunpack.c.h.b16 %v753
    %v1361 = vunpack.c.l.b16 %v754
    %v1362 = vunpack.c.h.b16 %v754
    %v1363 = vunpack.c.l.b16 %v755
    %v1364 = vunpack.c.h.b16 %v755
    %v1365 = vunpack.c.l.b16 %v756
    %v1366 = vunpack.c.h.b16 %v756
    %v1367 = vunpack.c.l.b16 %v757
    %v1368 = vunpack.c.h.b16 %v757
    %v1369 = vunpack.c.l.b16 %v758
    %v1370 = vunpack.c.h.b16 %v758
    %v1371 = vunpack.c.l.b16 %v759
    %v1372 = vunpack.c.h.b16 %v759
    %v1373 = vunpack.c.l.b16 %v760
    %v1374 = vunpack.c.h.b16 %v760
    %v1375 = vunpack.c.l.b16 %v761
    %v1376 = vunpack.c.h.b16 %v761
    %v1377 = vunpack.c.l.b16 %v762
    %v1378 = vunpack.c.h.b16 %v762
    %v1379 = vunpack.c.l.b16 %v763
    %v1380 = vunpack.c.h.b16 %v763
    %v1381 = vunpack.c.l.b16 %v764
    %v1382 = vunpack.c.h.b16 %v764
    %v1383 = vunpack.c.l.b16 %v765
    %v1384 = vunpack.c.h.b16 %v765
    %v1385 = vunpack.c.l.b16 %v766
    %v1386 = vunpack.c.h.b16 %v766
    %v1387 = vunpack.c.l.b16 %v767
    %v1388 = vunpack.c.h.b16 %v767
    %v1389 = vunpack.c.l.b16 %v768
    %v1390 = vunpack.c.h.b16 %v768
    %v1391 = vunpack.c.l.b16 %v769
    %v1392 = vunpack.c.h.b16 %v769
    %v1393 = vunpack.c.l.b16 %v770
    %v1394 = vunpack.c.h.b16 %v770
    %v1395 = vunpack.c.l.b16 %v771
    %v1396 = vunpack.c.h.b16 %v771
    %v1397 = vunpack.c.l.b16 %v772
    %v1398 = vunpack.c.h.b16 %v772
    %v1399 = vunpack.c.l.b16 %v773
    %v1400 = vunpack.c.h.b16 %v773
    %v1401 = vunpack.c.l.b16 %v774
    %v1402 = vunpack.c.h.b16 %v774
    %v1403 = vunpack.c.l.b16 %v775
    %v1404 = vunpack.c.h.b16 %v775
    %v1405 = vunpack.c.l.b16 %v776
    %v1406 = vunpack.c.h.b16 %v776
    %v1407 = vunpack.c.l.b16 %v777
    %v1408 = vunpack.c.h.b16 %v777
    %v1409 = vunpack.c.l.b16 %v778
    %v1410 = vunpack.c.h.b16 %v778
    %v1411 = vunpack.c.l.b16 %v779
    %v1412 = vunpack.c.h.b16 %v779
    %v1413 = vunpack.c.l.b16 %v780
    %v1414 = vunpack.c.h.b16 %v780
    %v1415 = vunpack.c.l.b16 %v781
    %v1416 = vunpack.c.h.b16 %v781
    %v1417 = vunpack.c.l.b16 %v782
    %v1418 = vunpack.c.h.b16 %v782
    %v1419 = vunpack.c.l.b16 %v783
    %v1420 = vunpack.c.h.b16 %v783
    %v1421 = vunpack.c.l.b16 %v784
    %v1422 = vunpack.c.h.b16 %v784
    %v1423 = vunpack.c.l.b16 %v785
    %v1424 = vunpack.c.h.b16 %v785
    %v1425 = vunpack.c.l.b16 %v786
    %v1426 = vunpack.c.h.b16 %v786
    %v1427 = vunpack.c.l.b16 %v787
    %v1428 = vunpack.c.h.b16 %v787
    %v1429 = vunpack.c.l.b16 %v788
    %v1430 = vunpack.c.h.b16 %v788
    %v1431 = vunpack.c.l.b16 %v789
    %v1432 = vunpack.c.h.b16 %v789
    %v1433 = vunpack.c.l.b16 %v790
    %v1434 = vunpack.c.h.b16 %v790
    %v1435 = vunpack.c.l.b16 %v791
    %v1436 = vunpack.c.h.b16 %v791
    %v1437 = vunpack.c.l.b16 %v792
    %v1438 = vunpack.c.h.b16 %v792
    %v1439 = vunpack.c.l.b16 %v793
    %v1440 = vunpack.c.h.b16 %v793
    %v1441 = vunpack.c.l.b16 %v794
    %v1442 = vunpack.c.h.b16 %v794
    %v1443 = vunpack.c.l.b16 %v795
    %v1444 = vunpack.c.h.b16 %v795
    %v1445 = vunpack.c.l.b16 %v796
    %v1446 = vunpack.c.h.b16 %v796
    %v1447 = vunpack.c.l.b16 %v797
    %v1448 = vunpack.c.h.b16 %v797
    %v1449 = vunpack.c.l.b16 %v798
    %v1450 = vunpack.c.h.b16 %v798
    %v1451 = vunpack.c.l.b16 %v799
    %v1452 = vunpack.c.h.b16 %v799
    %v1453 = vunpack.c.l.b16 %v800
    %v1454 = vunpack.c.h.b16 %v800
    %v1455 = vunpack.c.l.b16 %v801
    %v1456 = vunpack.c.h.b16 %v801
    %v1457 = vunpack.c.l.b16 %v802
    %v1458 = vunpack.c.h.b16 %v802
    %v1459 = vunpack.c.l.b16 %v803
    %v1460 = vunpack.c.h.b16 %v803
    %v1461 = vunpack.c.l.b16 %v804
    %v1462 = vunpack.c.h.b16 %v804
    %v1463 = vunpack.c.l.b16 %v805
    %v1464 = vunpack.c.h.b16 %v805
    %v1465 = vunpack.c.l.b16 %v806
    %v1466 = vunpack.c.h.b16 %v806
    %v1467 = vunpack.c.l.b16 %v807
    %v1468 = vunpack.c.h.b16 %v807
    %v1469 = vunpack.c.l.b16 %v808
    %v1470 = vunpack.c.h.b16 %v808
    %v1471 = vunpack.c.l.b16 %v809
    %v1472 = vunpack.c.h.b16 %v809
    %v1473 = vunpack.c.l.b16 %v810
    %v1474 = vunpack.c.h.b16 %v810
    %v1475 = vunpack.c.l.b16 %v811
    %v1476 = vunpack.c.h.b16 %v811
    %v1477 = vunpack.c.l.b16 %v812
    %v1478 = vunpack.c.h.b16 %v812
    %v1479 = vunpack.c.l.b16 %v813
    %v1480 = vunpack.c.h.b16 %v813
    %v1481 = vunpack.c.l.b16 %v814
    %v1482 = vunpack.c.h.b16 %v814
    %v1483 = vunpack.c.l.b16 %v815
    %v1484 = vunpack.c.h.b16 %v815
    %v1485 = vunpack.c.l.b16 %v816
    %v1486 = vunpack.c.h.b16 %v816
    %v1487 = vunpack.c.l.b16 %v817
    %v1488 = vunpack.c.h.b16 %v817
    %v1489 = vunpack.c.l.b16 %v818
    %v1490 = vunpack.c.h.b16 %v818
    %v1491 = vunpack.c.l.b16 %v819
    %v1492 = vunpack.c.h.b16 %v819
    %v1493 = vunpack.c.l.b16 %v820
    %v1494 = vunpack.c.h.b16 %v820
    %v1495 = vunpack.c.l.b16 %v821
    %v1496 = vunpack.c.h.b16 %v821
    %v1497 = vunpack.c.l.b16 %v822
    %v1498 = vunpack.c.h.b16 %v822
    %v1499 = vunpack.c.l.b16 %v823
    %v1500 = vunpack.c.h.b16 %v823
    %v1501 = vunpack.c.l.b16 %v824
    %v1502 = vunpack.c.h.b16 %v824
    %v1503 = vunpack.c.l.b16 %v825
    %v1504 = vunpack.c.h.b16 %v825
    %v1505 = vunpack.c.l.b16 %v826
    %v1506 = vunpack.c.h.b16 %v826
    %v1507 = vunpack.c.l.b16 %v827
    %v1508 = vunpack.c.h.b16 %v827
    %v1509 = vunpack.c.l.b16 %v828
    %v1510 = vunpack.c.h.b16 %v828
    %v1511 = vunpack.c.l.b16 %v829
    %v1512 = vunpack.c.h.b16 %v829
    %v1513 = vunpack.c.l.b16 %v830
    %v1514 = vunpack.c.h.b16 %v830
    %v1515 = vunpack.c.l.b16 %v831
    %v1516 = vunpack.c.h.b16 %v831
    %v1517 = vunpack.c.l.b16 %v832
    %v1518 = vunpack.c.h.b16 %v832
    %v1519 = vunpack.c.l.b16 %v833
    %v1520 = vunpack.c.h.b16 %v833
    %v1521 = vunpack.c.l.b16 %v834
    %v1522 = vunpack.c.h.b16 %v834
    %v1523 = vunpack.c.l.b16 %v835
    %v1524 = vunpack.c.h.b16 %v835
    %v1525 = vunpack.c.l.b16 %v836
    %v1526 = vunpack.c.h.b16 %v836
    %v1527 = vunpack.c.l.b16 %v837
    %v1528 = vunpack.c.h.b16 %v837
    %v1529 = vunpack.c.l.b16 %v838
    %v1530 = vunpack.c.h.b16 %v838
    %v1531 = vunpack.c.l.b16 %v839
    %v1532 = vunpack.c.h.b16 %v839
    %v1533 = vunpack.c.l.b16 %v840
    %v1534 = vunpack.c.h.b16 %v840
    %v1535 = vunpack.c.l.b16 %v841
    %v1536 = vunpack.c.h.b16 %v841
    %v1537 = vunpack.c.l.b16 %v842
    %v1538 = vunpack.c.h.b16 %v842
    %v1539 = vunpack.c.l.b16 %v843
    %v1540 = vunpack.c.h.b16 %v843
    %v1541 = vunpack.c.l.b16 %v844
    %v1542 = vunpack.c.h.b16 %v844
    %v1543 = vunpack.c.l.b16 %v845
    %v1544 = vunpack.c.h.b16 %v845
    %v1545 = vunpack.c.l.b16 %v846
    %v1546 = vunpack.c.h.b16 %v846
    %v1547 = vunpack.c.l.b16 %v847
    %v1548 = vunpack.c.h.b16 %v847
    %v1549 = vunpack.c.l.b16 %v848
    %v1550 = vunpack.c.h.b16 %v848
    %v1551 = vunpack.c.l.b16 %v849
    %v1552 = vunpack.c.h.b16 %v849
    %v1553 = vunpack.c.l.b16 %v850
    %v1554 = vunpack.c.h.b16 %v850
    %v1555 = vunpack.c.l.b16 %v851
    %v1556 = vunpack.c.h.b16 %v851
    %v1557 = vunpack.c.l.b16 %v852
    %v1558 = vunpack.c.h.b16 %v852
    %v1559 = vunpack.c.l.b16 %v853
    %v1560 = vunpack.c.h.b16 %v853
    %v1561 = vunpack.c.l.b16 %v854
    %v1562 = vunpack.c.h.b16 %v854
    %v1563 = vunpack.c.l.b16 %v855
    %v1564 = vunpack.c.h.b16 %v855
    %v1565 = vunpack.c.l.b16 %v856
    %v1566 = vunpack.c.h.b16 %v856
    %v1567 = vunpack.c.l.b16 %v857
    %v1568 = vunpack.c.h.b16 %v857
    %v1569 = vunpack.c.l.b16 %v858
    %v1570 = vunpack.c.h.b16 %v858
    %v1571 = vunpack.c.l.b16 %v859
    %v1572 = vunpack.c.h.b16 %v859
    %v1573 = vunpack.c.l.b16 %v860
    %v1574 = vunpack.c.h.b16 %v860
    %v1575 = vunpack.c.l.b16 %v861
    %v1576 = vunpack.c.h.b16 %v861
    %v1577 = vunpack.c.l.b16 %v862
    %v1578 = vunpack.c.h.b16 %v862
    %v1579 = vunpack.c.l.b16 %v863
    %v1580 = vunpack.c.h.b16 %v863
    %v1581 = vunpack.c.l.b16 %v864
    %v1582 = vunpack.c.h.b16 %v864
    %v1583 = vunpack.c.l.b16 %v865
    %v1584 = vunpack.c.h.b16 %v865
    %v1585 = vunpack.c.l.b16 %v866
    %v1586 = vunpack.c.h.b16 %v866
    %v1587 = vunpack.c.l.b16 %v867
    %v1588 = vunpack.c.h.b16 %v867
    %v1589 = vunpack.c.l.b16 %v868
    %v1590 = vunpack.c.h.b16 %v868
    %v1591 = vunpack.c.l.b16 %v869
    %v1592 = vunpack.c.h.b16 %v869
    %v1593 = vunpack.c.l.b16 %v870
    %v1594 = vunpack.c.h.b16 %v870
    %v1595 = vunpack.c.l.b16 %v871
    %v1596 = vunpack.c.h.b16 %v871
    %v1597 = vunpack.c.l.b16 %v872
    %v1598 = vunpack.c.h.b16 %v872
    %v1599 = vunpack.c.l.b16 %v873
    %v1600 = vunpack.c.h.b16 %v873
    %v1601 = vunpack.c.l.b16 %v874
    %v1602 = vunpack.c.h.b16 %v874
    %v1603 = vunpack.c.l.b16 %v875
    %v1604 = vunpack.c.h.b16 %v875
    %v1605 = vunpack.c.l.b16 %v876
    %v1606 = vunpack.c.h.b16 %v876
    %v1607 = vunpack.c.l.b16 %v877
    %v1608 = vunpack.c.h.b16 %v877
    %v1609 = vunpack.c.l.b16 %v878
    %v1610 = vunpack.c.h.b16 %v878
    %v1611 = vunpack.c.l.b16 %v879
    %v1612 = vunpack.c.h.b16 %v879
    %v1613 = vunpack.c.l.b16 %v880
    %v1614 = vunpack.c.h.b16 %v880
    %v1615 = vunpack.c.l.b16 %v881
    %v1616 = vunpack.c.h.b16 %v881
    %v1617 = vunpack.c.l.b16 %v882
    %v1618 = vunpack.c.h.b16 %v882
    %v1619 = vunpack.c.l.b16 %v883
    %v1620 = vunpack.c.h.b16 %v883
    %v1621 = vunpack.c.l.b16 %v884
    %v1622 = vunpack.c.h.b16 %v884
    %v1623 = vunpack.c.l.b16 %v885
    %v1624 = vunpack.c.h.b16 %v885
    %v1625 = vunpack.c.l.b16 %v886
    %v1626 = vunpack.c.h.b16 %v886
    %v1627 = vunpack.c.l.b16 %v887
    %v1628 = vunpack.c.h.b16 %v887
    %v1629 = vunpack.c.l.b16 %v888
    %v1630 = vunpack.c.h.b16 %v888
    %v1631 = vunpack.c.l.b16 %v889
    %v1632 = vunpack.c.h.b16 %v889
    %v1633 = vunpack.c.l.b16 %v890
    %v1634 = vunpack.c.h.b16 %v890
    %v1635 = vunpack.c.l.b16 %v891
    %v1636 = vunpack.c.h.b16 %v891
    %v1637 = vunpack.c.l.b16 %v892
    %v1638 = vunpack.c.h.b16 %v892
    %v1639 = vunpack.c.l.b16 %v893
    %v1640 = vunpack.c.h.b16 %v893
    %v1641 = vunpack.c.l.b16 %v894
    %v1642 = vunpack.c.h.b16 %v894
    %v1643 = vunpack.c.l.b16 %v895
    %v1644 = vunpack.c.h.b16 %v895
    %v1645 = vunpack.c.l.b16 %v896
    %v1646 = vunpack.c.h.b16 %v896
    %v1647 = vunpack.c.l.b16 %v897
    %v1648 = vunpack.c.h.b16 %v897
    %v1649 = vunpack.c.l.b16 %v898
    %v1650 = vunpack.c.h.b16 %v898
    %v1651 = vunpack.c.l.b16 %v899
    %v1652 = vunpack.c.h.b16 %v899
    %v1653 = vunpack.c.l.b16 %v900
    %v1654 = vunpack.c.h.b16 %v900
    %v1655 = vunpack.c.l.b16 %v901
    %v1656 = vunpack.c.h.b16 %v901
    %v1657 = vunpack.c.l.b16 %v902
    %v1658 = vunpack.c.h.b16 %v902
    %v1659 = vunpack.c.l.b16 %v903
    %v1660 = vunpack.c.h.b16 %v903
    %v1661 = vunpack.c.l.b16 %v904
    %v1662 = vunpack.c.h.b16 %v904
    %v1663 = vunpack.c.l.b16 %v905
    %v1664 = vunpack.c.h.b16 %v905
    %v1665 = vunpack.c.l.b16 %v906
    %v1666 = vunpack.c.h.b16 %v906
    %v1667 = vunpack.c.l.b16 %v907
    %v1668 = vunpack.c.h.b16 %v907
    %v1669 = vunpack.c.l.b16 %v908
    %v1670 = vunpack.c.h.b16 %v908
    %v1671 = vunpack.c.l.b16 %v909
    %v1672 = vunpack.c.h.b16 %v909
    %v1673 = vunpack.c.l.b16 %v910
    %v1674 = vunpack.c.h.b16 %v910
    %v1675 = vunpack.c.l.b16 %v911
    %v1676 = vunpack.c.h.b16 %v911
    %v1677 = vunpack.c.l.b16 %v912
    %v1678 = vunpack.c.h.b16 %v912
    %v1679 = vunpack.c.l.b16 %v913
    %v1680 = vunpack.c.h.b16 %v913
    %v1681 = vunpack.c.l.b16 %v914
    %v1682 = vunpack.c.h.b16 %v914
    %v1683 = vunpack.c.l.b16 %v915
    %v1684 = vunpack.c.h.b16 %v915
    %v1685 = vunpack.c.l.b16 %v916
    %v1686 = vunpack.c.h.b16 %v916
    %v1687 = vunpack.c.l.b16 %v917
    %v1688 = vunpack.c.h.b16 %v917
    %v1689 = vunpack.c.l.b16 %v918
    %v1690 = vunpack.c.h.b16 %v918
    %v1691 = vunpack.c.l.b16 %v919
    %v1692 = vunpack.c.h.b16 %v919
    %v1693 = vunpack.c.l.b16 %v920
    %v1694 = vunpack.c.h.b16 %v920
    %v1695 = vunpack.c.l.b16 %v921
    %v1696 = vunpack.c.h.b16 %v921
    %v1697 = vunpack.c.l.b16 %v922
    %v1698 = vunpack.c.h.b16 %v922
    %v1699 = vunpack.c.l.b16 %v923
    %v1700 = vunpack.c.h.b16 %v923
    %v1701 = vunpack.c.l.b16 %v924
    %v1702 = vunpack.c.h.b16 %v924
    %v1703 = vunpack.c.l.b16 %v925
    %v1704 = vunpack.c.h.b16 %v925
    %v1705 = vunpack.c.l.b16 %v926
    %v1706 = vunpack.c.h.b16 %v926
    %v1707 = vunpack.c.l.b16 %v927
    %v1708 = vunpack.c.h.b16 %v927
    %v1709 = vunpack.c.l.b16 %v928
    %v1710 = vunpack.c.h.b16 %v928
    %v1711 = vunpack.c.l.b16 %v929
    %v1712 = vunpack.c.h.b16 %v929
    %v1713 = vunpack.c.l.b16 %v930
    %v1714 = vunpack.c.h.b16 %v930
    %v1715 = vunpack.c.l.b16 %v931
    %v1716 = vunpack.c.h.b16 %v931
    %v1717 = vunpack.c.l.b16 %v932
    %v1718 = vunpack.c.h.b16 %v932
    %v1719 = vpack.c.b16 %v1215, %v1207
    %v1720 = vpack.c.b16 %v1216, %v1208
    %v1721 = vpack.c.b16 %v1217, %v1209
    %v1722 = vpack.c.b16 %v1218, %v1210
    %v1723 = vpack.c.b16 %v1219, %v1211
    %v1724 = vpack.c.b16 %v1220, %v1212
    %v1725 = vpack.c.b16 %v1221, %v1213
    %v1726 = vpack.c.b16 %v1222, %v1214
    %v1727 = vpack.c.b16 %v1231, %v1223
    %v1728 = vpack.c.b16 %v1232, %v1224
    %v1729 = vpack.c.b16 %v1233, %v1225
    %v1730 = vpack.c.b16 %v1234, %v1226
    %v1731 = vpack.c.b16 %v1235, %v1227
    %v1732 = vpack.c.b16 %v1236, %v1228
    %v1733 = vpack.c.b16 %v1237, %v1229
    %v1734 = vpack.c.b16 %v1238, %v1230
    %v1735 = vpack.c.b16 %v1247, %v1239
    %v1736 = vpack.c.b16 %v1248, %v1240
    %v1737 = vpack.c.b16 %v1249, %v1241
    %v1738 = vpack.c.b16 %v1250, %v1242
    %v1739 = vpack.c.b16 %v1251, %v1243
    %v1740 = vpack.c.b16 %v1252, %v1244
    %v1741 = vpack.c.b16 %v1253, %v1245
    %v1742 = vpack.c.b16 %v1254, %v1246
    %v1743 = vpack.c.b16 %v1263, %v1255
    %v1744 = vpack.c.b16 %v1264, %v1256
    %v1745 = vpack.c.b16 %v1265, %v1257
    %v1746 = vpack.c.b16 %v1266, %v1258
    %v1747 = vpack.c.b16 %v1267, %v1259
    %v1748 = vpack.c.b16 %v1268, %v1260
    %v1749 = vpack.c.b16 %v1269, %v1261
    %v1750 = vpack.c.b16 %v1270, %v1262
    %v1751 = vpack.c.b16 %v1279, %v1271
    %v1752 = vpack.c.b16 %v1280, %v1272
    %v1753 = vpack.c.b16 %v1281, %v1273
    %v1754 = vpack.c.b16 %v1282, %v1274
    %v1755 = vpack.c.b16 %v1283, %v1275
    %v1756 = vpack.c.b16 %v1284, %v1276
    %v1757 = vpack.c.b16 %v1285, %v1277
    %v1758 = vpack.c.b16 %v1286, %v1278
    %v1759 = vpack.c.b16 %v1295, %v1287
    %v1760 = vpack.c.b16 %v1296, %v1288
    %v1761 = vpack.c.b16 %v1297, %v1289
    %v1762 = vpack.c.b16 %v1298, %v1290
    %v1763 = vpack.c.b16 %v1299, %v1291
    %v1764 = vpack.c.b16 %v1300, %v1292
    %v1765 = vpack.c.b16 %v1301, %v1293
    %v1766 = vpack.c.b16 %v1302, %v1294
    %v1767 = vpack.c.b16 %v1311, %v1303
    %v1768 = vpack.c.b16 %v1312, %v1304
    %v1769 = vpack.c.b16 %v1313, %v1305
    %v1770 = vpack.c.b16 %v1314, %v1306
    %v1771 = vpack.c.b16 %v1315, %v1307
    %v1772 = vpack.c.b16 %v1316, %v1308
    %v1773 = vpack.c.b16 %v1317, %v1309
    %v1774 = vpack.c.b16 %v1318, %v1310
    %v1775 = vpack.c.b16 %v1327, %v1319
    %v1776 = vpack.c.b16 %v1328, %v1320
    %v1777 = vpack.c.b16 %v1329, %v1321
    %v1778 = vpack.c.b16 %v1330, %v1322
    %v1779 = vpack.c.b16 %v1331, %v1323
    %v1780 = vpack.c.b16 %v1332, %v1324
    %v1781 = vpack.c.b16 %v1333, %v1325
    %v1782 = vpack.c.b16 %v1334, %v1326
    %v1783 = vpack.c.b16 %v1343, %v1335
    %v1784 = vpack.c.b16 %v1344, %v1336
    %v1785 = vpack.c.b16 %v1345, %v1337
    %v1786 = vpack.c.b16 %v1346, %v1338
    %v1787 = vpack.c.b16 %v1347, %v1339
    %v1788 = vpack.c.b16 %v1348, %v1340
    %v1789 = vpack.c.b16 %v1349, %v1341
    %v1790 = vpack.c.b16 %v1350, %v1342
    %v1791 = vpack.c.b16 %v1359, %v1351
    %v1792 = vpack.c.b16 %v1360, %v1352
    %v1793 = vpack.c.b16 %v1361, %v1353
    %v1794 = vpack.c.b16 %v1362, %v1354
    %v1795 = vpack.c.b16 %v1363, %v1355
    %v1796 = vpack.c.b16 %v1364, %v1356
    %v1797 = vpack.c.b16 %v1365, %v1357
    %v1798 = vpack.c.b16 %v1366, %v1358
    %v1799 = vpack.c.b16 %v1375, %v1367
    %v1800 = vpack.c.b16 %v1376, %v1368
    %v1801 = vpack.c.b16 %v1377, %v1369
    %v1802 = vpack.c.b16 %v1378, %v1370
    %v1803 = vpack.c.b16 %v1379, %v1371
    %v1804 = vpack.c.b16 %v1380, %v1372
    %v1805 = vpack.c.b16 %v1381, %v1373
    %v1806 = vpack.c.b16 %v1382, %v1374
    %v1807 = vpack.c.b16 %v1391, %v1383
    %v1808 = vpack.c.b16 %v1392, %v1384
    %v1809 = vpack.c.b16 %v1393, %v1385
    %v1810 = vpack.c.b16 %v1394, %v1386
    %v1811 = vpack.c.b16 %v1395, %v1387
    %v1812 = vpack.c.b16 %v1396, %v1388
    %v1813 = vpack.c.b16 %v1397, %v1389
    %v1814 = vpack.c.b16 %v1398, %v1390
    %v1815 = vpack.c.b16 %v1407, %v1399
    %v1816 = vpack.c.b16 %v1408, %v1400
    %v1817 = vpack.c.b16 %v1409, %v1401
    %v1818 = vpack.c.b16 %v1410, %v1402
    %v1819 = vpack.c.b16 %v1411, %v1403
    %v1820 = vpack.c.b16 %v1412, %v1404
    %v1821 = vpack.c.b16 %v1413, %v1405
    %v1822 = vpack.c.b16 %v1414, %v1406
    %v1823 = vpack.c.b16 %v1423, %v1415
    %v1824 = vpack.c.b16 %v1424, %v1416
    %v1825 = vpack.c.b16 %v1425, %v1417
    %v1826 = vpack.c.b16 %v1426, %v1418
    %v1827 = vpack.c.b16 %v1427, %v1419
    %v1828 = vpack.c.b16 %v1428, %v1420
    %v1829 = vpack.c.b16 %v1429, %v1421
    %v1830 = vpack.c.b16 %v1430, %v1422
    %v1831 = vpack.c.b16 %v1439, %v1431
    %v1832 = vpack.c.b16 %v1440, %v1432
    %v1833 = vpack.c.b16 %v1441, %v1433
    %v1834 = vpack.c.b16 %v1442, %v1434
    %v1835 = vpack.c.b16 %v1443, %v1435
    %v1836 = vpack.c.b16 %v1444, %v1436
    %v1837 = vpack.c.b16 %v1445, %v1437
    %v1838 = vpack.c.b16 %v1446, %v1438
    %v1839 = vpack.c.b16 %v1455, %v1447
    %v1840 = vpack.c.b16 %v1456, %v1448
    %v1841 = vpack.c.b16 %v1457, %v1449
    %v1842 = vpack.c.b16 %v1458, %v1450
    %v1843 = vpack.c.b16 %v1459, %v1451
    %v1844 = vpack.c.b16 %v1460, %v1452
    %v1845 = vpack.c.b16 %v1461, %v1453
    %v1846 = vpack.c.b16 %v1462, %v1454
    %v1847 = vpack.c.b16 %v1471, %v1463
    %v1848 = vpack.c.b16 %v1472, %v1464
    %v1849 = vpack.c.b16 %v1473, %v1465
    %v1850 = vpack.c.b16 %v1474, %v1466
    %v1851 = vpack.c.b16 %v1475, %v1467
    %v1852 = vpack.c.b16 %v1476, %v1468
    %v1853 = vpack.c.b16 %v1477, %v1469
    %v1854 = vpack.c.b16 %v1478, %v1470
    %v1855 = vpack.c.b16 %v1487, %v1479
    %v1856 = vpack.c.b16 %v1488, %v1480
    %v1857 = vpack.c.b16 %v1489, %v1481
    %v1858 = vpack.c.b16 %v1490, %v1482
    %v1859 = vpack.c.b16 %v1491, %v1483
    %v1860 = vpack.c.b16 %v1492, %v1484
    %v1861 = vpack.c.b16 %v1493, %v1485
    %v1862 = vpack.c.b16 %v1494, %v1486
    %v1863 = vpack.c.b16 %v1503, %v1495
    %v1864 = vpack.c.b16 %v1504, %v1496
    %v1865 = vpack.c.b16 %v1505, %v1497
    %v1866 = vpack.c.b16 %v1506, %v1498
    %v1867 = vpack.c.b16 %v1507, %v1499
    %v1868 = vpack.c.b16 %v1508, %v1500
    %v1869 = vpack.c.b16 %v1509, %v1501
    %v1870 = vpack.c.b16 %v1510, %v1502
    %v1871 = vpack.c.b16 %v1519, %v1511
    %v1872 = vpack.c.b16 %v1520, %v1512
    %v1873 = vpack.c.b16 %v1521, %v1513
    %v1874 = vpack.c.b16 %v1522, %v1514
    %v1875 = vpack.c.b16 %v1523, %v1515
    %v1876 = vpack.c.b16 %v1524, %v1516
    %v1877 = vpack.c.b16 %v1525, %v1517
    %v1878 = vpack.c.b16 %v1526, %v1518
    %v1879 = vpack.c.b16 %v1535, %v1527
    %v1880 = vpack.c.b16 %v1536, %v1528
    %v1881 = vpack.c.b16 %v1537, %v1529
    %v1882 = vpack.c.b16 %v1538, %v1530
    %v1883 = vpack.c.b16 %v1539, %v1531
    %v1884 = vpack.c.b16 %v1540, %v1532
    %v1885 = vpack.c.b16 %v1541, %v1533
    %v1886 = vpack.c.b16 %v1542, %v1534
    %v1887 = vpack.c.b16 %v1551, %v1543
    %v1888 = vpack.c.b16 %v1552, %v1544
    %v1889 = vpack.c.b16 %v1553, %v1545
    %v1890 = vpack.c.b16 %v1554, %v1546
    %v1891 = vpack.c.b16 %v1555, %v1547
    %v1892 = vpack.c.b16 %v1556, %v1548
    %v1893 = vpack.c.b16 %v1557, %v1549
    %v1894 = vpack.c.b16 %v1558, %v1550
    %v1895 = vpack.c.b16 %v1567, %v1559
    %v1896 = vpack.c.b16 %v1568, %v1560
    %v1897 = vpack.c.b16 %v1569, %v1561
    %v1898 = vpack.c.b16 %v1570, %v1562
    %v1899 = vpack.c.b16 %v1571, %v1563
    %v1900 = vpack.c.b16 %v1572, %v1564
    %v1901 = vpack.c.b16 %v1573, %v1565
    %v1902 = vpack.c.b16 %v1574, %v1566
    %v1903 = vpack.c.b16 %v1583, %v1575
    %v1904 = vpack.c.b16 %v1584, %v1576
    %v1905 = vpack.c.b16 %v1585, %v1577
    %v1906 = vpack.c.b16 %v1586, %v1578
    %v1907 = vpack.c.b16 %v1587, %v1579
    %v1908 = vpack.c.b16 %v1588, %v1580
    %v1909 = vpack.c.b16 %v1589, %v1581
    %v1910 = vpack.c.b16 %v1590, %v1582
    %v1911 = vpack.c.b16 %v1599, %v1591
    %v1912 = vpack.c.b16 %v1600, %v1592
    %v1913 = vpack.c.b16 %v1601, %v1593
    %v1914 = vpack.c.b16 %v1602, %v1594
    %v1915 = vpack.c.b16 %v1603, %v1595
    %v1916 = vpack.c.b16 %v1604, %v1596
    %v1917 = vpack.c.b16 %v1605, %v1597
    %v1918 = vpack.c.b16 %v1606, %v1598
    %v1919 = vpack.c.b16 %v1615, %v1607
    %v1920 = vpack.c.b16 %v1616, %v1608
    %v1921 = vpack.c.b16 %v1617, %v1609
    %v1922 = vpack.c.b16 %v1618, %v1610
    %v1923 = vpack.c.b16 %v1619, %v1611
    %v1924 = vpack.c.b16 %v1620, %v1612
    %v1925 = vpack.c.b16 %v1621, %v1613
    %v1926 = vpack.c.b16 %v1622, %v1614
    %v1927 = vpack.c.b16 %v1631, %v1623
    %v1928 = vpack.c.b16 %v1632, %v1624
    %v1929 = vpack.c.b16 %v1633, %v1625
    %v1930 = vpack.c.b16 %v1634, %v1626
    %v1931 = vpack.c.b16 %v1635, %v1627
    %v1932 = vpack.c.b16 %v1636, %v1628
    %v1933 = vpack.c.b16 %v1637, %v1629
    %v1934 = vpack.c.b16 %v1638, %v1630
    %v1935 = vpack.c.b16 %v1647, %v1639
    %v1936 = vpack.c.b16 %v1648, %v1640
    %v1937 = vpack.c.b16 %v1649, %v1641
    %v1938 = vpack.c.b16 %v1650, %v1642
    %v1939 = vpack.c.b16 %v1651, %v1643
    %v1940 = vpack.c.b16 %v1652, %v1644
    %v1941 = vpack.c.b16 %v1653, %v1645
    %v1942 = vpack.c.b16 %v1654, %v1646
    %v1943 = vpack.c.b16 %v1663, %v1655
    %v1944 = vpack.c.b16 %v1664, %v1656
    %v1945 = vpack.c.b16 %v1665, %v1657
    %v1946 = vpack.c.b16 %v1666, %v1658
    %v1947 = vpack.c.b16 %v1667, %v1659
    %v1948 = vpack.c.b16 %v1668, %v1660
    %v1949 = vpack.c.b16 %v1669, %v1661
    %v1950 = vpack.c.b16 %v1670, %v1662
    %v1951 = vpack.c.b16 %v1679, %v1671
    %v1952 = vpack.c.b16 %v1680, %v1672
    %v1953 = vpack.c.b16 %v1681, %v1673
    %v1954 = vpack.c.b16 %v1682, %v1674
    %v1955 = vpack.c.b16 %v1683, %v1675
    %v1956 = vpack.c.b16 %v1684, %v1676
    %v1957 = vpack.c.b16 %v1685, %v1677
    %v1958 = vpack.c.b16 %v1686, %v1678
    %v1959 = vpack.c.b16 %v1695, %v1687
    %v1960 = vpack.c.b16 %v1696, %v1688
    %v1961 = vpack.c.b16 %v1697, %v1689
    %v1962 = vpack.c.b16 %v1698, %v1690
    %v1963 = vpack.c.b16 %v1699, %v1691
    %v1964 = vpack.c.b16 %v1700, %v1692
    %v1965 = vpack.c.b16 %v1701, %v1693
    %v1966 = vpack.c.b16 %v1702, %v1694
    %v1967 = vpack.c.b16 %v1711, %v1703
    %v1968 = vpack.c.b16 %v1712, %v1704
    %v1969 = vpack.c.b16 %v1713, %v1705
    %v1970 = vpack.c.b16 %v1714, %v1706
    %v1971 = vpack.c.b16 %v1715, %v1707
    %v1972 = vpack.c.b16 %v1716, %v1708
    %v1973 = vpack.c.b16 %v1717, %v1709
    %v1974 = vpack.c.b16 %v1718, %v1710
    %2231 = vmatpush.bf16.msra.mxu0 %v1775
    %2232 = vmatpush.bf16.msra.mxu0 %v1767
    %2233 = vmatpush.bf16.msra.mxu0 %v1759
    %2234 = vmatpush.bf16.msra.mxu0 %v1751
    %2235 = vmatpush.bf16.msra.mxu0 %v1743
    %2236 = vmatpush.bf16.msra.mxu0 %v1735
    %2237 = vmatpush.bf16.msra.mxu0 %v1727
    %2238 = vmatpush.bf16.msra.mxu0 %v1719
    %2239 = vmatmul.bf16.gmra.mxu0 %v673
    %v2240 = vpop.f32.mrf.mxu0
    %v2241 = vadd.f32 %v935, %v2240
    %v2242 = vpop.f32.mrf.mxu0
    %2243 = vdwg.mxu0
    %2244 = vmatpush.bf16.msra.mxu0 %v1839
    %2245 = vmatpush.bf16.msra.mxu0 %v1831
    %2246 = vmatpush.bf16.msra.mxu0 %v1823
    %2247 = vmatpush.bf16.msra.mxu0 %v1815
    %2248 = vmatpush.bf16.msra.mxu0 %v1807
    %2249 = vmatpush.bf16.msra.mxu0 %v1799
    %2250 = vmatpush.bf16.msra.mxu0 %v1791
    %2251 = vmatpush.bf16.msra.mxu0 %v1783
    %2252 = vmatmul.bf16.gmra.mxu0 %v674
    %v2253 = vpop.f32.mrf.mxu0
    %v2254 = vadd.f32 %v2241, %v2253
    %v2255 = vpop.f32.mrf.mxu0
    %2256 = vdwg.mxu0
    %2257 = vmatpush.bf16.msra.mxu0 %v1903
    %2258 = vmatpush.bf16.msra.mxu0 %v1895
    %2259 = vmatpush.bf16.msra.mxu0 %v1887
    %2260 = vmatpush.bf16.msra.mxu0 %v1879
    %2261 = vmatpush.bf16.msra.mxu0 %v1871
    %2262 = vmatpush.bf16.msra.mxu0 %v1863
    %2263 = vmatpush.bf16.msra.mxu0 %v1855
    %2264 = vmatpush.bf16.msra.mxu0 %v1847
    %2265 = vmatmul.bf16.gmra.mxu0 %v675
    %v2266 = vpop.f32.mrf.mxu0
    %v2267 = vadd.f32 %v2254, %v2266
    %v2268 = vpop.f32.mrf.mxu0
    %2269 = vdwg.mxu0
    %2270 = vmatpush.bf16.msra.mxu0 %v1967
    %2271 = vmatpush.bf16.msra.mxu0 %v1959
    %2272 = vmatpush.bf16.msra.mxu0 %v1951
    %2273 = vmatpush.bf16.msra.mxu0 %v1943
    %2274 = vmatpush.bf16.msra.mxu0 %v1935
    %2275 = vmatpush.bf16.msra.mxu0 %v1927
    %2276 = vmatpush.bf16.msra.mxu0 %v1919
    %2277 = vmatpush.bf16.msra.mxu0 %v1911
    %2278 = vmatmul.bf16.gmra.mxu0 %v676
    %v2279 = vpop.f32.mrf.mxu0
    %v2280 = vadd.f32 %v2267, %v2279
    %v2281 = vpop.f32.mrf.mxu0
    %2282 = vdwg.mxu0
    %2283 = vmatpush.bf16.msra.mxu0 %v1776
    %2284 = vmatpush.bf16.msra.mxu0 %v1768
    %2285 = vmatpush.bf16.msra.mxu0 %v1760
    %2286 = vmatpush.bf16.msra.mxu0 %v1752
    %2287 = vmatpush.bf16.msra.mxu0 %v1744
    %2288 = vmatpush.bf16.msra.mxu0 %v1736
    %2289 = vmatpush.bf16.msra.mxu0 %v1728
    %2290 = vmatpush.bf16.msra.mxu0 %v1720
    %2291 = vmatmul.bf16.gmra.mxu0 %v673
    %v2292 = vpop.f32.mrf.mxu0
    %v2293 = vadd.f32 %v936, %v2292
    %v2294 = vpop.f32.mrf.mxu0
    %2295 = vdwg.mxu0
    %2296 = vmatpush.bf16.msra.mxu0 %v1840
    %2297 = vmatpush.bf16.msra.mxu0 %v1832
    %2298 = vmatpush.bf16.msra.mxu0 %v1824
    %2299 = vmatpush.bf16.msra.mxu0 %v1816
    %2300 = vmatpush.bf16.msra.mxu0 %v1808
    %2301 = vmatpush.bf16.msra.mxu0 %v1800
    %2302 = vmatpush.bf16.msra.mxu0 %v1792
    %2303 = vmatpush.bf16.msra.mxu0 %v1784
    %2304 = vmatmul.bf16.gmra.mxu0 %v674
    %v2305 = vpop.f32.mrf.mxu0
    %v2306 = vadd.f32 %v2293, %v2305
    %v2307 = vpop.f32.mrf.mxu0
    %2308 = vdwg.mxu0
    %2309 = vmatpush.bf16.msra.mxu0 %v1904
    %2310 = vmatpush.bf16.msra.mxu0 %v1896
    %2311 = vmatpush.bf16.msra.mxu0 %v1888
    %2312 = vmatpush.bf16.msra.mxu0 %v1880
    %2313 = vmatpush.bf16.msra.mxu0 %v1872
    %2314 = vmatpush.bf16.msra.mxu0 %v1864
    %2315 = vmatpush.bf16.msra.mxu0 %v1856
    %2316 = vmatpush.bf16.msra.mxu0 %v1848
    %2317 = vmatmul.bf16.gmra.mxu0 %v675
    %v2318 = vpop.f32.mrf.mxu0
    %v2319 = vadd.f32 %v2306, %v2318
    %v2320 = vpop.f32.mrf.mxu0
    %2321 = vdwg.mxu0
    %2322 = vmatpush.bf16.msra.mxu0 %v1968
    %2323 = vmatpush.bf16.msra.mxu0 %v1960
    %2324 = vmatpush.bf16.msra.mxu0 %v1952
    %2325 = vmatpush.bf16.msra.mxu0 %v1944
    %2326 = vmatpush.bf16.msra.mxu0 %v1936
    %2327 = vmatpush.bf16.msra.mxu0 %v1928
    %2328 = vmatpush.bf16.msra.mxu0 %v1920
    %2329 = vmatpush.bf16.msra.mxu0 %v1912
    %2330 = vmatmul.bf16.gmra.mxu0 %v676
    %v2331 = vpop.f32.mrf.mxu0
    %v2332 = vadd.f32 %v2319, %v2331
    %v2333 = vpop.f32.mrf.mxu0
    %2334 = vdwg.mxu0
    %2335 = vmatpush.bf16.msra.mxu0 %v1777
    %2336 = vmatpush.bf16.msra.mxu0 %v1769
    %2337 = vmatpush.bf16.msra.mxu0 %v1761
    %2338 = vmatpush.bf16.msra.mxu0 %v1753
    %2339 = vmatpush.bf16.msra.mxu0 %v1745
    %2340 = vmatpush.bf16.msra.mxu0 %v1737
    %2341 = vmatpush.bf16.msra.mxu0 %v1729
    %2342 = vmatpush.bf16.msra.mxu0 %v1721
    %2343 = vmatmul.bf16.gmra.mxu0 %v673
    %v2344 = vpop.f32.mrf.mxu0
    %v2345 = vadd.f32 %v937, %v2344
    %v2346 = vpop.f32.mrf.mxu0
    %2347 = vdwg.mxu0
    %2348 = vmatpush.bf16.msra.mxu0 %v1841
    %2349 = vmatpush.bf16.msra.mxu0 %v1833
    %2350 = vmatpush.bf16.msra.mxu0 %v1825
    %2351 = vmatpush.bf16.msra.mxu0 %v1817
    %2352 = vmatpush.bf16.msra.mxu0 %v1809
    %2353 = vmatpush.bf16.msra.mxu0 %v1801
    %2354 = vmatpush.bf16.msra.mxu0 %v1793
    %2355 = vmatpush.bf16.msra.mxu0 %v1785
    %2356 = vmatmul.bf16.gmra.mxu0 %v674
    %v2357 = vpop.f32.mrf.mxu0
    %v2358 = vadd.f32 %v2345, %v2357
    %v2359 = vpop.f32.mrf.mxu0
    %2360 = vdwg.mxu0
    %2361 = vmatpush.bf16.msra.mxu0 %v1905
    %2362 = vmatpush.bf16.msra.mxu0 %v1897
    %2363 = vmatpush.bf16.msra.mxu0 %v1889
    %2364 = vmatpush.bf16.msra.mxu0 %v1881
    %2365 = vmatpush.bf16.msra.mxu0 %v1873
    %2366 = vmatpush.bf16.msra.mxu0 %v1865
    %2367 = vmatpush.bf16.msra.mxu0 %v1857
    %2368 = vmatpush.bf16.msra.mxu0 %v1849
    %2369 = vmatmul.bf16.gmra.mxu0 %v675
    %v2370 = vpop.f32.mrf.mxu0
    %v2371 = vadd.f32 %v2358, %v2370
    %v2372 = vpop.f32.mrf.mxu0
    %2373 = vdwg.mxu0
    %2374 = vmatpush.bf16.msra.mxu0 %v1969
    %2375 = vmatpush.bf16.msra.mxu0 %v1961
    %2376 = vmatpush.bf16.msra.mxu0 %v1953
    %2377 = vmatpush.bf16.msra.mxu0 %v1945
    %2378 = vmatpush.bf16.msra.mxu0 %v1937
    %2379 = vmatpush.bf16.msra.mxu0 %v1929
    %2380 = vmatpush.bf16.msra.mxu0 %v1921
    %2381 = vmatpush.bf16.msra.mxu0 %v1913
    %2382 = vmatmul.bf16.gmra.mxu0 %v676
    %v2383 = vpop.f32.mrf.mxu0
    %v2384 = vadd.f32 %v2371, %v2383
    %v2385 = vpop.f32.mrf.mxu0
    %2386 = vdwg.mxu0
    %2387 = vmatpush.bf16.msra.mxu0 %v1778
    %2388 = vmatpush.bf16.msra.mxu0 %v1770
    %2389 = vmatpush.bf16.msra.mxu0 %v1762
    %2390 = vmatpush.bf16.msra.mxu0 %v1754
    %2391 = vmatpush.bf16.msra.mxu0 %v1746
    %2392 = vmatpush.bf16.msra.mxu0 %v1738
    %2393 = vmatpush.bf16.msra.mxu0 %v1730
    %2394 = vmatpush.bf16.msra.mxu0 %v1722
    %2395 = vmatmul.bf16.gmra.mxu0 %v673
    %v2396 = vpop.f32.mrf.mxu0
    %v2397 = vadd.f32 %v938, %v2396
    %v2398 = vpop.f32.mrf.mxu0
    %2399 = vdwg.mxu0
    %2400 = vmatpush.bf16.msra.mxu0 %v1842
    %2401 = vmatpush.bf16.msra.mxu0 %v1834
    %2402 = vmatpush.bf16.msra.mxu0 %v1826
    %2403 = vmatpush.bf16.msra.mxu0 %v1818
    %2404 = vmatpush.bf16.msra.mxu0 %v1810
    %2405 = vmatpush.bf16.msra.mxu0 %v1802
    %2406 = vmatpush.bf16.msra.mxu0 %v1794
    %2407 = vmatpush.bf16.msra.mxu0 %v1786
    %2408 = vmatmul.bf16.gmra.mxu0 %v674
    %v2409 = vpop.f32.mrf.mxu0
    %v2410 = vadd.f32 %v2397, %v2409
    %v2411 = vpop.f32.mrf.mxu0
    %2412 = vdwg.mxu0
    %2413 = vmatpush.bf16.msra.mxu0 %v1906
    %2414 = vmatpush.bf16.msra.mxu0 %v1898
    %2415 = vmatpush.bf16.msra.mxu0 %v1890
    %2416 = vmatpush.bf16.msra.mxu0 %v1882
    %2417 = vmatpush.bf16.msra.mxu0 %v1874
    %2418 = vmatpush.bf16.msra.mxu0 %v1866
    %2419 = vmatpush.bf16.msra.mxu0 %v1858
    %2420 = vmatpush.bf16.msra.mxu0 %v1850
    %2421 = vmatmul.bf16.gmra.mxu0 %v675
    %v2422 = vpop.f32.mrf.mxu0
    %v2423 = vadd.f32 %v2410, %v2422
    %v2424 = vpop.f32.mrf.mxu0
    %2425 = vdwg.mxu0
    %2426 = vmatpush.bf16.msra.mxu0 %v1970
    %2427 = vmatpush.bf16.msra.mxu0 %v1962
    %2428 = vmatpush.bf16.msra.mxu0 %v1954
    %2429 = vmatpush.bf16.msra.mxu0 %v1946
    %2430 = vmatpush.bf16.msra.mxu0 %v1938
    %2431 = vmatpush.bf16.msra.mxu0 %v1930
    %2432 = vmatpush.bf16.msra.mxu0 %v1922
    %2433 = vmatpush.bf16.msra.mxu0 %v1914
    %2434 = vmatmul.bf16.gmra.mxu0 %v676
    %v2435 = vpop.f32.mrf.mxu0
    %v2436 = vadd.f32 %v2423, %v2435
    %v2437 = vpop.f32.mrf.mxu0
    %2438 = vdwg.mxu0
    %2439 = vmatpush.bf16.msra.mxu0 %v1779
    %2440 = vmatpush.bf16.msra.mxu0 %v1771
    %2441 = vmatpush.bf16.msra.mxu0 %v1763
    %2442 = vmatpush.bf16.msra.mxu0 %v1755
    %2443 = vmatpush.bf16.msra.mxu0 %v1747
    %2444 = vmatpush.bf16.msra.mxu0 %v1739
    %2445 = vmatpush.bf16.msra.mxu0 %v1731
    %2446 = vmatpush.bf16.msra.mxu0 %v1723
    %2447 = vmatmul.bf16.gmra.mxu0 %v673
    %v2448 = vpop.f32.mrf.mxu0
    %v2449 = vadd.f32 %v939, %v2448
    %v2450 = vpop.f32.mrf.mxu0
    %2451 = vdwg.mxu0
    %2452 = vmatpush.bf16.msra.mxu0 %v1843
    %2453 = vmatpush.bf16.msra.mxu0 %v1835
    %2454 = vmatpush.bf16.msra.mxu0 %v1827
    %2455 = vmatpush.bf16.msra.mxu0 %v1819
    %2456 = vmatpush.bf16.msra.mxu0 %v1811
    %2457 = vmatpush.bf16.msra.mxu0 %v1803
    %2458 = vmatpush.bf16.msra.mxu0 %v1795
    %2459 = vmatpush.bf16.msra.mxu0 %v1787
    %2460 = vmatmul.bf16.gmra.mxu0 %v674
    %v2461 = vpop.f32.mrf.mxu0
    %v2462 = vadd.f32 %v2449, %v2461
    %v2463 = vpop.f32.mrf.mxu0
    %2464 = vdwg.mxu0
    %2465 = vmatpush.bf16.msra.mxu0 %v1907
    %2466 = vmatpush.bf16.msra.mxu0 %v1899
    %2467 = vmatpush.bf16.msra.mxu0 %v1891
    %2468 = vmatpush.bf16.msra.mxu0 %v1883
    %2469 = vmatpush.bf16.msra.mxu0 %v1875
    %2470 = vmatpush.bf16.msra.mxu0 %v1867
    %2471 = vmatpush.bf16.msra.mxu0 %v1859
    %2472 = vmatpush.bf16.msra.mxu0 %v1851
    %2473 = vmatmul.bf16.gmra.mxu0 %v675
    %v2474 = vpop.f32.mrf.mxu0
    %v2475 = vadd.f32 %v2462, %v2474
    %v2476 = vpop.f32.mrf.mxu0
    %2477 = vdwg.mxu0
    %2478 = vmatpush.bf16.msra.mxu0 %v1971
    %2479 = vmatpush.bf16.msra.mxu0 %v1963
    %2480 = vmatpush.bf16.msra.mxu0 %v1955
    %2481 = vmatpush.bf16.msra.mxu0 %v1947
    %2482 = vmatpush.bf16.msra.mxu0 %v1939
    %2483 = vmatpush.bf16.msra.mxu0 %v1931
    %2484 = vmatpush.bf16.msra.mxu0 %v1923
    %2485 = vmatpush.bf16.msra.mxu0 %v1915
    %2486 = vmatmul.bf16.gmra.mxu0 %v676
    %v2487 = vpop.f32.mrf.mxu0
    %v2488 = vadd.f32 %v2475, %v2487
    %v2489 = vpop.f32.mrf.mxu0
    %2490 = vdwg.mxu0
    %2491 = vmatpush.bf16.msra.mxu0 %v1780
    %2492 = vmatpush.bf16.msra.mxu0 %v1772
    %2493 = vmatpush.bf16.msra.mxu0 %v1764
    %2494 = vmatpush.bf16.msra.mxu0 %v1756
    %2495 = vmatpush.bf16.msra.mxu0 %v1748
    %2496 = vmatpush.bf16.msra.mxu0 %v1740
    %2497 = vmatpush.bf16.msra.mxu0 %v1732
    %2498 = vmatpush.bf16.msra.mxu0 %v1724
    %2499 = vmatmul.bf16.gmra.mxu0 %v673
    %v2500 = vpop.f32.mrf.mxu0
    %v2501 = vadd.f32 %v940, %v2500
    %v2502 = vpop.f32.mrf.mxu0
    %2503 = vdwg.mxu0
    %2504 = vmatpush.bf16.msra.mxu0 %v1844
    %2505 = vmatpush.bf16.msra.mxu0 %v1836
    %2506 = vmatpush.bf16.msra.mxu0 %v1828
    %2507 = vmatpush.bf16.msra.mxu0 %v1820
    %2508 = vmatpush.bf16.msra.mxu0 %v1812
    %2509 = vmatpush.bf16.msra.mxu0 %v1804
    %2510 = vmatpush.bf16.msra.mxu0 %v1796
    %2511 = vmatpush.bf16.msra.mxu0 %v1788
    %2512 = vmatmul.bf16.gmra.mxu0 %v674
    %v2513 = vpop.f32.mrf.mxu0
    %v2514 = vadd.f32 %v2501, %v2513
    %v2515 = vpop.f32.mrf.mxu0
    %2516 = vdwg.mxu0
    %2517 = vmatpush.bf16.msra.mxu0 %v1908
    %2518 = vmatpush.bf16.msra.mxu0 %v1900
    %2519 = vmatpush.bf16.msra.mxu0 %v1892
    %2520 = vmatpush.bf16.msra.mxu0 %v1884
    %2521 = vmatpush.bf16.msra.mxu0 %v1876
    %2522 = vmatpush.bf16.msra.mxu0 %v1868
    %2523 = vmatpush.bf16.msra.mxu0 %v1860
    %2524 = vmatpush.bf16.msra.mxu0 %v1852
    %2525 = vmatmul.bf16.gmra.mxu0 %v675
    %v2526 = vpop.f32.mrf.mxu0
    %v2527 = vadd.f32 %v2514, %v2526
    %v2528 = vpop.f32.mrf.mxu0
    %2529 = vdwg.mxu0
    %2530 = vmatpush.bf16.msra.mxu0 %v1972
    %2531 = vmatpush.bf16.msra.mxu0 %v1964
    %2532 = vmatpush.bf16.msra.mxu0 %v1956
    %2533 = vmatpush.bf16.msra.mxu0 %v1948
    %2534 = vmatpush.bf16.msra.mxu0 %v1940
    %2535 = vmatpush.bf16.msra.mxu0 %v1932
    %2536 = vmatpush.bf16.msra.mxu0 %v1924
    %2537 = vmatpush.bf16.msra.mxu0 %v1916
    %2538 = vmatmul.bf16.gmra.mxu0 %v676
    %v2539 = vpop.f32.mrf.mxu0
    %v2540 = vadd.f32 %v2527, %v2539
    %v2541 = vpop.f32.mrf.mxu0
    %2542 = vdwg.mxu0
    %2543 = vmatpush.bf16.msra.mxu0 %v1781
    %2544 = vmatpush.bf16.msra.mxu0 %v1773
    %2545 = vmatpush.bf16.msra.mxu0 %v1765
    %2546 = vmatpush.bf16.msra.mxu0 %v1757
    %2547 = vmatpush.bf16.msra.mxu0 %v1749
    %2548 = vmatpush.bf16.msra.mxu0 %v1741
    %2549 = vmatpush.bf16.msra.mxu0 %v1733
    %2550 = vmatpush.bf16.msra.mxu0 %v1725
    %2551 = vmatmul.bf16.gmra.mxu0 %v673
    %v2552 = vpop.f32.mrf.mxu0
    %v2553 = vadd.f32 %v941, %v2552
    %v2554 = vpop.f32.mrf.mxu0
    %2555 = vdwg.mxu0
    %2556 = vmatpush.bf16.msra.mxu0 %v1845
    %2557 = vmatpush.bf16.msra.mxu0 %v1837
    %2558 = vmatpush.bf16.msra.mxu0 %v1829
    %2559 = vmatpush.bf16.msra.mxu0 %v1821
    %2560 = vmatpush.bf16.msra.mxu0 %v1813
    %2561 = vmatpush.bf16.msra.mxu0 %v1805
    %2562 = vmatpush.bf16.msra.mxu0 %v1797
    %2563 = vmatpush.bf16.msra.mxu0 %v1789
    %2564 = vmatmul.bf16.gmra.mxu0 %v674
    %v2565 = vpop.f32.mrf.mxu0
    %v2566 = vadd.f32 %v2553, %v2565
    %v2567 = vpop.f32.mrf.mxu0
    %2568 = vdwg.mxu0
    %2569 = vmatpush.bf16.msra.mxu0 %v1909
    %2570 = vmatpush.bf16.msra.mxu0 %v1901
    %2571 = vmatpush.bf16.msra.mxu0 %v1893
    %2572 = vmatpush.bf16.msra.mxu0 %v1885
    %2573 = vmatpush.bf16.msra.mxu0 %v1877
    %2574 = vmatpush.bf16.msra.mxu0 %v1869
    %2575 = vmatpush.bf16.msra.mxu0 %v1861
    %2576 = vmatpush.bf16.msra.mxu0 %v1853
    %2577 = vmatmul.bf16.gmra.mxu0 %v675
    %v2578 = vpop.f32.mrf.mxu0
    %v2579 = vadd.f32 %v2566, %v2578
    %v2580 = vpop.f32.mrf.mxu0
    %2581 = vdwg.mxu0
    %2582 = vmatpush.bf16.msra.mxu0 %v1973
    %2583 = vmatpush.bf16.msra.mxu0 %v1965
    %2584 = vmatpush.bf16.msra.mxu0 %v1957
    %2585 = vmatpush.bf16.msra.mxu0 %v1949
    %2586 = vmatpush.bf16.msra.mxu0 %v1941
    %2587 = vmatpush.bf16.msra.mxu0 %v1933
    %2588 = vmatpush.bf16.msra.mxu0 %v1925
    %2589 = vmatpush.bf16.msra.mxu0 %v1917
    %2590 = vmatmul.bf16.gmra.mxu0 %v676
    %v2591 = vpop.f32.mrf.mxu0
    %v2592 = vadd.f32 %v2579, %v2591
    %v2593 = vpop.f32.mrf.mxu0
    %2594 = vdwg.mxu0
    %2595 = vmatpush.bf16.msra.mxu0 %v1782
    %2596 = vmatpush.bf16.msra.mxu0 %v1774
    %2597 = vmatpush.bf16.msra.mxu0 %v1766
    %2598 = vmatpush.bf16.msra.mxu0 %v1758
    %2599 = vmatpush.bf16.msra.mxu0 %v1750
    %2600 = vmatpush.bf16.msra.mxu0 %v1742
    %2601 = vmatpush.bf16.msra.mxu0 %v1734
    %2602 = vmatpush.bf16.msra.mxu0 %v1726
    %2603 = vmatmul.bf16.gmra.mxu0 %v673
    %v2604 = vpop.f32.mrf.mxu0
    %v2605 = vadd.f32 %v942, %v2604
    %v2606 = vpop.f32.mrf.mxu0
    %2607 = vdwg.mxu0
    %2608 = vmatpush.bf16.msra.mxu0 %v1846
    %2609 = vmatpush.bf16.msra.mxu0 %v1838
    %2610 = vmatpush.bf16.msra.mxu0 %v1830
    %2611 = vmatpush.bf16.msra.mxu0 %v1822
    %2612 = vmatpush.bf16.msra.mxu0 %v1814
    %2613 = vmatpush.bf16.msra.mxu0 %v1806
    %2614 = vmatpush.bf16.msra.mxu0 %v1798
    %2615 = vmatpush.bf16.msra.mxu0 %v1790
    %2616 = vmatmul.bf16.gmra.mxu0 %v674
    %v2617 = vpop.f32.mrf.mxu0
    %v2618 = vadd.f32 %v2605, %v2617
    %v2619 = vpop.f32.mrf.mxu0
    %2620 = vdwg.mxu0
    %2621 = vmatpush.bf16.msra.mxu0 %v1910
    %2622 = vmatpush.bf16.msra.mxu0 %v1902
    %2623 = vmatpush.bf16.msra.mxu0 %v1894
    %2624 = vmatpush.bf16.msra.mxu0 %v1886
    %2625 = vmatpush.bf16.msra.mxu0 %v1878
    %2626 = vmatpush.bf16.msra.mxu0 %v1870
    %2627 = vmatpush.bf16.msra.mxu0 %v1862
    %2628 = vmatpush.bf16.msra.mxu0 %v1854
    %2629 = vmatmul.bf16.gmra.mxu0 %v675
    %v2630 = vpop.f32.mrf.mxu0
    %v2631 = vadd.f32 %v2618, %v2630
    %v2632 = vpop.f32.mrf.mxu0
    %2633 = vdwg.mxu0
    %2634 = vmatpush.bf16.msra.mxu0 %v1974
    %2635 = vmatpush.bf16.msra.mxu0 %v1966
    %2636 = vmatpush.bf16.msra.mxu0 %v1958
    %2637 = vmatpush.bf16.msra.mxu0 %v1950
    %2638 = vmatpush.bf16.msra.mxu0 %v1942
    %2639 = vmatpush.bf16.msra.mxu0 %v1934
    %2640 = vmatpush.bf16.msra.mxu0 %v1926
    %2641 = vmatpush.bf16.msra.mxu0 %v1918
    %2642 = vmatmul.bf16.gmra.mxu0 %v676
    %v2643 = vpop.f32.mrf.mxu0
    %v2644 = vadd.f32 %v2631, %v2643
    %v2645 = vpop.f32.mrf.mxu0
    %2646 = vdwg.mxu0
    %v2647 = vmul.f32 %v2280, 0.5
    %v2648 = vmul.f32 %v2332, 0.5
    %v2649 = vmul.f32 %v2384, 0.5
    %v2650 = vmul.f32 %v2436, 0.5
    %v2651 = vmul.f32 %v2488, 0.5
    %v2652 = vmul.f32 %v2540, 0.5
    %v2653 = vmul.f32 %v2592, 0.5
    %v2654 = vmul.f32 %v2644, 0.5
    %v2655 = vmul.f32 %v2280, %v2280
    %v2656 = vmul.f32 %v2332, %v2332
    %v2657 = vmul.f32 %v2384, %v2384
    %v2658 = vmul.f32 %v2436, %v2436
    %v2659 = vmul.f32 %v2488, %v2488
    %v2660 = vmul.f32 %v2540, %v2540
    %v2661 = vmul.f32 %v2592, %v2592
    %v2662 = vmul.f32 %v2644, %v2644
    %v2663 = vmul.f32 %v2655, %v2280
    %v2664 = vmul.f32 %v2656, %v2332
    %v2665 = vmul.f32 %v2657, %v2384
    %v2666 = vmul.f32 %v2658, %v2436
    %v2667 = vmul.f32 %v2659, %v2488
    %v2668 = vmul.f32 %v2660, %v2540
    %v2669 = vmul.f32 %v2661, %v2592
    %v2670 = vmul.f32 %v2662, %v2644
    %v2671 = vmul.f32 %v2663, 0.044715
    %v2672 = vmul.f32 %v2664, 0.044715
    %v2673 = vmul.f32 %v2665, 0.044715
    %v2674 = vmul.f32 %v2666, 0.044715
    %v2675 = vmul.f32 %v2667, 0.044715
    %v2676 = vmul.f32 %v2668, 0.044715
    %v2677 = vmul.f32 %v2669, 0.044715
    %v2678 = vmul.f32 %v2670, 0.044715
    %v2679 = vadd.f32 %v2280, %v2671
    %v2680 = vadd.f32 %v2332, %v2672
    %v2681 = vadd.f32 %v2384, %v2673
    %v2682 = vadd.f32 %v2436, %v2674
    %v2683 = vadd.f32 %v2488, %v2675
    %v2684 = vadd.f32 %v2540, %v2676
    %v2685 = vadd.f32 %v2592, %v2677
    %v2686 = vadd.f32 %v2644, %v2678
    %v2687 = vmul.f32 %v2679, 0.7978846
    %v2688 = vmul.f32 %v2680, 0.7978846
    %v2689 = vmul.f32 %v2681, 0.7978846
    %v2690 = vmul.f32 %v2682, 0.7978846
    %v2691 = vmul.f32 %v2683, 0.7978846
    %v2692 = vmul.f32 %v2684, 0.7978846
    %v2693 = vmul.f32 %v2685, 0.7978846
    %v2694 = vmul.f32 %v2686, 0.7978846
    %v2695 = vtanh.pop %v2687
    %v2696 = vtanh.pop %v2688
    %v2697 = vtanh.pop %v2689
    %v2698 = vtanh.pop %v2690
    %v2699 = vtanh.pop %v2691
    %v2700 = vtanh.pop %v2692
    %v2701 = vtanh.pop %v2693
    %v2702 = vtanh.pop %v2694
    %v2703 = vadd.f32 %v2695, 1.0
    %v2704 = vadd.f32 %v2696, 1.0
    %v2705 = vadd.f32 %v2697, 1.0
    %v2706 = vadd.f32 %v2698, 1.0
    %v2707 = vadd.f32 %v2699, 1.0
    %v2708 = vadd.f32 %v2700, 1.0
    %v2709 = vadd.f32 %v2701, 1.0
    %v2710 = vadd.f32 %v2702, 1.0
    %v2711 = vmul.f32 %v2647, %v2703
    %v2712 = vmul.f32 %v2648, %v2704
    %v2713 = vmul.f32 %v2649, %v2705
    %v2714 = vmul.f32 %v2650, %v2706
    %v2715 = vmul.f32 %v2651, %v2707
    %v2716 = vmul.f32 %v2652, %v2708
    %v2717 = vmul.f32 %v2653, %v2709
    %v2718 = vmul.f32 %v2654, %v2710
    %v2719 = vpack.c.bf16 %v2711, %v2711
    %v2720 = vpack.c.bf16 %v2712, %v2712
    %v2721 = vpack.c.bf16 %v2713, %v2713
    %v2722 = vpack.c.bf16 %v2714, %v2714
    %v2723 = vpack.c.bf16 %v2715, %v2715
    %v2724 = vpack.c.bf16 %v2716, %v2716
    %v2725 = vpack.c.bf16 %v2717, %v2717
    %v2726 = vpack.c.bf16 %v2718, %v2718
    %v2727 = vld [vmem:[#allocation10] sm:$0xff]
    %v2728 = vld [vmem:[#allocation10 + $0x8] sm:$0xff]
    %v2729 = vld [vmem:[#allocation10 + $0x10] sm:$0xff]
    %v2730 = vld [vmem:[#allocation10 + $0x18] sm:$0xff]
    %v2731 = vld [vmem:[#allocation10 + $0x20] sm:$0xff]
    %v2732 = vld [vmem:[#allocation10 + $0x28] sm:$0xff]
    %v2733 = vld [vmem:[#allocation10 + $0x30] sm:$0xff]
    %v2734 = vld [vmem:[#allocation10 + $0x38] sm:$0xff]
    %v2735 = vld [vmem:[#allocation10 + $0x40] sm:$0xff]
    %v2736 = vld [vmem:[#allocation10 + $0x48] sm:$0xff]
    %v2737 = vld [vmem:[#allocation10 + $0x50] sm:$0xff]
    %v2738 = vld [vmem:[#allocation10 + $0x58] sm:$0xff]
    %v2739 = vld [vmem:[#allocation10 + $0x60] sm:$0xff]
    %v2740 = vld [vmem:[#allocation10 + $0x68] sm:$0xff]
    %v2741 = vld [vmem:[#allocation10 + $0x70] sm:$0xff]
    %v2742 = vld [vmem:[#allocation10 + $0x78] sm:$0xff]
    %v2743 = vld [vmem:[#allocation10 + $0x80] sm:$0xff]
    %v2744 = vld [vmem:[#allocation10 + $0x88] sm:$0xff]
    %v2745 = vld [vmem:[#allocation10 + $0x90] sm:$0xff]
    %v2746 = vld [vmem:[#allocation10 + $0x98] sm:$0xff]
    %v2747 = vld [vmem:[#allocation10 + $0xa0] sm:$0xff]
    %v2748 = vld [vmem:[#allocation10 + $0xa8] sm:$0xff]
    %v2749 = vld [vmem:[#allocation10 + $0xb0] sm:$0xff]
    %v2750 = vld [vmem:[#allocation10 + $0xb8] sm:$0xff]
    %v2751 = vld [vmem:[#allocation10 + $0xc0] sm:$0xff]
    %v2752 = vld [vmem:[#allocation10 + $0xc8] sm:$0xff]
    %v2753 = vld [vmem:[#allocation10 + $0xd0] sm:$0xff]
    %v2754 = vld [vmem:[#allocation10 + $0xd8] sm:$0xff]
    %v2755 = vld [vmem:[#allocation10 + $0xe0] sm:$0xff]
    %v2756 = vld [vmem:[#allocation10 + $0xe8] sm:$0xff]
    %v2757 = vld [vmem:[#allocation10 + $0xf0] sm:$0xff]
    %v2758 = vld [vmem:[#allocation10 + $0xf8] sm:$0xff]
    %v2759 = vld [vmem:[#allocation10 + $0x100] sm:$0xff]
    %v2760 = vld [vmem:[#allocation10 + $0x108] sm:$0xff]
    %v2761 = vld [vmem:[#allocation10 + $0x110] sm:$0xff]
    %v2762 = vld [vmem:[#allocation10 + $0x118] sm:$0xff]
    %v2763 = vld [vmem:[#allocation10 + $0x120] sm:$0xff]
    %v2764 = vld [vmem:[#allocation10 + $0x128] sm:$0xff]
    %v2765 = vld [vmem:[#allocation10 + $0x130] sm:$0xff]
    %v2766 = vld [vmem:[#allocation10 + $0x138] sm:$0xff]
    %v2767 = vld [vmem:[#allocation10 + $0x140] sm:$0xff]
    %v2768 = vld [vmem:[#allocation10 + $0x148] sm:$0xff]
    %v2769 = vld [vmem:[#allocation10 + $0x150] sm:$0xff]
    %v2770 = vld [vmem:[#allocation10 + $0x158] sm:$0xff]
    %v2771 = vld [vmem:[#allocation10 + $0x160] sm:$0xff]
    %v2772 = vld [vmem:[#allocation10 + $0x168] sm:$0xff]
    %v2773 = vld [vmem:[#allocation10 + $0x170] sm:$0xff]
    %v2774 = vld [vmem:[#allocation10 + $0x178] sm:$0xff]
    %v2775 = vld [vmem:[#allocation10 + $0x180] sm:$0xff]
    %v2776 = vld [vmem:[#allocation10 + $0x188] sm:$0xff]
    %v2777 = vld [vmem:[#allocation10 + $0x190] sm:$0xff]
    %v2778 = vld [vmem:[#allocation10 + $0x198] sm:$0xff]
    %v2779 = vld [vmem:[#allocation10 + $0x1a0] sm:$0xff]
    %v2780 = vld [vmem:[#allocation10 + $0x1a8] sm:$0xff]
    %v2781 = vld [vmem:[#allocation10 + $0x1b0] sm:$0xff]
    %v2782 = vld [vmem:[#allocation10 + $0x1b8] sm:$0xff]
    %v2783 = vld [vmem:[#allocation10 + $0x1c0] sm:$0xff]
    %v2784 = vld [vmem:[#allocation10 + $0x1c8] sm:$0xff]
    %v2785 = vld [vmem:[#allocation10 + $0x1d0] sm:$0xff]
    %v2786 = vld [vmem:[#allocation10 + $0x1d8] sm:$0xff]
    %v2787 = vld [vmem:[#allocation10 + $0x1e0] sm:$0xff]
    %v2788 = vld [vmem:[#allocation10 + $0x1e8] sm:$0xff]
    %v2789 = vld [vmem:[#allocation10 + $0x1f0] sm:$0xff]
    %v2790 = vld [vmem:[#allocation10 + $0x1f8] sm:$0xff]
    %v2791 = vld [vmem:[#allocation10 + $0x200] sm:$0xff]
    %v2792 = vld [vmem:[#allocation10 + $0x208] sm:$0xff]
    %v2793 = vld [vmem:[#allocation10 + $0x210] sm:$0xff]
    %v2794 = vld [vmem:[#allocation10 + $0x218] sm:$0xff]
    %v2795 = vld [vmem:[#allocation10 + $0x220] sm:$0xff]
    %v2796 = vld [vmem:[#allocation10 + $0x228] sm:$0xff]
    %v2797 = vld [vmem:[#allocation10 + $0x230] sm:$0xff]
    %v2798 = vld [vmem:[#allocation10 + $0x238] sm:$0xff]
    %v2799 = vld [vmem:[#allocation10 + $0x240] sm:$0xff]
    %v2800 = vld [vmem:[#allocation10 + $0x248] sm:$0xff]
    %v2801 = vld [vmem:[#allocation10 + $0x250] sm:$0xff]
    %v2802 = vld [vmem:[#allocation10 + $0x258] sm:$0xff]
    %v2803 = vld [vmem:[#allocation10 + $0x260] sm:$0xff]
    %v2804 = vld [vmem:[#allocation10 + $0x268] sm:$0xff]
    %v2805 = vld [vmem:[#allocation10 + $0x270] sm:$0xff]
    %v2806 = vld [vmem:[#allocation10 + $0x278] sm:$0xff]
    %v2807 = vld [vmem:[#allocation10 + $0x280] sm:$0xff]
    %v2808 = vld [vmem:[#allocation10 + $0x288] sm:$0xff]
    %v2809 = vld [vmem:[#allocation10 + $0x290] sm:$0xff]
    %v2810 = vld [vmem:[#allocation10 + $0x298] sm:$0xff]
    %v2811 = vld [vmem:[#allocation10 + $0x2a0] sm:$0xff]
    %v2812 = vld [vmem:[#allocation10 + $0x2a8] sm:$0xff]
    %v2813 = vld [vmem:[#allocation10 + $0x2b0] sm:$0xff]
    %v2814 = vld [vmem:[#allocation10 + $0x2b8] sm:$0xff]
    %v2815 = vld [vmem:[#allocation10 + $0x2c0] sm:$0xff]
    %v2816 = vld [vmem:[#allocation10 + $0x2c8] sm:$0xff]
    %v2817 = vld [vmem:[#allocation10 + $0x2d0] sm:$0xff]
    %v2818 = vld [vmem:[#allocation10 + $0x2d8] sm:$0xff]
    %v2819 = vld [vmem:[#allocation10 + $0x2e0] sm:$0xff]
    %v2820 = vld [vmem:[#allocation10 + $0x2e8] sm:$0xff]
    %v2821 = vld [vmem:[#allocation10 + $0x2f0] sm:$0xff]
    %v2822 = vld [vmem:[#allocation10 + $0x2f8] sm:$0xff]
    %v2823 = vld [vmem:[#allocation10 + $0x300] sm:$0xff]
    %v2824 = vld [vmem:[#allocation10 + $0x308] sm:$0xff]
    %v2825 = vld [vmem:[#allocation10 + $0x310] sm:$0xff]
    %v2826 = vld [vmem:[#allocation10 + $0x318] sm:$0xff]
    %v2827 = vld [vmem:[#allocation10 + $0x320] sm:$0xff]
    %v2828 = vld [vmem:[#allocation10 + $0x328] sm:$0xff]
    %v2829 = vld [vmem:[#allocation10 + $0x330] sm:$0xff]
    %v2830 = vld [vmem:[#allocation10 + $0x338] sm:$0xff]
    %v2831 = vld [vmem:[#allocation10 + $0x340] sm:$0xff]
    %v2832 = vld [vmem:[#allocation10 + $0x348] sm:$0xff]
    %v2833 = vld [vmem:[#allocation10 + $0x350] sm:$0xff]
    %v2834 = vld [vmem:[#allocation10 + $0x358] sm:$0xff]
    %v2835 = vld [vmem:[#allocation10 + $0x360] sm:$0xff]
    %v2836 = vld [vmem:[#allocation10 + $0x368] sm:$0xff]
    %v2837 = vld [vmem:[#allocation10 + $0x370] sm:$0xff]
    %v2838 = vld [vmem:[#allocation10 + $0x378] sm:$0xff]
    %v2839 = vld [vmem:[#allocation10 + $0x380] sm:$0xff]
    %v2840 = vld [vmem:[#allocation10 + $0x388] sm:$0xff]
    %v2841 = vld [vmem:[#allocation10 + $0x390] sm:$0xff]
    %v2842 = vld [vmem:[#allocation10 + $0x398] sm:$0xff]
    %v2843 = vld [vmem:[#allocation10 + $0x3a0] sm:$0xff]
    %v2844 = vld [vmem:[#allocation10 + $0x3a8] sm:$0xff]
    %v2845 = vld [vmem:[#allocation10 + $0x3b0] sm:$0xff]
    %v2846 = vld [vmem:[#allocation10 + $0x3b8] sm:$0xff]
    %v2847 = vld [vmem:[#allocation10 + $0x3c0] sm:$0xff]
    %v2848 = vld [vmem:[#allocation10 + $0x3c8] sm:$0xff]
    %v2849 = vld [vmem:[#allocation10 + $0x3d0] sm:$0xff]
    %v2850 = vld [vmem:[#allocation10 + $0x3d8] sm:$0xff]
    %v2851 = vld [vmem:[#allocation10 + $0x3e0] sm:$0xff]
    %v2852 = vld [vmem:[#allocation10 + $0x3e8] sm:$0xff]
    %v2853 = vld [vmem:[#allocation10 + $0x3f0] sm:$0xff]
    %v2854 = vld [vmem:[#allocation10 + $0x3f8] sm:$0xff]
    %v2855 = vld [vmem:[#allocation10 + $0x400] sm:$0xff]
    %v2856 = vld [vmem:[#allocation10 + $0x408] sm:$0xff]
    %v2857 = vld [vmem:[#allocation10 + $0x410] sm:$0xff]
    %v2858 = vld [vmem:[#allocation10 + $0x418] sm:$0xff]
    %v2859 = vld [vmem:[#allocation10 + $0x420] sm:$0xff]
    %v2860 = vld [vmem:[#allocation10 + $0x428] sm:$0xff]
    %v2861 = vld [vmem:[#allocation10 + $0x430] sm:$0xff]
    %v2862 = vld [vmem:[#allocation10 + $0x438] sm:$0xff]
    %v2863 = vld [vmem:[#allocation10 + $0x440] sm:$0xff]
    %v2864 = vld [vmem:[#allocation10 + $0x448] sm:$0xff]
    %v2865 = vld [vmem:[#allocation10 + $0x450] sm:$0xff]
    %v2866 = vld [vmem:[#allocation10 + $0x458] sm:$0xff]
    %v2867 = vld [vmem:[#allocation10 + $0x460] sm:$0xff]
    %v2868 = vld [vmem:[#allocation10 + $0x468] sm:$0xff]
    %v2869 = vld [vmem:[#allocation10 + $0x470] sm:$0xff]
    %v2870 = vld [vmem:[#allocation10 + $0x478] sm:$0xff]
    %v2871 = vld [vmem:[#allocation10 + $0x480] sm:$0xff]
    %v2872 = vld [vmem:[#allocation10 + $0x488] sm:$0xff]
    %v2873 = vld [vmem:[#allocation10 + $0x490] sm:$0xff]
    %v2874 = vld [vmem:[#allocation10 + $0x498] sm:$0xff]
    %v2875 = vld [vmem:[#allocation10 + $0x4a0] sm:$0xff]
    %v2876 = vld [vmem:[#allocation10 + $0x4a8] sm:$0xff]
    %v2877 = vld [vmem:[#allocation10 + $0x4b0] sm:$0xff]
    %v2878 = vld [vmem:[#allocation10 + $0x4b8] sm:$0xff]
    %v2879 = vld [vmem:[#allocation10 + $0x4c0] sm:$0xff]
    %v2880 = vld [vmem:[#allocation10 + $0x4c8] sm:$0xff]
    %v2881 = vld [vmem:[#allocation10 + $0x4d0] sm:$0xff]
    %v2882 = vld [vmem:[#allocation10 + $0x4d8] sm:$0xff]
    %v2883 = vld [vmem:[#allocation10 + $0x4e0] sm:$0xff]
    %v2884 = vld [vmem:[#allocation10 + $0x4e8] sm:$0xff]
    %v2885 = vld [vmem:[#allocation10 + $0x4f0] sm:$0xff]
    %v2886 = vld [vmem:[#allocation10 + $0x4f8] sm:$0xff]
    %v2887 = vld [vmem:[#allocation10 + $0x500] sm:$0xff]
    %v2888 = vld [vmem:[#allocation10 + $0x508] sm:$0xff]
    %v2889 = vld [vmem:[#allocation10 + $0x510] sm:$0xff]
    %v2890 = vld [vmem:[#allocation10 + $0x518] sm:$0xff]
    %v2891 = vld [vmem:[#allocation10 + $0x520] sm:$0xff]
    %v2892 = vld [vmem:[#allocation10 + $0x528] sm:$0xff]
    %v2893 = vld [vmem:[#allocation10 + $0x530] sm:$0xff]
    %v2894 = vld [vmem:[#allocation10 + $0x538] sm:$0xff]
    %v2895 = vld [vmem:[#allocation10 + $0x540] sm:$0xff]
    %v2896 = vld [vmem:[#allocation10 + $0x548] sm:$0xff]
    %v2897 = vld [vmem:[#allocation10 + $0x550] sm:$0xff]
    %v2898 = vld [vmem:[#allocation10 + $0x558] sm:$0xff]
    %v2899 = vld [vmem:[#allocation10 + $0x560] sm:$0xff]
    %v2900 = vld [vmem:[#allocation10 + $0x568] sm:$0xff]
    %v2901 = vld [vmem:[#allocation10 + $0x570] sm:$0xff]
    %v2902 = vld [vmem:[#allocation10 + $0x578] sm:$0xff]
    %v2903 = vld [vmem:[#allocation10 + $0x580] sm:$0xff]
    %v2904 = vld [vmem:[#allocation10 + $0x588] sm:$0xff]
    %v2905 = vld [vmem:[#allocation10 + $0x590] sm:$0xff]
    %v2906 = vld [vmem:[#allocation10 + $0x598] sm:$0xff]
    %v2907 = vld [vmem:[#allocation10 + $0x5a0] sm:$0xff]
    %v2908 = vld [vmem:[#allocation10 + $0x5a8] sm:$0xff]
    %v2909 = vld [vmem:[#allocation10 + $0x5b0] sm:$0xff]
    %v2910 = vld [vmem:[#allocation10 + $0x5b8] sm:$0xff]
    %v2911 = vld [vmem:[#allocation10 + $0x5c0] sm:$0xff]
    %v2912 = vld [vmem:[#allocation10 + $0x5c8] sm:$0xff]
    %v2913 = vld [vmem:[#allocation10 + $0x5d0] sm:$0xff]
    %v2914 = vld [vmem:[#allocation10 + $0x5d8] sm:$0xff]
    %v2915 = vld [vmem:[#allocation10 + $0x5e0] sm:$0xff]
    %v2916 = vld [vmem:[#allocation10 + $0x5e8] sm:$0xff]
    %v2917 = vld [vmem:[#allocation10 + $0x5f0] sm:$0xff]
    %v2918 = vld [vmem:[#allocation10 + $0x5f8] sm:$0xff]
    %v2919 = vld [vmem:[#allocation10 + $0x600] sm:$0xff]
    %v2920 = vld [vmem:[#allocation10 + $0x608] sm:$0xff]
    %v2921 = vld [vmem:[#allocation10 + $0x610] sm:$0xff]
    %v2922 = vld [vmem:[#allocation10 + $0x618] sm:$0xff]
    %v2923 = vld [vmem:[#allocation10 + $0x620] sm:$0xff]
    %v2924 = vld [vmem:[#allocation10 + $0x628] sm:$0xff]
    %v2925 = vld [vmem:[#allocation10 + $0x630] sm:$0xff]
    %v2926 = vld [vmem:[#allocation10 + $0x638] sm:$0xff]
    %v2927 = vld [vmem:[#allocation10 + $0x640] sm:$0xff]
    %v2928 = vld [vmem:[#allocation10 + $0x648] sm:$0xff]
    %v2929 = vld [vmem:[#allocation10 + $0x650] sm:$0xff]
    %v2930 = vld [vmem:[#allocation10 + $0x658] sm:$0xff]
    %v2931 = vld [vmem:[#allocation10 + $0x660] sm:$0xff]
    %v2932 = vld [vmem:[#allocation10 + $0x668] sm:$0xff]
    %v2933 = vld [vmem:[#allocation10 + $0x670] sm:$0xff]
    %v2934 = vld [vmem:[#allocation10 + $0x678] sm:$0xff]
    %v2935 = vld [vmem:[#allocation10 + $0x680] sm:$0xff]
    %v2936 = vld [vmem:[#allocation10 + $0x688] sm:$0xff]
    %v2937 = vld [vmem:[#allocation10 + $0x690] sm:$0xff]
    %v2938 = vld [vmem:[#allocation10 + $0x698] sm:$0xff]
    %v2939 = vld [vmem:[#allocation10 + $0x6a0] sm:$0xff]
    %v2940 = vld [vmem:[#allocation10 + $0x6a8] sm:$0xff]
    %v2941 = vld [vmem:[#allocation10 + $0x6b0] sm:$0xff]
    %v2942 = vld [vmem:[#allocation10 + $0x6b8] sm:$0xff]
    %v2943 = vld [vmem:[#allocation10 + $0x6c0] sm:$0xff]
    %v2944 = vld [vmem:[#allocation10 + $0x6c8] sm:$0xff]
    %v2945 = vld [vmem:[#allocation10 + $0x6d0] sm:$0xff]
    %v2946 = vld [vmem:[#allocation10 + $0x6d8] sm:$0xff]
    %v2947 = vld [vmem:[#allocation10 + $0x6e0] sm:$0xff]
    %v2948 = vld [vmem:[#allocation10 + $0x6e8] sm:$0xff]
    %v2949 = vld [vmem:[#allocation10 + $0x6f0] sm:$0xff]
    %v2950 = vld [vmem:[#allocation10 + $0x6f8] sm:$0xff]
    %v2951 = vld [vmem:[#allocation10 + $0x700] sm:$0xff]
    %v2952 = vld [vmem:[#allocation10 + $0x708] sm:$0xff]
    %v2953 = vld [vmem:[#allocation10 + $0x710] sm:$0xff]
    %v2954 = vld [vmem:[#allocation10 + $0x718] sm:$0xff]
    %v2955 = vld [vmem:[#allocation10 + $0x720] sm:$0xff]
    %v2956 = vld [vmem:[#allocation10 + $0x728] sm:$0xff]
    %v2957 = vld [vmem:[#allocation10 + $0x730] sm:$0xff]
    %v2958 = vld [vmem:[#allocation10 + $0x738] sm:$0xff]
    %v2959 = vld [vmem:[#allocation10 + $0x740] sm:$0xff]
    %v2960 = vld [vmem:[#allocation10 + $0x748] sm:$0xff]
    %v2961 = vld [vmem:[#allocation10 + $0x750] sm:$0xff]
    %v2962 = vld [vmem:[#allocation10 + $0x758] sm:$0xff]
    %v2963 = vld [vmem:[#allocation10 + $0x760] sm:$0xff]
    %v2964 = vld [vmem:[#allocation10 + $0x768] sm:$0xff]
    %v2965 = vld [vmem:[#allocation10 + $0x770] sm:$0xff]
    %v2966 = vld [vmem:[#allocation10 + $0x778] sm:$0xff]
    %v2967 = vld [vmem:[#allocation10 + $0x780] sm:$0xff]
    %v2968 = vld [vmem:[#allocation10 + $0x788] sm:$0xff]
    %v2969 = vld [vmem:[#allocation10 + $0x790] sm:$0xff]
    %v2970 = vld [vmem:[#allocation10 + $0x798] sm:$0xff]
    %v2971 = vld [vmem:[#allocation10 + $0x7a0] sm:$0xff]
    %v2972 = vld [vmem:[#allocation10 + $0x7a8] sm:$0xff]
    %v2973 = vld [vmem:[#allocation10 + $0x7b0] sm:$0xff]
    %v2974 = vld [vmem:[#allocation10 + $0x7b8] sm:$0xff]
    %v2975 = vld [vmem:[#allocation10 + $0x7c0] sm:$0xff]
    %v2976 = vld [vmem:[#allocation10 + $0x7c8] sm:$0xff]
    %v2977 = vld [vmem:[#allocation10 + $0x7d0] sm:$0xff]
    %v2978 = vld [vmem:[#allocation10 + $0x7d8] sm:$0xff]
    %v2979 = vld [vmem:[#allocation10 + $0x7e0] sm:$0xff]
    %v2980 = vld [vmem:[#allocation10 + $0x7e8] sm:$0xff]
    %v2981 = vld [vmem:[#allocation10 + $0x7f0] sm:$0xff]
    %v2982 = vld [vmem:[#allocation10 + $0x7f8] sm:$0xff]
    %v2983 = vld [vmem:[%s6] sm:$0xf]
    %v2985 = vperm.slane %v2983, 0
    %v2986 = vperm.slane %v2983, 1
    %v2987 = vperm.slane %v2983, 2
    %v2988 = vperm.slane %v2983, 3
    %v3249 = vunpack.c.l.b16 %v2727
    %v3250 = vunpack.c.h.b16 %v2727
    %v3251 = vunpack.c.l.b16 %v2728
    %v3252 = vunpack.c.h.b16 %v2728
    %v3253 = vunpack.c.l.b16 %v2729
    %v3254 = vunpack.c.h.b16 %v2729
    %v3255 = vunpack.c.l.b16 %v2730
    %v3256 = vunpack.c.h.b16 %v2730
    %v3257 = vunpack.c.l.b16 %v2731
    %v3258 = vunpack.c.h.b16 %v2731
    %v3259 = vunpack.c.l.b16 %v2732
    %v3260 = vunpack.c.h.b16 %v2732
    %v3261 = vunpack.c.l.b16 %v2733
    %v3262 = vunpack.c.h.b16 %v2733
    %v3263 = vunpack.c.l.b16 %v2734
    %v3264 = vunpack.c.h.b16 %v2734
    %v3265 = vunpack.c.l.b16 %v2735
    %v3266 = vunpack.c.h.b16 %v2735
    %v3267 = vunpack.c.l.b16 %v2736
    %v3268 = vunpack.c.h.b16 %v2736
    %v3269 = vunpack.c.l.b16 %v2737
    %v3270 = vunpack.c.h.b16 %v2737
    %v3271 = vunpack.c.l.b16 %v2738
    %v3272 = vunpack.c.h.b16 %v2738
    %v3273 = vunpack.c.l.b16 %v2739
    %v3274 = vunpack.c.h.b16 %v2739
    %v3275 = vunpack.c.l.b16 %v2740
    %v3276 = vunpack.c.h.b16 %v2740
    %v3277 = vunpack.c.l.b16 %v2741
    %v3278 = vunpack.c.h.b16 %v2741
    %v3279 = vunpack.c.l.b16 %v2742
    %v3280 = vunpack.c.h.b16 %v2742
    %v3281 = vunpack.c.l.b16 %v2743
    %v3282 = vunpack.c.h.b16 %v2743
    %v3283 = vunpack.c.l.b16 %v2744
    %v3284 = vunpack.c.h.b16 %v2744
    %v3285 = vunpack.c.l.b16 %v2745
    %v3286 = vunpack.c.h.b16 %v2745
    %v3287 = vunpack.c.l.b16 %v2746
    %v3288 = vunpack.c.h.b16 %v2746
    %v3289 = vunpack.c.l.b16 %v2747
    %v3290 = vunpack.c.h.b16 %v2747
    %v3291 = vunpack.c.l.b16 %v2748
    %v3292 = vunpack.c.h.b16 %v2748
    %v3293 = vunpack.c.l.b16 %v2749
    %v3294 = vunpack.c.h.b16 %v2749
    %v3295 = vunpack.c.l.b16 %v2750
    %v3296 = vunpack.c.h.b16 %v2750
    %v3297 = vunpack.c.l.b16 %v2751
    %v3298 = vunpack.c.h.b16 %v2751
    %v3299 = vunpack.c.l.b16 %v2752
    %v3300 = vunpack.c.h.b16 %v2752
    %v3301 = vunpack.c.l.b16 %v2753
    %v3302 = vunpack.c.h.b16 %v2753
    %v3303 = vunpack.c.l.b16 %v2754
    %v3304 = vunpack.c.h.b16 %v2754
    %v3305 = vunpack.c.l.b16 %v2755
    %v3306 = vunpack.c.h.b16 %v2755
    %v3307 = vunpack.c.l.b16 %v2756
    %v3308 = vunpack.c.h.b16 %v2756
    %v3309 = vunpack.c.l.b16 %v2757
    %v3310 = vunpack.c.h.b16 %v2757
    %v3311 = vunpack.c.l.b16 %v2758
    %v3312 = vunpack.c.h.b16 %v2758
    %v3313 = vunpack.c.l.b16 %v2759
    %v3314 = vunpack.c.h.b16 %v2759
    %v3315 = vunpack.c.l.b16 %v2760
    %v3316 = vunpack.c.h.b16 %v2760
    %v3317 = vunpack.c.l.b16 %v2761
    %v3318 = vunpack.c.h.b16 %v2761
    %v3319 = vunpack.c.l.b16 %v2762
    %v3320 = vunpack.c.h.b16 %v2762
    %v3321 = vunpack.c.l.b16 %v2763
    %v3322 = vunpack.c.h.b16 %v2763
    %v3323 = vunpack.c.l.b16 %v2764
    %v3324 = vunpack.c.h.b16 %v2764
    %v3325 = vunpack.c.l.b16 %v2765
    %v3326 = vunpack.c.h.b16 %v2765
    %v3327 = vunpack.c.l.b16 %v2766
    %v3328 = vunpack.c.h.b16 %v2766
    %v3329 = vunpack.c.l.b16 %v2767
    %v3330 = vunpack.c.h.b16 %v2767
    %v3331 = vunpack.c.l.b16 %v2768
    %v3332 = vunpack.c.h.b16 %v2768
    %v3333 = vunpack.c.l.b16 %v2769
    %v3334 = vunpack.c.h.b16 %v2769
    %v3335 = vunpack.c.l.b16 %v2770
    %v3336 = vunpack.c.h.b16 %v2770
    %v3337 = vunpack.c.l.b16 %v2771
    %v3338 = vunpack.c.h.b16 %v2771
    %v3339 = vunpack.c.l.b16 %v2772
    %v3340 = vunpack.c.h.b16 %v2772
    %v3341 = vunpack.c.l.b16 %v2773
    %v3342 = vunpack.c.h.b16 %v2773
    %v3343 = vunpack.c.l.b16 %v2774
    %v3344 = vunpack.c.h.b16 %v2774
    %v3345 = vunpack.c.l.b16 %v2775
    %v3346 = vunpack.c.h.b16 %v2775
    %v3347 = vunpack.c.l.b16 %v2776
    %v3348 = vunpack.c.h.b16 %v2776
    %v3349 = vunpack.c.l.b16 %v2777
    %v3350 = vunpack.c.h.b16 %v2777
    %v3351 = vunpack.c.l.b16 %v2778
    %v3352 = vunpack.c.h.b16 %v2778
    %v3353 = vunpack.c.l.b16 %v2779
    %v3354 = vunpack.c.h.b16 %v2779
    %v3355 = vunpack.c.l.b16 %v2780
    %v3356 = vunpack.c.h.b16 %v2780
    %v3357 = vunpack.c.l.b16 %v2781
    %v3358 = vunpack.c.h.b16 %v2781
    %v3359 = vunpack.c.l.b16 %v2782
    %v3360 = vunpack.c.h.b16 %v2782
    %v3361 = vunpack.c.l.b16 %v2783
    %v3362 = vunpack.c.h.b16 %v2783
    %v3363 = vunpack.c.l.b16 %v2784
    %v3364 = vunpack.c.h.b16 %v2784
    %v3365 = vunpack.c.l.b16 %v2785
    %v3366 = vunpack.c.h.b16 %v2785
    %v3367 = vunpack.c.l.b16 %v2786
    %v3368 = vunpack.c.h.b16 %v2786
    %v3369 = vunpack.c.l.b16 %v2787
    %v3370 = vunpack.c.h.b16 %v2787
    %v3371 = vunpack.c.l.b16 %v2788
    %v3372 = vunpack.c.h.b16 %v2788
    %v3373 = vunpack.c.l.b16 %v2789
    %v3374 = vunpack.c.h.b16 %v2789
    %v3375 = vunpack.c.l.b16 %v2790
    %v3376 = vunpack.c.h.b16 %v2790
    %v3377 = vunpack.c.l.b16 %v2791
    %v3378 = vunpack.c.h.b16 %v2791
    %v3379 = vunpack.c.l.b16 %v2792
    %v3380 = vunpack.c.h.b16 %v2792
    %v3381 = vunpack.c.l.b16 %v2793
    %v3382 = vunpack.c.h.b16 %v2793
    %v3383 = vunpack.c.l.b16 %v2794
    %v3384 = vunpack.c.h.b16 %v2794
    %v3385 = vunpack.c.l.b16 %v2795
    %v3386 = vunpack.c.h.b16 %v2795
    %v3387 = vunpack.c.l.b16 %v2796
    %v3388 = vunpack.c.h.b16 %v2796
    %v3389 = vunpack.c.l.b16 %v2797
    %v3390 = vunpack.c.h.b16 %v2797
    %v3391 = vunpack.c.l.b16 %v2798
    %v3392 = vunpack.c.h.b16 %v2798
    %v3393 = vunpack.c.l.b16 %v2799
    %v3394 = vunpack.c.h.b16 %v2799
    %v3395 = vunpack.c.l.b16 %v2800
    %v3396 = vunpack.c.h.b16 %v2800
    %v3397 = vunpack.c.l.b16 %v2801
    %v3398 = vunpack.c.h.b16 %v2801
    %v3399 = vunpack.c.l.b16 %v2802
    %v3400 = vunpack.c.h.b16 %v2802
    %v3401 = vunpack.c.l.b16 %v2803
    %v3402 = vunpack.c.h.b16 %v2803
    %v3403 = vunpack.c.l.b16 %v2804
    %v3404 = vunpack.c.h.b16 %v2804
    %v3405 = vunpack.c.l.b16 %v2805
    %v3406 = vunpack.c.h.b16 %v2805
    %v3407 = vunpack.c.l.b16 %v2806
    %v3408 = vunpack.c.h.b16 %v2806
    %v3409 = vunpack.c.l.b16 %v2807
    %v3410 = vunpack.c.h.b16 %v2807
    %v3411 = vunpack.c.l.b16 %v2808
    %v3412 = vunpack.c.h.b16 %v2808
    %v3413 = vunpack.c.l.b16 %v2809
    %v3414 = vunpack.c.h.b16 %v2809
    %v3415 = vunpack.c.l.b16 %v2810
    %v3416 = vunpack.c.h.b16 %v2810
    %v3417 = vunpack.c.l.b16 %v2811
    %v3418 = vunpack.c.h.b16 %v2811
    %v3419 = vunpack.c.l.b16 %v2812
    %v3420 = vunpack.c.h.b16 %v2812
    %v3421 = vunpack.c.l.b16 %v2813
    %v3422 = vunpack.c.h.b16 %v2813
    %v3423 = vunpack.c.l.b16 %v2814
    %v3424 = vunpack.c.h.b16 %v2814
    %v3425 = vunpack.c.l.b16 %v2815
    %v3426 = vunpack.c.h.b16 %v2815
    %v3427 = vunpack.c.l.b16 %v2816
    %v3428 = vunpack.c.h.b16 %v2816
    %v3429 = vunpack.c.l.b16 %v2817
    %v3430 = vunpack.c.h.b16 %v2817
    %v3431 = vunpack.c.l.b16 %v2818
    %v3432 = vunpack.c.h.b16 %v2818
    %v3433 = vunpack.c.l.b16 %v2819
    %v3434 = vunpack.c.h.b16 %v2819
    %v3435 = vunpack.c.l.b16 %v2820
    %v3436 = vunpack.c.h.b16 %v2820
    %v3437 = vunpack.c.l.b16 %v2821
    %v3438 = vunpack.c.h.b16 %v2821
    %v3439 = vunpack.c.l.b16 %v2822
    %v3440 = vunpack.c.h.b16 %v2822
    %v3441 = vunpack.c.l.b16 %v2823
    %v3442 = vunpack.c.h.b16 %v2823
    %v3443 = vunpack.c.l.b16 %v2824
    %v3444 = vunpack.c.h.b16 %v2824
    %v3445 = vunpack.c.l.b16 %v2825
    %v3446 = vunpack.c.h.b16 %v2825
    %v3447 = vunpack.c.l.b16 %v2826
    %v3448 = vunpack.c.h.b16 %v2826
    %v3449 = vunpack.c.l.b16 %v2827
    %v3450 = vunpack.c.h.b16 %v2827
    %v3451 = vunpack.c.l.b16 %v2828
    %v3452 = vunpack.c.h.b16 %v2828
    %v3453 = vunpack.c.l.b16 %v2829
    %v3454 = vunpack.c.h.b16 %v2829
    %v3455 = vunpack.c.l.b16 %v2830
    %v3456 = vunpack.c.h.b16 %v2830
    %v3457 = vunpack.c.l.b16 %v2831
    %v3458 = vunpack.c.h.b16 %v2831
    %v3459 = vunpack.c.l.b16 %v2832
    %v3460 = vunpack.c.h.b16 %v2832
    %v3461 = vunpack.c.l.b16 %v2833
    %v3462 = vunpack.c.h.b16 %v2833
    %v3463 = vunpack.c.l.b16 %v2834
    %v3464 = vunpack.c.h.b16 %v2834
    %v3465 = vunpack.c.l.b16 %v2835
    %v3466 = vunpack.c.h.b16 %v2835
    %v3467 = vunpack.c.l.b16 %v2836
    %v3468 = vunpack.c.h.b16 %v2836
    %v3469 = vunpack.c.l.b16 %v2837
    %v3470 = vunpack.c.h.b16 %v2837
    %v3471 = vunpack.c.l.b16 %v2838
    %v3472 = vunpack.c.h.b16 %v2838
    %v3473 = vunpack.c.l.b16 %v2839
    %v3474 = vunpack.c.h.b16 %v2839
    %v3475 = vunpack.c.l.b16 %v2840
    %v3476 = vunpack.c.h.b16 %v2840
    %v3477 = vunpack.c.l.b16 %v2841
    %v3478 = vunpack.c.h.b16 %v2841
    %v3479 = vunpack.c.l.b16 %v2842
    %v3480 = vunpack.c.h.b16 %v2842
    %v3481 = vunpack.c.l.b16 %v2843
    %v3482 = vunpack.c.h.b16 %v2843
    %v3483 = vunpack.c.l.b16 %v2844
    %v3484 = vunpack.c.h.b16 %v2844
    %v3485 = vunpack.c.l.b16 %v2845
    %v3486 = vunpack.c.h.b16 %v2845
    %v3487 = vunpack.c.l.b16 %v2846
    %v3488 = vunpack.c.h.b16 %v2846
    %v3489 = vunpack.c.l.b16 %v2847
    %v3490 = vunpack.c.h.b16 %v2847
    %v3491 = vunpack.c.l.b16 %v2848
    %v3492 = vunpack.c.h.b16 %v2848
    %v3493 = vunpack.c.l.b16 %v2849
    %v3494 = vunpack.c.h.b16 %v2849
    %v3495 = vunpack.c.l.b16 %v2850
    %v3496 = vunpack.c.h.b16 %v2850
    %v3497 = vunpack.c.l.b16 %v2851
    %v3498 = vunpack.c.h.b16 %v2851
    %v3499 = vunpack.c.l.b16 %v2852
    %v3500 = vunpack.c.h.b16 %v2852
    %v3501 = vunpack.c.l.b16 %v2853
    %v3502 = vunpack.c.h.b16 %v2853
    %v3503 = vunpack.c.l.b16 %v2854
    %v3504 = vunpack.c.h.b16 %v2854
    %v3505 = vunpack.c.l.b16 %v2855
    %v3506 = vunpack.c.h.b16 %v2855
    %v3507 = vunpack.c.l.b16 %v2856
    %v3508 = vunpack.c.h.b16 %v2856
    %v3509 = vunpack.c.l.b16 %v2857
    %v3510 = vunpack.c.h.b16 %v2857
    %v3511 = vunpack.c.l.b16 %v2858
    %v3512 = vunpack.c.h.b16 %v2858
    %v3513 = vunpack.c.l.b16 %v2859
    %v3514 = vunpack.c.h.b16 %v2859
    %v3515 = vunpack.c.l.b16 %v2860
    %v3516 = vunpack.c.h.b16 %v2860
    %v3517 = vunpack.c.l.b16 %v2861
    %v3518 = vunpack.c.h.b16 %v2861
    %v3519 = vunpack.c.l.b16 %v2862
    %v3520 = vunpack.c.h.b16 %v2862
    %v3521 = vunpack.c.l.b16 %v2863
    %v3522 = vunpack.c.h.b16 %v2863
    %v3523 = vunpack.c.l.b16 %v2864
    %v3524 = vunpack.c.h.b16 %v2864
    %v3525 = vunpack.c.l.b16 %v2865
    %v3526 = vunpack.c.h.b16 %v2865
    %v3527 = vunpack.c.l.b16 %v2866
    %v3528 = vunpack.c.h.b16 %v2866
    %v3529 = vunpack.c.l.b16 %v2867
    %v3530 = vunpack.c.h.b16 %v2867
    %v3531 = vunpack.c.l.b16 %v2868
    %v3532 = vunpack.c.h.b16 %v2868
    %v3533 = vunpack.c.l.b16 %v2869
    %v3534 = vunpack.c.h.b16 %v2869
    %v3535 = vunpack.c.l.b16 %v2870
    %v3536 = vunpack.c.h.b16 %v2870
    %v3537 = vunpack.c.l.b16 %v2871
    %v3538 = vunpack.c.h.b16 %v2871
    %v3539 = vunpack.c.l.b16 %v2872
    %v3540 = vunpack.c.h.b16 %v2872
    %v3541 = vunpack.c.l.b16 %v2873
    %v3542 = vunpack.c.h.b16 %v2873
    %v3543 = vunpack.c.l.b16 %v2874
    %v3544 = vunpack.c.h.b16 %v2874
    %v3545 = vunpack.c.l.b16 %v2875
    %v3546 = vunpack.c.h.b16 %v2875
    %v3547 = vunpack.c.l.b16 %v2876
    %v3548 = vunpack.c.h.b16 %v2876
    %v3549 = vunpack.c.l.b16 %v2877
    %v3550 = vunpack.c.h.b16 %v2877
    %v3551 = vunpack.c.l.b16 %v2878
    %v3552 = vunpack.c.h.b16 %v2878
    %v3553 = vunpack.c.l.b16 %v2879
    %v3554 = vunpack.c.h.b16 %v2879
    %v3555 = vunpack.c.l.b16 %v2880
    %v3556 = vunpack.c.h.b16 %v2880
    %v3557 = vunpack.c.l.b16 %v2881
    %v3558 = vunpack.c.h.b16 %v2881
    %v3559 = vunpack.c.l.b16 %v2882
    %v3560 = vunpack.c.h.b16 %v2882
    %v3561 = vunpack.c.l.b16 %v2883
    %v3562 = vunpack.c.h.b16 %v2883
    %v3563 = vunpack.c.l.b16 %v2884
    %v3564 = vunpack.c.h.b16 %v2884
    %v3565 = vunpack.c.l.b16 %v2885
    %v3566 = vunpack.c.h.b16 %v2885
    %v3567 = vunpack.c.l.b16 %v2886
    %v3568 = vunpack.c.h.b16 %v2886
    %v3569 = vunpack.c.l.b16 %v2887
    %v3570 = vunpack.c.h.b16 %v2887
    %v3571 = vunpack.c.l.b16 %v2888
    %v3572 = vunpack.c.h.b16 %v2888
    %v3573 = vunpack.c.l.b16 %v2889
    %v3574 = vunpack.c.h.b16 %v2889
    %v3575 = vunpack.c.l.b16 %v2890
    %v3576 = vunpack.c.h.b16 %v2890
    %v3577 = vunpack.c.l.b16 %v2891
    %v3578 = vunpack.c.h.b16 %v2891
    %v3579 = vunpack.c.l.b16 %v2892
    %v3580 = vunpack.c.h.b16 %v2892
    %v3581 = vunpack.c.l.b16 %v2893
    %v3582 = vunpack.c.h.b16 %v2893
    %v3583 = vunpack.c.l.b16 %v2894
    %v3584 = vunpack.c.h.b16 %v2894
    %v3585 = vunpack.c.l.b16 %v2895
    %v3586 = vunpack.c.h.b16 %v2895
    %v3587 = vunpack.c.l.b16 %v2896
    %v3588 = vunpack.c.h.b16 %v2896
    %v3589 = vunpack.c.l.b16 %v2897
    %v3590 = vunpack.c.h.b16 %v2897
    %v3591 = vunpack.c.l.b16 %v2898
    %v3592 = vunpack.c.h.b16 %v2898
    %v3593 = vunpack.c.l.b16 %v2899
    %v3594 = vunpack.c.h.b16 %v2899
    %v3595 = vunpack.c.l.b16 %v2900
    %v3596 = vunpack.c.h.b16 %v2900
    %v3597 = vunpack.c.l.b16 %v2901
    %v3598 = vunpack.c.h.b16 %v2901
    %v3599 = vunpack.c.l.b16 %v2902
    %v3600 = vunpack.c.h.b16 %v2902
    %v3601 = vunpack.c.l.b16 %v2903
    %v3602 = vunpack.c.h.b16 %v2903
    %v3603 = vunpack.c.l.b16 %v2904
    %v3604 = vunpack.c.h.b16 %v2904
    %v3605 = vunpack.c.l.b16 %v2905
    %v3606 = vunpack.c.h.b16 %v2905
    %v3607 = vunpack.c.l.b16 %v2906
    %v3608 = vunpack.c.h.b16 %v2906
    %v3609 = vunpack.c.l.b16 %v2907
    %v3610 = vunpack.c.h.b16 %v2907
    %v3611 = vunpack.c.l.b16 %v2908
    %v3612 = vunpack.c.h.b16 %v2908
    %v3613 = vunpack.c.l.b16 %v2909
    %v3614 = vunpack.c.h.b16 %v2909
    %v3615 = vunpack.c.l.b16 %v2910
    %v3616 = vunpack.c.h.b16 %v2910
    %v3617 = vunpack.c.l.b16 %v2911
    %v3618 = vunpack.c.h.b16 %v2911
    %v3619 = vunpack.c.l.b16 %v2912
    %v3620 = vunpack.c.h.b16 %v2912
    %v3621 = vunpack.c.l.b16 %v2913
    %v3622 = vunpack.c.h.b16 %v2913
    %v3623 = vunpack.c.l.b16 %v2914
    %v3624 = vunpack.c.h.b16 %v2914
    %v3625 = vunpack.c.l.b16 %v2915
    %v3626 = vunpack.c.h.b16 %v2915
    %v3627 = vunpack.c.l.b16 %v2916
    %v3628 = vunpack.c.h.b16 %v2916
    %v3629 = vunpack.c.l.b16 %v2917
    %v3630 = vunpack.c.h.b16 %v2917
    %v3631 = vunpack.c.l.b16 %v2918
    %v3632 = vunpack.c.h.b16 %v2918
    %v3633 = vunpack.c.l.b16 %v2919
    %v3634 = vunpack.c.h.b16 %v2919
    %v3635 = vunpack.c.l.b16 %v2920
    %v3636 = vunpack.c.h.b16 %v2920
    %v3637 = vunpack.c.l.b16 %v2921
    %v3638 = vunpack.c.h.b16 %v2921
    %v3639 = vunpack.c.l.b16 %v2922
    %v3640 = vunpack.c.h.b16 %v2922
    %v3641 = vunpack.c.l.b16 %v2923
    %v3642 = vunpack.c.h.b16 %v2923
    %v3643 = vunpack.c.l.b16 %v2924
    %v3644 = vunpack.c.h.b16 %v2924
    %v3645 = vunpack.c.l.b16 %v2925
    %v3646 = vunpack.c.h.b16 %v2925
    %v3647 = vunpack.c.l.b16 %v2926
    %v3648 = vunpack.c.h.b16 %v2926
    %v3649 = vunpack.c.l.b16 %v2927
    %v3650 = vunpack.c.h.b16 %v2927
    %v3651 = vunpack.c.l.b16 %v2928
    %v3652 = vunpack.c.h.b16 %v2928
    %v3653 = vunpack.c.l.b16 %v2929
    %v3654 = vunpack.c.h.b16 %v2929
    %v3655 = vunpack.c.l.b16 %v2930
    %v3656 = vunpack.c.h.b16 %v2930
    %v3657 = vunpack.c.l.b16 %v2931
    %v3658 = vunpack.c.h.b16 %v2931
    %v3659 = vunpack.c.l.b16 %v2932
    %v3660 = vunpack.c.h.b16 %v2932
    %v3661 = vunpack.c.l.b16 %v2933
    %v3662 = vunpack.c.h.b16 %v2933
    %v3663 = vunpack.c.l.b16 %v2934
    %v3664 = vunpack.c.h.b16 %v2934
    %v3665 = vunpack.c.l.b16 %v2935
    %v3666 = vunpack.c.h.b16 %v2935
    %v3667 = vunpack.c.l.b16 %v2936
    %v3668 = vunpack.c.h.b16 %v2936
    %v3669 = vunpack.c.l.b16 %v2937
    %v3670 = vunpack.c.h.b16 %v2937
    %v3671 = vunpack.c.l.b16 %v2938
    %v3672 = vunpack.c.h.b16 %v2938
    %v3673 = vunpack.c.l.b16 %v2939
    %v3674 = vunpack.c.h.b16 %v2939
    %v3675 = vunpack.c.l.b16 %v2940
    %v3676 = vunpack.c.h.b16 %v2940
    %v3677 = vunpack.c.l.b16 %v2941
    %v3678 = vunpack.c.h.b16 %v2941
    %v3679 = vunpack.c.l.b16 %v2942
    %v3680 = vunpack.c.h.b16 %v2942
    %v3681 = vunpack.c.l.b16 %v2943
    %v3682 = vunpack.c.h.b16 %v2943
    %v3683 = vunpack.c.l.b16 %v2944
    %v3684 = vunpack.c.h.b16 %v2944
    %v3685 = vunpack.c.l.b16 %v2945
    %v3686 = vunpack.c.h.b16 %v2945
    %v3687 = vunpack.c.l.b16 %v2946
    %v3688 = vunpack.c.h.b16 %v2946
    %v3689 = vunpack.c.l.b16 %v2947
    %v3690 = vunpack.c.h.b16 %v2947
    %v3691 = vunpack.c.l.b16 %v2948
    %v3692 = vunpack.c.h.b16 %v2948
    %v3693 = vunpack.c.l.b16 %v2949
    %v3694 = vunpack.c.h.b16 %v2949
    %v3695 = vunpack.c.l.b16 %v2950
    %v3696 = vunpack.c.h.b16 %v2950
    %v3697 = vunpack.c.l.b16 %v2951
    %v3698 = vunpack.c.h.b16 %v2951
    %v3699 = vunpack.c.l.b16 %v2952
    %v3700 = vunpack.c.h.b16 %v2952
    %v3701 = vunpack.c.l.b16 %v2953
    %v3702 = vunpack.c.h.b16 %v2953
    %v3703 = vunpack.c.l.b16 %v2954
    %v3704 = vunpack.c.h.b16 %v2954
    %v3705 = vunpack.c.l.b16 %v2955
    %v3706 = vunpack.c.h.b16 %v2955
    %v3707 = vunpack.c.l.b16 %v2956
    %v3708 = vunpack.c.h.b16 %v2956
    %v3709 = vunpack.c.l.b16 %v2957
    %v3710 = vunpack.c.h.b16 %v2957
    %v3711 = vunpack.c.l.b16 %v2958
    %v3712 = vunpack.c.h.b16 %v2958
    %v3713 = vunpack.c.l.b16 %v2959
    %v3714 = vunpack.c.h.b16 %v2959
    %v3715 = vunpack.c.l.b16 %v2960
    %v3716 = vunpack.c.h.b16 %v2960
    %v3717 = vunpack.c.l.b16 %v2961
    %v3718 = vunpack.c.h.b16 %v2961
    %v3719 = vunpack.c.l.b16 %v2962
    %v3720 = vunpack.c.h.b16 %v2962
    %v3721 = vunpack.c.l.b16 %v2963
    %v3722 = vunpack.c.h.b16 %v2963
    %v3723 = vunpack.c.l.b16 %v2964
    %v3724 = vunpack.c.h.b16 %v2964
    %v3725 = vunpack.c.l.b16 %v2965
    %v3726 = vunpack.c.h.b16 %v2965
    %v3727 = vunpack.c.l.b16 %v2966
    %v3728 = vunpack.c.h.b16 %v2966
    %v3729 = vunpack.c.l.b16 %v2967
    %v3730 = vunpack.c.h.b16 %v2967
    %v3731 = vunpack.c.l.b16 %v2968
    %v3732 = vunpack.c.h.b16 %v2968
    %v3733 = vunpack.c.l.b16 %v2969
    %v3734 = vunpack.c.h.b16 %v2969
    %v3735 = vunpack.c.l.b16 %v2970
    %v3736 = vunpack.c.h.b16 %v2970
    %v3737 = vunpack.c.l.b16 %v2971
    %v3738 = vunpack.c.h.b16 %v2971
    %v3739 = vunpack.c.l.b16 %v2972
    %v3740 = vunpack.c.h.b16 %v2972
    %v3741 = vunpack.c.l.b16 %v2973
    %v3742 = vunpack.c.h.b16 %v2973
    %v3743 = vunpack.c.l.b16 %v2974
    %v3744 = vunpack.c.h.b16 %v2974
    %v3745 = vunpack.c.l.b16 %v2975
    %v3746 = vunpack.c.h.b16 %v2975
    %v3747 = vunpack.c.l.b16 %v2976
    %v3748 = vunpack.c.h.b16 %v2976
    %v3749 = vunpack.c.l.b16 %v2977
    %v3750 = vunpack.c.h.b16 %v2977
    %v3751 = vunpack.c.l.b16 %v2978
    %v3752 = vunpack.c.h.b16 %v2978
    %v3753 = vunpack.c.l.b16 %v2979
    %v3754 = vunpack.c.h.b16 %v2979
    %v3755 = vunpack.c.l.b16 %v2980
    %v3756 = vunpack.c.h.b16 %v2980
    %v3757 = vunpack.c.l.b16 %v2981
    %v3758 = vunpack.c.h.b16 %v2981
    %v3759 = vunpack.c.l.b16 %v2982
    %v3760 = vunpack.c.h.b16 %v2982
    %v3761 = vpack.c.b16 %v3253, %v3249
    %v3762 = vpack.c.b16 %v3254, %v3250
    %v3763 = vpack.c.b16 %v3255, %v3251
    %v3764 = vpack.c.b16 %v3256, %v3252
    %v3765 = vpack.c.b16 %v3261, %v3257
    %v3766 = vpack.c.b16 %v3262, %v3258
    %v3767 = vpack.c.b16 %v3263, %v3259
    %v3768 = vpack.c.b16 %v3264, %v3260
    %v3769 = vpack.c.b16 %v3269, %v3265
    %v3770 = vpack.c.b16 %v3270, %v3266
    %v3771 = vpack.c.b16 %v3271, %v3267
    %v3772 = vpack.c.b16 %v3272, %v3268
    %v3773 = vpack.c.b16 %v3277, %v3273
    %v3774 = vpack.c.b16 %v3278, %v3274
    %v3775 = vpack.c.b16 %v3279, %v3275
    %v3776 = vpack.c.b16 %v3280, %v3276
    %v3777 = vpack.c.b16 %v3285, %v3281
    %v3778 = vpack.c.b16 %v3286, %v3282
    %v3779 = vpack.c.b16 %v3287, %v3283
    %v3780 = vpack.c.b16 %v3288, %v3284
    %v3781 = vpack.c.b16 %v3293, %v3289
    %v3782 = vpack.c.b16 %v3294, %v3290
    %v3783 = vpack.c.b16 %v3295, %v3291
    %v3784 = vpack.c.b16 %v3296, %v3292
    %v3785 = vpack.c.b16 %v3301, %v3297
    %v3786 = vpack.c.b16 %v3302, %v3298
    %v3787 = vpack.c.b16 %v3303, %v3299
    %v3788 = vpack.c.b16 %v3304, %v3300
    %v3789 = vpack.c.b16 %v3309, %v3305
    %v3790 = vpack.c.b16 %v3310, %v3306
    %v3791 = vpack.c.b16 %v3311, %v3307
    %v3792 = vpack.c.b16 %v3312, %v3308
    %v3793 = vpack.c.b16 %v3317, %v3313
    %v3794 = vpack.c.b16 %v3318, %v3314
    %v3795 = vpack.c.b16 %v3319, %v3315
    %v3796 = vpack.c.b16 %v3320, %v3316
    %v3797 = vpack.c.b16 %v3325, %v3321
    %v3798 = vpack.c.b16 %v3326, %v3322
    %v3799 = vpack.c.b16 %v3327, %v3323
    %v3800 = vpack.c.b16 %v3328, %v3324
    %v3801 = vpack.c.b16 %v3333, %v3329
    %v3802 = vpack.c.b16 %v3334, %v3330
    %v3803 = vpack.c.b16 %v3335, %v3331
    %v3804 = vpack.c.b16 %v3336, %v3332
    %v3805 = vpack.c.b16 %v3341, %v3337
    %v3806 = vpack.c.b16 %v3342, %v3338
    %v3807 = vpack.c.b16 %v3343, %v3339
    %v3808 = vpack.c.b16 %v3344, %v3340
    %v3809 = vpack.c.b16 %v3349, %v3345
    %v3810 = vpack.c.b16 %v3350, %v3346
    %v3811 = vpack.c.b16 %v3351, %v3347
    %v3812 = vpack.c.b16 %v3352, %v3348
    %v3813 = vpack.c.b16 %v3357, %v3353
    %v3814 = vpack.c.b16 %v3358, %v3354
    %v3815 = vpack.c.b16 %v3359, %v3355
    %v3816 = vpack.c.b16 %v3360, %v3356
    %v3817 = vpack.c.b16 %v3365, %v3361
    %v3818 = vpack.c.b16 %v3366, %v3362
    %v3819 = vpack.c.b16 %v3367, %v3363
    %v3820 = vpack.c.b16 %v3368, %v3364
    %v3821 = vpack.c.b16 %v3373, %v3369
    %v3822 = vpack.c.b16 %v3374, %v3370
    %v3823 = vpack.c.b16 %v3375, %v3371
    %v3824 = vpack.c.b16 %v3376, %v3372
    %v3825 = vpack.c.b16 %v3381, %v3377
    %v3826 = vpack.c.b16 %v3382, %v3378
    %v3827 = vpack.c.b16 %v3383, %v3379
    %v3828 = vpack.c.b16 %v3384, %v3380
    %v3829 = vpack.c.b16 %v3389, %v3385
    %v3830 = vpack.c.b16 %v3390, %v3386
    %v3831 = vpack.c.b16 %v3391, %v3387
    %v3832 = vpack.c.b16 %v3392, %v3388
    %v3833 = vpack.c.b16 %v3397, %v3393
    %v3834 = vpack.c.b16 %v3398, %v3394
    %v3835 = vpack.c.b16 %v3399, %v3395
    %v3836 = vpack.c.b16 %v3400, %v3396
    %v3837 = vpack.c.b16 %v3405, %v3401
    %v3838 = vpack.c.b16 %v3406, %v3402
    %v3839 = vpack.c.b16 %v3407, %v3403
    %v3840 = vpack.c.b16 %v3408, %v3404
    %v3841 = vpack.c.b16 %v3413, %v3409
    %v3842 = vpack.c.b16 %v3414, %v3410
    %v3843 = vpack.c.b16 %v3415, %v3411
    %v3844 = vpack.c.b16 %v3416, %v3412
    %v3845 = vpack.c.b16 %v3421, %v3417
    %v3846 = vpack.c.b16 %v3422, %v3418
    %v3847 = vpack.c.b16 %v3423, %v3419
    %v3848 = vpack.c.b16 %v3424, %v3420
    %v3849 = vpack.c.b16 %v3429, %v3425
    %v3850 = vpack.c.b16 %v3430, %v3426
    %v3851 = vpack.c.b16 %v3431, %v3427
    %v3852 = vpack.c.b16 %v3432, %v3428
    %v3853 = vpack.c.b16 %v3437, %v3433
    %v3854 = vpack.c.b16 %v3438, %v3434
    %v3855 = vpack.c.b16 %v3439, %v3435
    %v3856 = vpack.c.b16 %v3440, %v3436
    %v3857 = vpack.c.b16 %v3445, %v3441
    %v3858 = vpack.c.b16 %v3446, %v3442
    %v3859 = vpack.c.b16 %v3447, %v3443
    %v3860 = vpack.c.b16 %v3448, %v3444
    %v3861 = vpack.c.b16 %v3453, %v3449
    %v3862 = vpack.c.b16 %v3454, %v3450
    %v3863 = vpack.c.b16 %v3455, %v3451
    %v3864 = vpack.c.b16 %v3456, %v3452
    %v3865 = vpack.c.b16 %v3461, %v3457
    %v3866 = vpack.c.b16 %v3462, %v3458
    %v3867 = vpack.c.b16 %v3463, %v3459
    %v3868 = vpack.c.b16 %v3464, %v3460
    %v3869 = vpack.c.b16 %v3469, %v3465
    %v3870 = vpack.c.b16 %v3470, %v3466
    %v3871 = vpack.c.b16 %v3471, %v3467
    %v3872 = vpack.c.b16 %v3472, %v3468
    %v3873 = vpack.c.b16 %v3477, %v3473
    %v3874 = vpack.c.b16 %v3478, %v3474
    %v3875 = vpack.c.b16 %v3479, %v3475
    %v3876 = vpack.c.b16 %v3480, %v3476
    %v3877 = vpack.c.b16 %v3485, %v3481
    %v3878 = vpack.c.b16 %v3486, %v3482
    %v3879 = vpack.c.b16 %v3487, %v3483
    %v3880 = vpack.c.b16 %v3488, %v3484
    %v3881 = vpack.c.b16 %v3493, %v3489
    %v3882 = vpack.c.b16 %v3494, %v3490
    %v3883 = vpack.c.b16 %v3495, %v3491
    %v3884 = vpack.c.b16 %v3496, %v3492
    %v3885 = vpack.c.b16 %v3501, %v3497
    %v3886 = vpack.c.b16 %v3502, %v3498
    %v3887 = vpack.c.b16 %v3503, %v3499
    %v3888 = vpack.c.b16 %v3504, %v3500
    %v3889 = vpack.c.b16 %v3509, %v3505
    %v3890 = vpack.c.b16 %v3510, %v3506
    %v3891 = vpack.c.b16 %v3511, %v3507
    %v3892 = vpack.c.b16 %v3512, %v3508
    %v3893 = vpack.c.b16 %v3517, %v3513
    %v3894 = vpack.c.b16 %v3518, %v3514
    %v3895 = vpack.c.b16 %v3519, %v3515
    %v3896 = vpack.c.b16 %v3520, %v3516
    %v3897 = vpack.c.b16 %v3525, %v3521
    %v3898 = vpack.c.b16 %v3526, %v3522
    %v3899 = vpack.c.b16 %v3527, %v3523
    %v3900 = vpack.c.b16 %v3528, %v3524
    %v3901 = vpack.c.b16 %v3533, %v3529
    %v3902 = vpack.c.b16 %v3534, %v3530
    %v3903 = vpack.c.b16 %v3535, %v3531
    %v3904 = vpack.c.b16 %v3536, %v3532
    %v3905 = vpack.c.b16 %v3541, %v3537
    %v3906 = vpack.c.b16 %v3542, %v3538
    %v3907 = vpack.c.b16 %v3543, %v3539
    %v3908 = vpack.c.b16 %v3544, %v3540
    %v3909 = vpack.c.b16 %v3549, %v3545
    %v3910 = vpack.c.b16 %v3550, %v3546
    %v3911 = vpack.c.b16 %v3551, %v3547
    %v3912 = vpack.c.b16 %v3552, %v3548
    %v3913 = vpack.c.b16 %v3557, %v3553
    %v3914 = vpack.c.b16 %v3558, %v3554
    %v3915 = vpack.c.b16 %v3559, %v3555
    %v3916 = vpack.c.b16 %v3560, %v3556
    %v3917 = vpack.c.b16 %v3565, %v3561
    %v3918 = vpack.c.b16 %v3566, %v3562
    %v3919 = vpack.c.b16 %v3567, %v3563
    %v3920 = vpack.c.b16 %v3568, %v3564
    %v3921 = vpack.c.b16 %v3573, %v3569
    %v3922 = vpack.c.b16 %v3574, %v3570
    %v3923 = vpack.c.b16 %v3575, %v3571
    %v3924 = vpack.c.b16 %v3576, %v3572
    %v3925 = vpack.c.b16 %v3581, %v3577
    %v3926 = vpack.c.b16 %v3582, %v3578
    %v3927 = vpack.c.b16 %v3583, %v3579
    %v3928 = vpack.c.b16 %v3584, %v3580
    %v3929 = vpack.c.b16 %v3589, %v3585
    %v3930 = vpack.c.b16 %v3590, %v3586
    %v3931 = vpack.c.b16 %v3591, %v3587
    %v3932 = vpack.c.b16 %v3592, %v3588
    %v3933 = vpack.c.b16 %v3597, %v3593
    %v3934 = vpack.c.b16 %v3598, %v3594
    %v3935 = vpack.c.b16 %v3599, %v3595
    %v3936 = vpack.c.b16 %v3600, %v3596
    %v3937 = vpack.c.b16 %v3605, %v3601
    %v3938 = vpack.c.b16 %v3606, %v3602
    %v3939 = vpack.c.b16 %v3607, %v3603
    %v3940 = vpack.c.b16 %v3608, %v3604
    %v3941 = vpack.c.b16 %v3613, %v3609
    %v3942 = vpack.c.b16 %v3614, %v3610
    %v3943 = vpack.c.b16 %v3615, %v3611
    %v3944 = vpack.c.b16 %v3616, %v3612
    %v3945 = vpack.c.b16 %v3621, %v3617
    %v3946 = vpack.c.b16 %v3622, %v3618
    %v3947 = vpack.c.b16 %v3623, %v3619
    %v3948 = vpack.c.b16 %v3624, %v3620
    %v3949 = vpack.c.b16 %v3629, %v3625
    %v3950 = vpack.c.b16 %v3630, %v3626
    %v3951 = vpack.c.b16 %v3631, %v3627
    %v3952 = vpack.c.b16 %v3632, %v3628
    %v3953 = vpack.c.b16 %v3637, %v3633
    %v3954 = vpack.c.b16 %v3638, %v3634
    %v3955 = vpack.c.b16 %v3639, %v3635
    %v3956 = vpack.c.b16 %v3640, %v3636
    %v3957 = vpack.c.b16 %v3645, %v3641
    %v3958 = vpack.c.b16 %v3646, %v3642
    %v3959 = vpack.c.b16 %v3647, %v3643
    %v3960 = vpack.c.b16 %v3648, %v3644
    %v3961 = vpack.c.b16 %v3653, %v3649
    %v3962 = vpack.c.b16 %v3654, %v3650
    %v3963 = vpack.c.b16 %v3655, %v3651
    %v3964 = vpack.c.b16 %v3656, %v3652
    %v3965 = vpack.c.b16 %v3661, %v3657
    %v3966 = vpack.c.b16 %v3662, %v3658
    %v3967 = vpack.c.b16 %v3663, %v3659
    %v3968 = vpack.c.b16 %v3664, %v3660
    %v3969 = vpack.c.b16 %v3669, %v3665
    %v3970 = vpack.c.b16 %v3670, %v3666
    %v3971 = vpack.c.b16 %v3671, %v3667
    %v3972 = vpack.c.b16 %v3672, %v3668
    %v3973 = vpack.c.b16 %v3677, %v3673
    %v3974 = vpack.c.b16 %v3678, %v3674
    %v3975 = vpack.c.b16 %v3679, %v3675
    %v3976 = vpack.c.b16 %v3680, %v3676
    %v3977 = vpack.c.b16 %v3685, %v3681
    %v3978 = vpack.c.b16 %v3686, %v3682
    %v3979 = vpack.c.b16 %v3687, %v3683
    %v3980 = vpack.c.b16 %v3688, %v3684
    %v3981 = vpack.c.b16 %v3693, %v3689
    %v3982 = vpack.c.b16 %v3694, %v3690
    %v3983 = vpack.c.b16 %v3695, %v3691
    %v3984 = vpack.c.b16 %v3696, %v3692
    %v3985 = vpack.c.b16 %v3701, %v3697
    %v3986 = vpack.c.b16 %v3702, %v3698
    %v3987 = vpack.c.b16 %v3703, %v3699
    %v3988 = vpack.c.b16 %v3704, %v3700
    %v3989 = vpack.c.b16 %v3709, %v3705
    %v3990 = vpack.c.b16 %v3710, %v3706
    %v3991 = vpack.c.b16 %v3711, %v3707
    %v3992 = vpack.c.b16 %v3712, %v3708
    %v3993 = vpack.c.b16 %v3717, %v3713
    %v3994 = vpack.c.b16 %v3718, %v3714
    %v3995 = vpack.c.b16 %v3719, %v3715
    %v3996 = vpack.c.b16 %v3720, %v3716
    %v3997 = vpack.c.b16 %v3725, %v3721
    %v3998 = vpack.c.b16 %v3726, %v3722
    %v3999 = vpack.c.b16 %v3727, %v3723
    %v4000 = vpack.c.b16 %v3728, %v3724
    %v4001 = vpack.c.b16 %v3733, %v3729
    %v4002 = vpack.c.b16 %v3734, %v3730
    %v4003 = vpack.c.b16 %v3735, %v3731
    %v4004 = vpack.c.b16 %v3736, %v3732
    %v4005 = vpack.c.b16 %v3741, %v3737
    %v4006 = vpack.c.b16 %v3742, %v3738
    %v4007 = vpack.c.b16 %v3743, %v3739
    %v4008 = vpack.c.b16 %v3744, %v3740
    %v4009 = vpack.c.b16 %v3749, %v3745
    %v4010 = vpack.c.b16 %v3750, %v3746
    %v4011 = vpack.c.b16 %v3751, %v3747
    %v4012 = vpack.c.b16 %v3752, %v3748
    %v4013 = vpack.c.b16 %v3757, %v3753
    %v4014 = vpack.c.b16 %v3758, %v3754
    %v4015 = vpack.c.b16 %v3759, %v3755
    %v4016 = vpack.c.b16 %v3760, %v3756
    %4273 = vmatpush.bf16.msra.mxu0 %v3789
    %4274 = vmatpush.bf16.msra.mxu0 %v3785
    %4275 = vmatpush.bf16.msra.mxu0 %v3781
    %4276 = vmatpush.bf16.msra.mxu0 %v3777
    %4277 = vmatpush.bf16.msra.mxu0 %v3773
    %4278 = vmatpush.bf16.msra.mxu0 %v3769
    %4279 = vmatpush.bf16.msra.mxu0 %v3765
    %4280 = vmatpush.bf16.msra.mxu0 %v3761
    %4281 = vmatmul.bf16.gmra.mxu0 %v2719
    %v4282 = vpop.f32.mrf.mxu0
    %v4283 = vadd.f32 %v2985, %v4282
    %v4284 = vpop.f32.mrf.mxu0
    %4285 = vdwg.mxu0
    %4286 = vmatpush.bf16.msra.mxu0 %v3821
    %4287 = vmatpush.bf16.msra.mxu0 %v3817
    %4288 = vmatpush.bf16.msra.mxu0 %v3813
    %4289 = vmatpush.bf16.msra.mxu0 %v3809
    %4290 = vmatpush.bf16.msra.mxu0 %v3805
    %4291 = vmatpush.bf16.msra.mxu0 %v3801
    %4292 = vmatpush.bf16.msra.mxu0 %v3797
    %4293 = vmatpush.bf16.msra.mxu0 %v3793
    %4294 = vmatmul.bf16.gmra.mxu0 %v2720
    %v4295 = vpop.f32.mrf.mxu0
    %v4296 = vadd.f32 %v4283, %v4295
    %v4297 = vpop.f32.mrf.mxu0
    %4298 = vdwg.mxu0
    %4299 = vmatpush.bf16.msra.mxu0 %v3853
    %4300 = vmatpush.bf16.msra.mxu0 %v3849
    %4301 = vmatpush.bf16.msra.mxu0 %v3845
    %4302 = vmatpush.bf16.msra.mxu0 %v3841
    %4303 = vmatpush.bf16.msra.mxu0 %v3837
    %4304 = vmatpush.bf16.msra.mxu0 %v3833
    %4305 = vmatpush.bf16.msra.mxu0 %v3829
    %4306 = vmatpush.bf16.msra.mxu0 %v3825
    %4307 = vmatmul.bf16.gmra.mxu0 %v2721
    %v4308 = vpop.f32.mrf.mxu0
    %v4309 = vadd.f32 %v4296, %v4308
    %v4310 = vpop.f32.mrf.mxu0
    %4311 = vdwg.mxu0
    %4312 = vmatpush.bf16.msra.mxu0 %v3885
    %4313 = vmatpush.bf16.msra.mxu0 %v3881
    %4314 = vmatpush.bf16.msra.mxu0 %v3877
    %4315 = vmatpush.bf16.msra.mxu0 %v3873
    %4316 = vmatpush.bf16.msra.mxu0 %v3869
    %4317 = vmatpush.bf16.msra.mxu0 %v3865
    %4318 = vmatpush.bf16.msra.mxu0 %v3861
    %4319 = vmatpush.bf16.msra.mxu0 %v3857
    %4320 = vmatmul.bf16.gmra.mxu0 %v2722
    %v4321 = vpop.f32.mrf.mxu0
    %v4322 = vadd.f32 %v4309, %v4321
    %v4323 = vpop.f32.mrf.mxu0
    %4324 = vdwg.mxu0
    %4325 = vmatpush.bf16.msra.mxu0 %v3917
    %4326 = vmatpush.bf16.msra.mxu0 %v3913
    %4327 = vmatpush.bf16.msra.mxu0 %v3909
    %4328 = vmatpush.bf16.msra.mxu0 %v3905
    %4329 = vmatpush.bf16.msra.mxu0 %v3901
    %4330 = vmatpush.bf16.msra.mxu0 %v3897
    %4331 = vmatpush.bf16.msra.mxu0 %v3893
    %4332 = vmatpush.bf16.msra.mxu0 %v3889
    %4333 = vmatmul.bf16.gmra.mxu0 %v2723
    %v4334 = vpop.f32.mrf.mxu0
    %v4335 = vadd.f32 %v4322, %v4334
    %v4336 = vpop.f32.mrf.mxu0
    %4337 = vdwg.mxu0
    %4338 = vmatpush.bf16.msra.mxu0 %v3949
    %4339 = vmatpush.bf16.msra.mxu0 %v3945
    %4340 = vmatpush.bf16.msra.mxu0 %v3941
    %4341 = vmatpush.bf16.msra.mxu0 %v3937
    %4342 = vmatpush.bf16.msra.mxu0 %v3933
    %4343 = vmatpush.bf16.msra.mxu0 %v3929
    %4344 = vmatpush.bf16.msra.mxu0 %v3925
    %4345 = vmatpush.bf16.msra.mxu0 %v3921
    %4346 = vmatmul.bf16.gmra.mxu0 %v2724
    %v4347 = vpop.f32.mrf.mxu0
    %v4348 = vadd.f32 %v4335, %v4347
    %v4349 = vpop.f32.mrf.mxu0
    %4350 = vdwg.mxu0
    %4351 = vmatpush.bf16.msra.mxu0 %v3981
    %4352 = vmatpush.bf16.msra.mxu0 %v3977
    %4353 = vmatpush.bf16.msra.mxu0 %v3973
    %4354 = vmatpush.bf16.msra.mxu0 %v3969
    %4355 = vmatpush.bf16.msra.mxu0 %v3965
    %4356 = vmatpush.bf16.msra.mxu0 %v3961
    %4357 = vmatpush.bf16.msra.mxu0 %v3957
    %4358 = vmatpush.bf16.msra.mxu0 %v3953
    %4359 = vmatmul.bf16.gmra.mxu0 %v2725
    %v4360 = vpop.f32.mrf.mxu0
    %v4361 = vadd.f32 %v4348, %v4360
    %v4362 = vpop.f32.mrf.mxu0
    %4363 = vdwg.mxu0
    %4364 = vmatpush.bf16.msra.mxu0 %v4013
    %4365 = vmatpush.bf16.msra.mxu0 %v4009
    %4366 = vmatpush.bf16.msra.mxu0 %v4005
    %4367 = vmatpush.bf16.msra.mxu0 %v4001
    %4368 = vmatpush.bf16.msra.mxu0 %v3997
    %4369 = vmatpush.bf16.msra.mxu0 %v3993
    %4370 = vmatpush.bf16.msra.mxu0 %v3989
    %4371 = vmatpush.bf16.msra.mxu0 %v3985
    %4372 = vmatmul.bf16.gmra.mxu0 %v2726
    %v4373 = vpop.f32.mrf.mxu0
    %v4374 = vadd.f32 %v4361, %v4373
    %v4375 = vpop.f32.mrf.mxu0
    %4376 = vdwg.mxu0
    %4377 = vmatpush.bf16.msra.mxu0 %v3790
    %4378 = vmatpush.bf16.msra.mxu0 %v3786
    %4379 = vmatpush.bf16.msra.mxu0 %v3782
    %4380 = vmatpush.bf16.msra.mxu0 %v3778
    %4381 = vmatpush.bf16.msra.mxu0 %v3774
    %4382 = vmatpush.bf16.msra.mxu0 %v3770
    %4383 = vmatpush.bf16.msra.mxu0 %v3766
    %4384 = vmatpush.bf16.msra.mxu0 %v3762
    %4385 = vmatmul.bf16.gmra.mxu0 %v2719
    %v4386 = vpop.f32.mrf.mxu0
    %v4387 = vadd.f32 %v2986, %v4386
    %v4388 = vpop.f32.mrf.mxu0
    %4389 = vdwg.mxu0
    %4390 = vmatpush.bf16.msra.mxu0 %v3822
    %4391 = vmatpush.bf16.msra.mxu0 %v3818
    %4392 = vmatpush.bf16.msra.mxu0 %v3814
    %4393 = vmatpush.bf16.msra.mxu0 %v3810
    %4394 = vmatpush.bf16.msra.mxu0 %v3806
    %4395 = vmatpush.bf16.msra.mxu0 %v3802
    %4396 = vmatpush.bf16.msra.mxu0 %v3798
    %4397 = vmatpush.bf16.msra.mxu0 %v3794
    %4398 = vmatmul.bf16.gmra.mxu0 %v2720
    %v4399 = vpop.f32.mrf.mxu0
    %v4400 = vadd.f32 %v4387, %v4399
    %v4401 = vpop.f32.mrf.mxu0
    %4402 = vdwg.mxu0
    %4403 = vmatpush.bf16.msra.mxu0 %v3854
    %4404 = vmatpush.bf16.msra.mxu0 %v3850
    %4405 = vmatpush.bf16.msra.mxu0 %v3846
    %4406 = vmatpush.bf16.msra.mxu0 %v3842
    %4407 = vmatpush.bf16.msra.mxu0 %v3838
    %4408 = vmatpush.bf16.msra.mxu0 %v3834
    %4409 = vmatpush.bf16.msra.mxu0 %v3830
    %4410 = vmatpush.bf16.msra.mxu0 %v3826
    %4411 = vmatmul.bf16.gmra.mxu0 %v2721
    %v4412 = vpop.f32.mrf.mxu0
    %v4413 = vadd.f32 %v4400, %v4412
    %v4414 = vpop.f32.mrf.mxu0
    %4415 = vdwg.mxu0
    %4416 = vmatpush.bf16.msra.mxu0 %v3886
    %4417 = vmatpush.bf16.msra.mxu0 %v3882
    %4418 = vmatpush.bf16.msra.mxu0 %v3878
    %4419 = vmatpush.bf16.msra.mxu0 %v3874
    %4420 = vmatpush.bf16.msra.mxu0 %v3870
    %4421 = vmatpush.bf16.msra.mxu0 %v3866
    %4422 = vmatpush.bf16.msra.mxu0 %v3862
    %4423 = vmatpush.bf16.msra.mxu0 %v3858
    %4424 = vmatmul.bf16.gmra.mxu0 %v2722
    %v4425 = vpop.f32.mrf.mxu0
    %v4426 = vadd.f32 %v4413, %v4425
    %v4427 = vpop.f32.mrf.mxu0
    %4428 = vdwg.mxu0
    %4429 = vmatpush.bf16.msra.mxu0 %v3918
    %4430 = vmatpush.bf16.msra.mxu0 %v3914
    %4431 = vmatpush.bf16.msra.mxu0 %v3910
    %4432 = vmatpush.bf16.msra.mxu0 %v3906
    %4433 = vmatpush.bf16.msra.mxu0 %v3902
    %4434 = vmatpush.bf16.msra.mxu0 %v3898
    %4435 = vmatpush.bf16.msra.mxu0 %v3894
    %4436 = vmatpush.bf16.msra.mxu0 %v3890
    %4437 = vmatmul.bf16.gmra.mxu0 %v2723
    %v4438 = vpop.f32.mrf.mxu0
    %v4439 = vadd.f32 %v4426, %v4438
    %v4440 = vpop.f32.mrf.mxu0
    %4441 = vdwg.mxu0
    %4442 = vmatpush.bf16.msra.mxu0 %v3950
    %4443 = vmatpush.bf16.msra.mxu0 %v3946
    %4444 = vmatpush.bf16.msra.mxu0 %v3942
    %4445 = vmatpush.bf16.msra.mxu0 %v3938
    %4446 = vmatpush.bf16.msra.mxu0 %v3934
    %4447 = vmatpush.bf16.msra.mxu0 %v3930
    %4448 = vmatpush.bf16.msra.mxu0 %v3926
    %4449 = vmatpush.bf16.msra.mxu0 %v3922
    %4450 = vmatmul.bf16.gmra.mxu0 %v2724
    %v4451 = vpop.f32.mrf.mxu0
    %v4452 = vadd.f32 %v4439, %v4451
    %v4453 = vpop.f32.mrf.mxu0
    %4454 = vdwg.mxu0
    %4455 = vmatpush.bf16.msra.mxu0 %v3982
    %4456 = vmatpush.bf16.msra.mxu0 %v3978
    %4457 = vmatpush.bf16.msra.mxu0 %v3974
    %4458 = vmatpush.bf16.msra.mxu0 %v3970
    %4459 = vmatpush.bf16.msra.mxu0 %v3966
    %4460 = vmatpush.bf16.msra.mxu0 %v3962
    %4461 = vmatpush.bf16.msra.mxu0 %v3958
    %4462 = vmatpush.bf16.msra.mxu0 %v3954
    %4463 = vmatmul.bf16.gmra.mxu0 %v2725
    %v4464 = vpop.f32.mrf.mxu0
    %v4465 = vadd.f32 %v4452, %v4464
    %v4466 = vpop.f32.mrf.mxu0
    %4467 = vdwg.mxu0
    %4468 = vmatpush.bf16.msra.mxu0 %v4014
    %4469 = vmatpush.bf16.msra.mxu0 %v4010
    %4470 = vmatpush.bf16.msra.mxu0 %v4006
    %4471 = vmatpush.bf16.msra.mxu0 %v4002
    %4472 = vmatpush.bf16.msra.mxu0 %v3998
    %4473 = vmatpush.bf16.msra.mxu0 %v3994
    %4474 = vmatpush.bf16.msra.mxu0 %v3990
    %4475 = vmatpush.bf16.msra.mxu0 %v3986
    %4476 = vmatmul.bf16.gmra.mxu0 %v2726
    %v4477 = vpop.f32.mrf.mxu0
    %v4478 = vadd.f32 %v4465, %v4477
    %v4479 = vpop.f32.mrf.mxu0
    %4480 = vdwg.mxu0
    %4481 = vmatpush.bf16.msra.mxu0 %v3791
    %4482 = vmatpush.bf16.msra.mxu0 %v3787
    %4483 = vmatpush.bf16.msra.mxu0 %v3783
    %4484 = vmatpush.bf16.msra.mxu0 %v3779
    %4485 = vmatpush.bf16.msra.mxu0 %v3775
    %4486 = vmatpush.bf16.msra.mxu0 %v3771
    %4487 = vmatpush.bf16.msra.mxu0 %v3767
    %4488 = vmatpush.bf16.msra.mxu0 %v3763
    %4489 = vmatmul.bf16.gmra.mxu0 %v2719
    %v4490 = vpop.f32.mrf.mxu0
    %v4491 = vadd.f32 %v2987, %v4490
    %v4492 = vpop.f32.mrf.mxu0
    %4493 = vdwg.mxu0
    %4494 = vmatpush.bf16.msra.mxu0 %v3823
    %4495 = vmatpush.bf16.msra.mxu0 %v3819
    %4496 = vmatpush.bf16.msra.mxu0 %v3815
    %4497 = vmatpush.bf16.msra.mxu0 %v3811
    %4498 = vmatpush.bf16.msra.mxu0 %v3807
    %4499 = vmatpush.bf16.msra.mxu0 %v3803
    %4500 = vmatpush.bf16.msra.mxu0 %v3799
    %4501 = vmatpush.bf16.msra.mxu0 %v3795
    %4502 = vmatmul.bf16.gmra.mxu0 %v2720
    %v4503 = vpop.f32.mrf.mxu0
    %v4504 = vadd.f32 %v4491, %v4503
    %v4505 = vpop.f32.mrf.mxu0
    %4506 = vdwg.mxu0
    %4507 = vmatpush.bf16.msra.mxu0 %v3855
    %4508 = vmatpush.bf16.msra.mxu0 %v3851
    %4509 = vmatpush.bf16.msra.mxu0 %v3847
    %4510 = vmatpush.bf16.msra.mxu0 %v3843
    %4511 = vmatpush.bf16.msra.mxu0 %v3839
    %4512 = vmatpush.bf16.msra.mxu0 %v3835
    %4513 = vmatpush.bf16.msra.mxu0 %v3831
    %4514 = vmatpush.bf16.msra.mxu0 %v3827
    %4515 = vmatmul.bf16.gmra.mxu0 %v2721
    %v4516 = vpop.f32.mrf.mxu0
    %v4517 = vadd.f32 %v4504, %v4516
    %v4518 = vpop.f32.mrf.mxu0
    %4519 = vdwg.mxu0
    %4520 = vmatpush.bf16.msra.mxu0 %v3887
    %4521 = vmatpush.bf16.msra.mxu0 %v3883
    %4522 = vmatpush.bf16.msra.mxu0 %v3879
    %4523 = vmatpush.bf16.msra.mxu0 %v3875
    %4524 = vmatpush.bf16.msra.mxu0 %v3871
    %4525 = vmatpush.bf16.msra.mxu0 %v3867
    %4526 = vmatpush.bf16.msra.mxu0 %v3863
    %4527 = vmatpush.bf16.msra.mxu0 %v3859
    %4528 = vmatmul.bf16.gmra.mxu0 %v2722
    %v4529 = vpop.f32.mrf.mxu0
    %v4530 = vadd.f32 %v4517, %v4529
    %v4531 = vpop.f32.mrf.mxu0
    %4532 = vdwg.mxu0
    %4533 = vmatpush.bf16.msra.mxu0 %v3919
    %4534 = vmatpush.bf16.msra.mxu0 %v3915
    %4535 = vmatpush.bf16.msra.mxu0 %v3911
    %4536 = vmatpush.bf16.msra.mxu0 %v3907
    %4537 = vmatpush.bf16.msra.mxu0 %v3903
    %4538 = vmatpush.bf16.msra.mxu0 %v3899
    %4539 = vmatpush.bf16.msra.mxu0 %v3895
    %4540 = vmatpush.bf16.msra.mxu0 %v3891
    %4541 = vmatmul.bf16.gmra.mxu0 %v2723
    %v4542 = vpop.f32.mrf.mxu0
    %v4543 = vadd.f32 %v4530, %v4542
    %v4544 = vpop.f32.mrf.mxu0
    %4545 = vdwg.mxu0
    %4546 = vmatpush.bf16.msra.mxu0 %v3951
    %4547 = vmatpush.bf16.msra.mxu0 %v3947
    %4548 = vmatpush.bf16.msra.mxu0 %v3943
    %4549 = vmatpush.bf16.msra.mxu0 %v3939
    %4550 = vmatpush.bf16.msra.mxu0 %v3935
    %4551 = vmatpush.bf16.msra.mxu0 %v3931
    %4552 = vmatpush.bf16.msra.mxu0 %v3927
    %4553 = vmatpush.bf16.msra.mxu0 %v3923
    %4554 = vmatmul.bf16.gmra.mxu0 %v2724
    %v4555 = vpop.f32.mrf.mxu0
    %v4556 = vadd.f32 %v4543, %v4555
    %v4557 = vpop.f32.mrf.mxu0
    %4558 = vdwg.mxu0
    %4559 = vmatpush.bf16.msra.mxu0 %v3983
    %4560 = vmatpush.bf16.msra.mxu0 %v3979
    %4561 = vmatpush.bf16.msra.mxu0 %v3975
    %4562 = vmatpush.bf16.msra.mxu0 %v3971
    %4563 = vmatpush.bf16.msra.mxu0 %v3967
    %4564 = vmatpush.bf16.msra.mxu0 %v3963
    %4565 = vmatpush.bf16.msra.mxu0 %v3959
    %4566 = vmatpush.bf16.msra.mxu0 %v3955
    %4567 = vmatmul.bf16.gmra.mxu0 %v2725
    %v4568 = vpop.f32.mrf.mxu0
    %v4569 = vadd.f32 %v4556, %v4568
    %v4570 = vpop.f32.mrf.mxu0
    %4571 = vdwg.mxu0
    %4572 = vmatpush.bf16.msra.mxu0 %v4015
    %4573 = vmatpush.bf16.msra.mxu0 %v4011
    %4574 = vmatpush.bf16.msra.mxu0 %v4007
    %4575 = vmatpush.bf16.msra.mxu0 %v4003
    %4576 = vmatpush.bf16.msra.mxu0 %v3999
    %4577 = vmatpush.bf16.msra.mxu0 %v3995
    %4578 = vmatpush.bf16.msra.mxu0 %v3991
    %4579 = vmatpush.bf16.msra.mxu0 %v3987
    %4580 = vmatmul.bf16.gmra.mxu0 %v2726
    %v4581 = vpop.f32.mrf.mxu0
    %v4582 = vadd.f32 %v4569, %v4581
    %v4583 = vpop.f32.mrf.mxu0
    %4584 = vdwg.mxu0
    %4585 = vmatpush.bf16.msra.mxu0 %v3792
    %4586 = vmatpush.bf16.msra.mxu0 %v3788
    %4587 = vmatpush.bf16.msra.mxu0 %v3784
    %4588 = vmatpush.bf16.msra.mxu0 %v3780
    %4589 = vmatpush.bf16.msra.mxu0 %v3776
    %4590 = vmatpush.bf16.msra.mxu0 %v3772
    %4591 = vmatpush.bf16.msra.mxu0 %v3768
    %4592 = vmatpush.bf16.msra.mxu0 %v3764
    %4593 = vmatmul.bf16.gmra.mxu0 %v2719
    %v4594 = vpop.f32.mrf.mxu0
    %v4595 = vadd.f32 %v2988, %v4594
    %v4596 = vpop.f32.mrf.mxu0
    %4597 = vdwg.mxu0
    %4598 = vmatpush.bf16.msra.mxu0 %v3824
    %4599 = vmatpush.bf16.msra.mxu0 %v3820
    %4600 = vmatpush.bf16.msra.mxu0 %v3816
    %4601 = vmatpush.bf16.msra.mxu0 %v3812
    %4602 = vmatpush.bf16.msra.mxu0 %v3808
    %4603 = vmatpush.bf16.msra.mxu0 %v3804
    %4604 = vmatpush.bf16.msra.mxu0 %v3800
    %4605 = vmatpush.bf16.msra.mxu0 %v3796
    %4606 = vmatmul.bf16.gmra.mxu0 %v2720
    %v4607 = vpop.f32.mrf.mxu0
    %v4608 = vadd.f32 %v4595, %v4607
    %v4609 = vpop.f32.mrf.mxu0
    %4610 = vdwg.mxu0
    %4611 = vmatpush.bf16.msra.mxu0 %v3856
    %4612 = vmatpush.bf16.msra.mxu0 %v3852
    %4613 = vmatpush.bf16.msra.mxu0 %v3848
    %4614 = vmatpush.bf16.msra.mxu0 %v3844
    %4615 = vmatpush.bf16.msra.mxu0 %v3840
    %4616 = vmatpush.bf16.msra.mxu0 %v3836
    %4617 = vmatpush.bf16.msra.mxu0 %v3832
    %4618 = vmatpush.bf16.msra.mxu0 %v3828
    %4619 = vmatmul.bf16.gmra.mxu0 %v2721
    %v4620 = vpop.f32.mrf.mxu0
    %v4621 = vadd.f32 %v4608, %v4620
    %v4622 = vpop.f32.mrf.mxu0
    %4623 = vdwg.mxu0
    %4624 = vmatpush.bf16.msra.mxu0 %v3888
    %4625 = vmatpush.bf16.msra.mxu0 %v3884
    %4626 = vmatpush.bf16.msra.mxu0 %v3880
    %4627 = vmatpush.bf16.msra.mxu0 %v3876
    %4628 = vmatpush.bf16.msra.mxu0 %v3872
    %4629 = vmatpush.bf16.msra.mxu0 %v3868
    %4630 = vmatpush.bf16.msra.mxu0 %v3864
    %4631 = vmatpush.bf16.msra.mxu0 %v3860
    %4632 = vmatmul.bf16.gmra.mxu0 %v2722
    %v4633 = vpop.f32.mrf.mxu0
    %v4634 = vadd.f32 %v4621, %v4633
    %v4635 = vpop.f32.mrf.mxu0
    %4636 = vdwg.mxu0
    %4637 = vmatpush.bf16.msra.mxu0 %v3920
    %4638 = vmatpush.bf16.msra.mxu0 %v3916
    %4639 = vmatpush.bf16.msra.mxu0 %v3912
    %4640 = vmatpush.bf16.msra.mxu0 %v3908
    %4641 = vmatpush.bf16.msra.mxu0 %v3904
    %4642 = vmatpush.bf16.msra.mxu0 %v3900
    %4643 = vmatpush.bf16.msra.mxu0 %v3896
    %4644 = vmatpush.bf16.msra.mxu0 %v3892
    %4645 = vmatmul.bf16.gmra.mxu0 %v2723
    %v4646 = vpop.f32.mrf.mxu0
    %v4647 = vadd.f32 %v4634, %v4646
    %v4648 = vpop.f32.mrf.mxu0
    %4649 = vdwg.mxu0
    %4650 = vmatpush.bf16.msra.mxu0 %v3952
    %4651 = vmatpush.bf16.msra.mxu0 %v3948
    %4652 = vmatpush.bf16.msra.mxu0 %v3944
    %4653 = vmatpush.bf16.msra.mxu0 %v3940
    %4654 = vmatpush.bf16.msra.mxu0 %v3936
    %4655 = vmatpush.bf16.msra.mxu0 %v3932
    %4656 = vmatpush.bf16.msra.mxu0 %v3928
    %4657 = vmatpush.bf16.msra.mxu0 %v3924
    %4658 = vmatmul.bf16.gmra.mxu0 %v2724
    %v4659 = vpop.f32.mrf.mxu0
    %v4660 = vadd.f32 %v4647, %v4659
    %v4661 = vpop.f32.mrf.mxu0
    %4662 = vdwg.mxu0
    %4663 = vmatpush.bf16.msra.mxu0 %v3984
    %4664 = vmatpush.bf16.msra.mxu0 %v3980
    %4665 = vmatpush.bf16.msra.mxu0 %v3976
    %4666 = vmatpush.bf16.msra.mxu0 %v3972
    %4667 = vmatpush.bf16.msra.mxu0 %v3968
    %4668 = vmatpush.bf16.msra.mxu0 %v3964
    %4669 = vmatpush.bf16.msra.mxu0 %v3960
    %4670 = vmatpush.bf16.msra.mxu0 %v3956
    %4671 = vmatmul.bf16.gmra.mxu0 %v2725
    %v4672 = vpop.f32.mrf.mxu0
    %v4673 = vadd.f32 %v4660, %v4672
    %v4674 = vpop.f32.mrf.mxu0
    %4675 = vdwg.mxu0
    %4676 = vmatpush.bf16.msra.mxu0 %v4016
    %4677 = vmatpush.bf16.msra.mxu0 %v4012
    %4678 = vmatpush.bf16.msra.mxu0 %v4008
    %4679 = vmatpush.bf16.msra.mxu0 %v4004
    %4680 = vmatpush.bf16.msra.mxu0 %v4000
    %4681 = vmatpush.bf16.msra.mxu0 %v3996
    %4682 = vmatpush.bf16.msra.mxu0 %v3992
    %4683 = vmatpush.bf16.msra.mxu0 %v3988
    %4684 = vmatmul.bf16.gmra.mxu0 %v2726
    %v4685 = vpop.f32.mrf.mxu0
    %v4686 = vadd.f32 %v4673, %v4685
    %v4687 = vpop.f32.mrf.mxu0
    %4688 = vdwg.mxu0
    %v4689 = vmul.f32 %v4374, 0.5
    %v4690 = vmul.f32 %v4478, 0.5
    %v4691 = vmul.f32 %v4582, 0.5
    %v4692 = vmul.f32 %v4686, 0.5
    %v4693 = vmul.f32 %v4374, %v4374
    %v4694 = vmul.f32 %v4478, %v4478
    %v4695 = vmul.f32 %v4582, %v4582
    %v4696 = vmul.f32 %v4686, %v4686
    %v4697 = vmul.f32 %v4693, %v4374
    %v4698 = vmul.f32 %v4694, %v4478
    %v4699 = vmul.f32 %v4695, %v4582
    %v4700 = vmul.f32 %v4696, %v4686
    %v4701 = vmul.f32 %v4697, 0.044715
    %v4702 = vmul.f32 %v4698, 0.044715
    %v4703 = vmul.f32 %v4699, 0.044715
    %v4704 = vmul.f32 %v4700, 0.044715
    %v4705 = vadd.f32 %v4374, %v4701
    %v4706 = vadd.f32 %v4478, %v4702
    %v4707 = vadd.f32 %v4582, %v4703
    %v4708 = vadd.f32 %v4686, %v4704
    %v4709 = vmul.f32 %v4705, 0.7978846
    %v4710 = vmul.f32 %v4706, 0.7978846
    %v4711 = vmul.f32 %v4707, 0.7978846
    %v4712 = vmul.f32 %v4708, 0.7978846
    %v4713 = vtanh.pop %v4709
    %v4714 = vtanh.pop %v4710
    %v4715 = vtanh.pop %v4711
    %v4716 = vtanh.pop %v4712
    %v4717 = vadd.f32 %v4713, 1.0
    %v4718 = vadd.f32 %v4714, 1.0
    %v4719 = vadd.f32 %v4715, 1.0
    %v4720 = vadd.f32 %v4716, 1.0
    %v4721 = vmul.f32 %v4689, %v4717
    %v4722 = vmul.f32 %v4690, %v4718
    %v4723 = vmul.f32 %v4691, %v4719
    %v4724 = vmul.f32 %v4692, %v4720
    %v4725 = vpack.c.bf16 %v4721, %v4721
    %v4726 = vpack.c.bf16 %v4722, %v4722
    %v4727 = vpack.c.bf16 %v4723, %v4723
    %v4728 = vpack.c.bf16 %v4724, %v4724
    %v4729 = vld [vmem:[#allocation12] sm:$0xf]
    %v4730 = vld [vmem:[#allocation12 + $0x4] sm:$0xf]
    %v4731 = vld [vmem:[#allocation12 + $0x8] sm:$0xf]
    %v4732 = vld [vmem:[#allocation12 + $0xc] sm:$0xf]
    %v4733 = vld [vmem:[#allocation12 + $0x10] sm:$0xf]
    %v4734 = vld [vmem:[#allocation12 + $0x14] sm:$0xf]
    %v4735 = vld [vmem:[#allocation12 + $0x18] sm:$0xf]
    %v4736 = vld [vmem:[#allocation12 + $0x1c] sm:$0xf]
    %v4737 = vld [vmem:[#allocation12 + $0x20] sm:$0xf]
    %v4738 = vld [vmem:[#allocation12 + $0x24] sm:$0xf]
    %v4739 = vld [vmem:[#allocation12 + $0x28] sm:$0xf]
    %v4740 = vld [vmem:[#allocation12 + $0x2c] sm:$0xf]
    %v4741 = vld [vmem:[#allocation12 + $0x30] sm:$0xf]
    %v4742 = vld [vmem:[#allocation12 + $0x34] sm:$0xf]
    %v4743 = vld [vmem:[#allocation12 + $0x38] sm:$0xf]
    %v4744 = vld [vmem:[#allocation12 + $0x3c] sm:$0xf]
    %v4745 = vld [vmem:[#allocation12 + $0x40] sm:$0xf]
    %v4746 = vld [vmem:[#allocation12 + $0x44] sm:$0xf]
    %v4747 = vld [vmem:[#allocation12 + $0x48] sm:$0xf]
    %v4748 = vld [vmem:[#allocation12 + $0x4c] sm:$0xf]
    %v4749 = vld [vmem:[#allocation12 + $0x50] sm:$0xf]
    %v4750 = vld [vmem:[#allocation12 + $0x54] sm:$0xf]
    %v4751 = vld [vmem:[#allocation12 + $0x58] sm:$0xf]
    %v4752 = vld [vmem:[#allocation12 + $0x5c] sm:$0xf]
    %v4753 = vld [vmem:[#allocation12 + $0x60] sm:$0xf]
    %v4754 = vld [vmem:[#allocation12 + $0x64] sm:$0xf]
    %v4755 = vld [vmem:[#allocation12 + $0x68] sm:$0xf]
    %v4756 = vld [vmem:[#allocation12 + $0x6c] sm:$0xf]
    %v4757 = vld [vmem:[#allocation12 + $0x70] sm:$0xf]
    %v4758 = vld [vmem:[#allocation12 + $0x74] sm:$0xf]
    %v4759 = vld [vmem:[#allocation12 + $0x78] sm:$0xf]
    %v4760 = vld [vmem:[#allocation12 + $0x7c] sm:$0xf]
    %v4761 = vld [vmem:[#allocation12 + $0x80] sm:$0xf]
    %v4762 = vld [vmem:[#allocation12 + $0x84] sm:$0xf]
    %v4763 = vld [vmem:[#allocation12 + $0x88] sm:$0xf]
    %v4764 = vld [vmem:[#allocation12 + $0x8c] sm:$0xf]
    %v4765 = vld [vmem:[#allocation12 + $0x90] sm:$0xf]
    %v4766 = vld [vmem:[#allocation12 + $0x94] sm:$0xf]
    %v4767 = vld [vmem:[#allocation12 + $0x98] sm:$0xf]
    %v4768 = vld [vmem:[#allocation12 + $0x9c] sm:$0xf]
    %v4769 = vld [vmem:[#allocation12 + $0xa0] sm:$0xf]
    %v4770 = vld [vmem:[#allocation12 + $0xa4] sm:$0xf]
    %v4771 = vld [vmem:[#allocation12 + $0xa8] sm:$0xf]
    %v4772 = vld [vmem:[#allocation12 + $0xac] sm:$0xf]
    %v4773 = vld [vmem:[#allocation12 + $0xb0] sm:$0xf]
    %v4774 = vld [vmem:[#allocation12 + $0xb4] sm:$0xf]
    %v4775 = vld [vmem:[#allocation12 + $0xb8] sm:$0xf]
    %v4776 = vld [vmem:[#allocation12 + $0xbc] sm:$0xf]
    %v4777 = vld [vmem:[#allocation12 + $0xc0] sm:$0xf]
    %v4778 = vld [vmem:[#allocation12 + $0xc4] sm:$0xf]
    %v4779 = vld [vmem:[#allocation12 + $0xc8] sm:$0xf]
    %v4780 = vld [vmem:[#allocation12 + $0xcc] sm:$0xf]
    %v4781 = vld [vmem:[#allocation12 + $0xd0] sm:$0xf]
    %v4782 = vld [vmem:[#allocation12 + $0xd4] sm:$0xf]
    %v4783 = vld [vmem:[#allocation12 + $0xd8] sm:$0xf]
    %v4784 = vld [vmem:[#allocation12 + $0xdc] sm:$0xf]
    %v4785 = vld [vmem:[#allocation12 + $0xe0] sm:$0xf]
    %v4786 = vld [vmem:[#allocation12 + $0xe4] sm:$0xf]
    %v4787 = vld [vmem:[#allocation12 + $0xe8] sm:$0xf]
    %v4788 = vld [vmem:[#allocation12 + $0xec] sm:$0xf]
    %v4789 = vld [vmem:[#allocation12 + $0xf0] sm:$0xf]
    %v4790 = vld [vmem:[#allocation12 + $0xf4] sm:$0xf]
    %v4791 = vld [vmem:[#allocation12 + $0xf8] sm:$0xf]
    %v4792 = vld [vmem:[#allocation12 + $0xfc] sm:$0xf]
    %v4793 = vld [vmem:[%s8] sm:$0x1]
    %v4795 = vperm.slane %v4793, 0
    %v4861 = vunpack.c.l.b16 %v4729
    %v4862 = vunpack.c.l.b16 %v4730
    %v4863 = vunpack.c.l.b16 %v4731
    %v4864 = vunpack.c.l.b16 %v4732
    %v4865 = vunpack.c.l.b16 %v4733
    %v4866 = vunpack.c.l.b16 %v4734
    %v4867 = vunpack.c.l.b16 %v4735
    %v4868 = vunpack.c.l.b16 %v4736
    %v4869 = vunpack.c.l.b16 %v4737
    %v4870 = vunpack.c.l.b16 %v4738
    %v4871 = vunpack.c.l.b16 %v4739
    %v4872 = vunpack.c.l.b16 %v4740
    %v4873 = vunpack.c.l.b16 %v4741
    %v4874 = vunpack.c.l.b16 %v4742
    %v4875 = vunpack.c.l.b16 %v4743
    %v4876 = vunpack.c.l.b16 %v4744
    %v4877 = vunpack.c.l.b16 %v4745
    %v4878 = vunpack.c.l.b16 %v4746
    %v4879 = vunpack.c.l.b16 %v4747
    %v4880 = vunpack.c.l.b16 %v4748
    %v4881 = vunpack.c.l.b16 %v4749
    %v4882 = vunpack.c.l.b16 %v4750
    %v4883 = vunpack.c.l.b16 %v4751
    %v4884 = vunpack.c.l.b16 %v4752
    %v4885 = vunpack.c.l.b16 %v4753
    %v4886 = vunpack.c.l.b16 %v4754
    %v4887 = vunpack.c.l.b16 %v4755
    %v4888 = vunpack.c.l.b16 %v4756
    %v4889 = vunpack.c.l.b16 %v4757
    %v4890 = vunpack.c.l.b16 %v4758
    %v4891 = vunpack.c.l.b16 %v4759
    %v4892 = vunpack.c.l.b16 %v4760
    %v4893 = vunpack.c.l.b16 %v4761
    %v4894 = vunpack.c.l.b16 %v4762
    %v4895 = vunpack.c.l.b16 %v4763
    %v4896 = vunpack.c.l.b16 %v4764
    %v4897 = vunpack.c.l.b16 %v4765
    %v4898 = vunpack.c.l.b16 %v4766
    %v4899 = vunpack.c.l.b16 %v4767
    %v4900 = vunpack.c.l.b16 %v4768
    %v4901 = vunpack.c.l.b16 %v4769
    %v4902 = vunpack.c.l.b16 %v4770
    %v4903 = vunpack.c.l.b16 %v4771
    %v4904 = vunpack.c.l.b16 %v4772
    %v4905 = vunpack.c.l.b16 %v4773
    %v4906 = vunpack.c.l.b16 %v4774
    %v4907 = vunpack.c.l.b16 %v4775
    %v4908 = vunpack.c.l.b16 %v4776
    %v4909 = vunpack.c.l.b16 %v4777
    %v4910 = vunpack.c.l.b16 %v4778
    %v4911 = vunpack.c.l.b16 %v4779
    %v4912 = vunpack.c.l.b16 %v4780
    %v4913 = vunpack.c.l.b16 %v4781
    %v4914 = vunpack.c.l.b16 %v4782
    %v4915 = vunpack.c.l.b16 %v4783
    %v4916 = vunpack.c.l.b16 %v4784
    %v4917 = vunpack.c.l.b16 %v4785
    %v4918 = vunpack.c.l.b16 %v4786
    %v4919 = vunpack.c.l.b16 %v4787
    %v4920 = vunpack.c.l.b16 %v4788
    %v4921 = vunpack.c.l.b16 %v4789
    %v4922 = vunpack.c.l.b16 %v4790
    %v4923 = vunpack.c.l.b16 %v4791
    %v4924 = vunpack.c.l.b16 %v4792
    %v4925 = vpack.c.b16 %v4862, %v4861
    %v4926 = vpack.c.b16 %v4864, %v4863
    %v4927 = vpack.c.b16 %v4866, %v4865
    %v4928 = vpack.c.b16 %v4868, %v4867
    %v4929 = vpack.c.b16 %v4870, %v4869
    %v4930 = vpack.c.b16 %v4872, %v4871
    %v4931 = vpack.c.b16 %v4874, %v4873
    %v4932 = vpack.c.b16 %v4876, %v4875
    %v4933 = vpack.c.b16 %v4878, %v4877
    %v4934 = vpack.c.b16 %v4880, %v4879
    %v4935 = vpack.c.b16 %v4882, %v4881
    %v4936 = vpack.c.b16 %v4884, %v4883
    %v4937 = vpack.c.b16 %v4886, %v4885
    %v4938 = vpack.c.b16 %v4888, %v4887
    %v4939 = vpack.c.b16 %v4890, %v4889
    %v4940 = vpack.c.b16 %v4892, %v4891
    %v4941 = vpack.c.b16 %v4894, %v4893
    %v4942 = vpack.c.b16 %v4896, %v4895
    %v4943 = vpack.c.b16 %v4898, %v4897
    %v4944 = vpack.c.b16 %v4900, %v4899
    %v4945 = vpack.c.b16 %v4902, %v4901
    %v4946 = vpack.c.b16 %v4904, %v4903
    %v4947 = vpack.c.b16 %v4906, %v4905
    %v4948 = vpack.c.b16 %v4908, %v4907
    %v4949 = vpack.c.b16 %v4910, %v4909
    %v4950 = vpack.c.b16 %v4912, %v4911
    %v4951 = vpack.c.b16 %v4914, %v4913
    %v4952 = vpack.c.b16 %v4916, %v4915
    %v4953 = vpack.c.b16 %v4918, %v4917
    %v4954 = vpack.c.b16 %v4920, %v4919
    %v4955 = vpack.c.b16 %v4922, %v4921
    %v4956 = vpack.c.b16 %v4924, %v4923
    %4989 = vmatpush.bf16.msra.mxu0 %v4932
    %4990 = vmatpush.bf16.msra.mxu0 %v4931
    %4991 = vmatpush.bf16.msra.mxu0 %v4930
    %4992 = vmatpush.bf16.msra.mxu0 %v4929
    %4993 = vmatpush.bf16.msra.mxu0 %v4928
    %4994 = vmatpush.bf16.msra.mxu0 %v4927
    %4995 = vmatpush.bf16.msra.mxu0 %v4926
    %4996 = vmatpush.bf16.msra.mxu0 %v4925
    %4997 = vmatmul.bf16.gmra.mxu0 %v4725
    %v4998 = vpop.f32.mrf.mxu0
    %v4999 = vadd.f32 %v4795, %v4998
    %v5000 = vpop.f32.mrf.mxu0
    %5001 = vdwg.mxu0
    %5002 = vmatpush.bf16.msra.mxu0 %v4940
    %5003 = vmatpush.bf16.msra.mxu0 %v4939
    %5004 = vmatpush.bf16.msra.mxu0 %v4938
    %5005 = vmatpush.bf16.msra.mxu0 %v4937
    %5006 = vmatpush.bf16.msra.mxu0 %v4936
    %5007 = vmatpush.bf16.msra.mxu0 %v4935
    %5008 = vmatpush.bf16.msra.mxu0 %v4934
    %5009 = vmatpush.bf16.msra.mxu0 %v4933
    %5010 = vmatmul.bf16.gmra.mxu0 %v4726
    %v5011 = vpop.f32.mrf.mxu0
    %v5012 = vadd.f32 %v4999, %v5011
    %v5013 = vpop.f32.mrf.mxu0
    %5014 = vdwg.mxu0
    %5015 = vmatpush.bf16.msra.mxu0 %v4948
    %5016 = vmatpush.bf16.msra.mxu0 %v4947
    %5017 = vmatpush.bf16.msra.mxu0 %v4946
    %5018 = vmatpush.bf16.msra.mxu0 %v4945
    %5019 = vmatpush.bf16.msra.mxu0 %v4944
    %5020 = vmatpush.bf16.msra.mxu0 %v4943
    %5021 = vmatpush.bf16.msra.mxu0 %v4942
    %5022 = vmatpush.bf16.msra.mxu0 %v4941
    %5023 = vmatmul.bf16.gmra.mxu0 %v4727
    %v5024 = vpop.f32.mrf.mxu0
    %v5025 = vadd.f32 %v5012, %v5024
    %v5026 = vpop.f32.mrf.mxu0
    %5027 = vdwg.mxu0
    %5028 = vmatpush.bf16.msra.mxu0 %v4956
    %5029 = vmatpush.bf16.msra.mxu0 %v4955
    %5030 = vmatpush.bf16.msra.mxu0 %v4954
    %5031 = vmatpush.bf16.msra.mxu0 %v4953
    %5032 = vmatpush.bf16.msra.mxu0 %v4952
    %5033 = vmatpush.bf16.msra.mxu0 %v4951
    %5034 = vmatpush.bf16.msra.mxu0 %v4950
    %5035 = vmatpush.bf16.msra.mxu0 %v4949
    %5036 = vmatmul.bf16.gmra.mxu0 %v4728
    %v5037 = vpop.f32.mrf.mxu0
    %v5038 = vadd.f32 %v5025, %v5037
    %v5039 = vpop.f32.mrf.mxu0
    %5040 = vdwg.mxu0
    %v5041 = vmax.f32 %v5038, 0.0
    %5042 = vst [vmem:[%s9] sm:$0xff] %v5041
    // Predicated region
    $region66: #{mappingt_forward.1} parent=1 // pred_check
      _
    $region67: #{mappingt_forward.1} parent=1 // pred_check_branch
      %5044 = sbr.rel (0) target = $region69
    $region68: #{mappingt_forward.1} parent=1 // pred_region
      _
    $region69: #{mappingt_forward.1} parent=1 // pred_fallthru
      _
    // Predicated region
    $region70: #{mappingt_forward.1} parent=1 // pred_check
      _
    $region71: #{mappingt_forward.1} parent=1 // pred_check_branch
      %5046 = sbr.rel (0) target = $region73
    $region72: #{mappingt_forward.1} parent=1 // pred_region
      _
    $region73: #{mappingt_forward.1} parent=1 // pred_fallthru
      _
    %5047 = vsyncpa [#allocation3], 1
    %5048 = vsyncpa [#allocation5], 1
    %5049 = vsyncpa [#allocation8], 1
    %5050 = vsyncpa [#allocation11], 1

</llo_original>
